<compile_context>
chip_gen: v5e
topology: v5e:2x2
jax: 0.10.0
libtpu: 0.0.40
codegen_flags: <defaults>
</compile_context>

<pallas_src>
import math

import jax
import jax.numpy as jnp
from jax import lax
from jax.experimental import pallas as pl
from jax.experimental.pallas import tpu as pltpu


# -----------------------------------------------------------------------------
# Fused multi-layer kernel.  grid=(num_layers,) is "arbitrary" (cross-layer
# dependency).  Weight blocks are indexed by the layer id; x / adj / out use a
# constant block index and stay VMEM-resident across the whole stack.
# -----------------------------------------------------------------------------
def fused_encoder_kernel(x_ref, adj_ref,
                         wqkv_ref, bqkv_ref, wo_ref, bo_ref,
                         g1_ref, be1_ref,
                         w1_ref, b1_ref, w2_ref, b2_ref,
                         g2_ref, be2_ref,
                         out_ref):
    layer = pl.program_id(0)
    d = out_ref.shape[-1]

    # Seed the resident (f32) output block with the input embeddings once.
    @pl.when(layer == 0)
    def _():
        out_ref[...] = x_ref[...].astype(out_ref.dtype)

    x = out_ref[...]                       # [N, D] f32 activation carry
    x_bf = x.astype(jnp.bfloat16)          # MXU operands in bf16

    # --- fused Q/K/V projection: one MXU weight push, 3D-lane-wide output.
    #     The 1/sqrt(D) attention scale is already folded into Wq / bq.
    qkv = jnp.dot(x_bf, wqkv_ref[...],
                  preferred_element_type=jnp.float32) + bqkv_ref[...]
    q = qkv[:, 0 * d:1 * d]
    k = qkv[:, 1 * d:2 * d]
    v = qkv[:, 2 * d:3 * d]

    # q @ k^T without an explicit transpose: contract the feature dim of both.
    scores = lax.dot_general(
        q.astype(jnp.bfloat16), k.astype(jnp.bfloat16),
        dimension_numbers=(((1,), (1,)), ((), ())),
        preferred_element_type=jnp.float32)

    # Edge mask as a single select (compact bf16 0/1 adjacency).
    scores = jnp.where(adj_ref[...] != 0, scores, -1e9)

    # Softmax: EUP exp, approximate reciprocal on the (otherwise idle) EUP slot.
    m = jnp.max(scores, axis=-1, keepdims=True)
    e = jnp.exp(scores - m)
    p = e * pl.reciprocal(jnp.sum(e, axis=-1, keepdims=True), approx=True)

    attn = jnp.dot(p.astype(jnp.bfloat16), v.astype(jnp.bfloat16),
                   preferred_element_type=jnp.float32)
    attn_out = jnp.dot(attn.astype(jnp.bfloat16), wo_ref[...],
                       preferred_element_type=jnp.float32) + bo_ref[...]

    def layernorm(h, g, b):
        # var = E[h^2] - mu^2: both row reductions read the same input (the two
        # XLU reductions can overlap) and no (h - mu) temporary is needed.
        mu = jnp.mean(h, axis=-1, keepdims=True)
        var = jnp.mean(h * h, axis=-1, keepdims=True) - mu * mu
        return (h - mu) * lax.rsqrt(var + 1e-5) * g + b

    # --- residual + LN, FFN, residual + LN ---
    h = layernorm(x + attn_out, g1_ref[...], be1_ref[...])
    ff = jnp.maximum(
        jnp.dot(h.astype(jnp.bfloat16), w1_ref[...],
                preferred_element_type=jnp.float32) + b1_ref[...], 0.0)
    ff = jnp.dot(ff.astype(jnp.bfloat16), w2_ref[...],
                 preferred_element_type=jnp.float32) + b2_ref[...]

    # Carry for the next layer lives in the resident output block; HBM
    # writeback happens only once, after the final grid step.
    out_ref[...] = layernorm(h + ff, g2_ref[...], be2_ref[...])


# -----------------------------------------------------------------------------
# Wrapper
# -----------------------------------------------------------------------------
def _adjacency(n, edge_index):
    src, dst = edge_index[0], edge_index[1]
    adj = jnp.zeros((n, n), jnp.float32)
    adj = adj.at[src, dst].set(1.0)
    adj = adj.at[dst, src].set(1.0)                         # undirected
    adj = jnp.maximum(adj, jnp.eye(n, dtype=jnp.float32))   # self-loops
    return adj


def _vmem_limit_bytes():
    # Generation-aware scoped-VMEM limit: ~100 MiB on 128 MiB parts (v5e/v6e),
    # ~56 MiB on 64 MiB parts (v7x).  Safe fallback if the query fails.
    try:
        cap = int(pltpu.get_tpu_info().vmem_capacity_bytes)
    except Exception:
        cap = 64 * 1024 * 1024
    return max(32 * 1024 * 1024,
               min(100 * 1024 * 1024, cap - 8 * 1024 * 1024))


def _stack_layer_params(layer_params, d_model):
    """Pack per-layer params for the kernel: fused bf16 Wq|Wk|Wv (scale folded
    into the Q slice), bf16 matmul weights, f32 biases / LN params, everything
    stacked on a leading layer axis so the layer grid pipelines weight DMA."""
    scale = 1.0 / math.sqrt(d_model)

    def per_layer(p):
        wqkv = jnp.concatenate([p["wq"] * scale, p["wk"], p["wv"]], axis=1)
        bqkv = jnp.concatenate([p["bq"] * scale, p["bk"], p["bv"]], axis=1)
        return (wqkv.astype(jnp.bfloat16), bqkv.astype(jnp.float32),
                p["wo"].astype(jnp.bfloat16), p["bo"].astype(jnp.float32),
                p["g1"].astype(jnp.float32), p["be1"].astype(jnp.float32),
                p["w1"].astype(jnp.bfloat16), p["b1"].astype(jnp.float32),
                p["w2"].astype(jnp.bfloat16), p["b2"].astype(jnp.float32),
                p["g2"].astype(jnp.float32), p["be2"].astype(jnp.float32))

    packed = [per_layer(p) for p in layer_params]
    return tuple(jnp.stack(ps, axis=0) for ps in zip(*packed))


def transformer_encoder(node_embed, edge_index, layer_params):
    """Mirrors TransformerEncoder.forward: apply each encoder layer in
    sequence, fused into a single pallas_call with grid=(num_layers,)."""
    n, d = node_embed.shape
    num_layers = len(layer_params)
    f = layer_params[0]["w1"].shape[1]

    adj = _adjacency(n, edge_index).astype(jnp.bfloat16)    # compact 0/1 mask
    stacked = _stack_layer_params(layer_params, d)

    const2d = lambda l: (0, 0)         # x / adj / out: resident across layers
    perlayer = lambda l: (l, 0, 0)     # weights: indexed by the layer grid axis

    in_specs = [
        pl.BlockSpec((n, d), const2d),                 # node embeddings
        pl.BlockSpec((n, n), const2d),                 # adjacency mask
        pl.BlockSpec((None, d, 3 * d), perlayer),      # Wqkv (fused, scaled)
        pl.BlockSpec((None, 1, 3 * d), perlayer),      # bqkv
        pl.BlockSpec((None, d, d), perlayer),          # Wo
        pl.BlockSpec((None, 1, d), perlayer),          # bo
        pl.BlockSpec((None, 1, d), perlayer),          # ln1 gamma
        pl.BlockSpec((None, 1, d), perlayer),          # ln1 beta
        pl.BlockSpec((None, d, f), perlayer),          # W1
        pl.BlockSpec((None, 1, f), perlayer),          # b1
        pl.BlockSpec((None, f, d), perlayer),          # W2
        pl.BlockSpec((None, 1, d), perlayer),          # b2
        pl.BlockSpec((None, 1, d), perlayer),          # ln2 gamma
        pl.BlockSpec((None, 1, d), perlayer),          # ln2 beta
    ]

    grid_spec = pltpu.PrefetchScalarGridSpec(
        num_scalar_prefetch=0,
        grid=(num_layers,),
        in_specs=in_specs,
        out_specs=pl.BlockSpec((n, d), const2d),       # activation carry
    )

    return pl.pallas_call(
        fused_encoder_kernel,
        out_shape=jax.ShapeDtypeStruct((n, d), jnp.float32),
        grid_spec=grid_spec,
        compiler_params=pltpu.CompilerParams(
            dimension_semantics=("arbitrary",),        # cross-layer dependency
            vmem_limit_bytes=_vmem_limit_bytes(),
        ),
    )(node_embed.astype(jnp.float32), adj, *stacked)


# -----------------------------------------------------------------------------
# Parameters: one encoder layer, deep-copied num_layers times (exactly what
# nn.ModuleList([copy.deepcopy(encoder_layer) for _ in range(L)]) produces).
# -----------------------------------------------------------------------------
def init_layer_params(key, d_model, d_ff, num_layers):
    ks = jax.random.split(key, 6)
    s = 1.0 / math.sqrt(d_model)
    sf = 1.0 / math.sqrt(d_ff)
    w = lambda k, shape, sc: jax.random.normal(k, shape, jnp.float32) * sc
    zd = jnp.zeros((1, d_model), jnp.float32)
    zf = jnp.zeros((1, d_ff), jnp.float32)
    od = jnp.ones((1, d_model), jnp.float32)
    layer = dict(
        wq=w(ks[0], (d_model, d_model), s), bq=zd,
        wk=w(ks[1], (d_model, d_model), s), bk=zd,
        wv=w(ks[2], (d_model, d_model), s), bv=zd,
        wo=w(ks[3], (d_model, d_model), s), bo=zd,
        g1=od, be1=zd,
        w1=w(ks[4], (d_model, d_ff), s), b1=zf,
        w2=w(ks[5], (d_ff, d_model), sf), b2=zd,
        g2=od, be2=zd,
    )
    return [layer] * num_layers            # deepcopy => identical parameters


# -----------------------------------------------------------------------------
# Pure-JAX reference (same bf16-operand / f32-accumulate math) for validation
# -----------------------------------------------------------------------------
def _r(a):  # emulate bf16 rounding of MXU operands
    return a.astype(jnp.bfloat16).astype(jnp.float32)


def reference_encoder(node_embed, edge_index, layer_params):
    n, d = node_embed.shape
    adj = _adjacency(n, edge_index)
    scale = 1.0 / math.sqrt(d)

    def ln(h, g, b):
        mu = jnp.mean(h, axis=-1, keepdims=True)
        var = jnp.mean((h - mu) ** 2, axis=-1, keepdims=True)
        return (h - mu) * lax.rsqrt(var + 1e-5) * g + b

    x = node_embed.astype(jnp.float32)
    for p in layer_params:
        q = _r(x) @ _r(p["wq"] * scale) + p["bq"] * scale
        k = _r(x) @ _r(p["wk"]) + p["bk"]
        v = _r(x) @ _r(p["wv"]) + p["bv"]
        scores = _r(q) @ _r(k).T
        scores = jnp.where(adj != 0, scores, -1e9)
        pr = jax.nn.softmax(scores, axis=-1)
        attn = _r(pr) @ _r(v)
        attn_out = _r(attn) @ _r(p["wo"]) + p["bo"]
        h = ln(x + attn_out, p["g1"], p["be1"])
        ff = jnp.maximum(_r(h) @ _r(p["w1"]) + p["b1"], 0.0)
        ff = _r(ff) @ _r(p["w2"]) + p["b2"]
        x = ln(h + ff, p["g2"], p["be2"])
    return x


# -----------------------------------------------------------------------------
if __name__ == "__main__":
    # MXU-row and lane dense demo shapes: N = D = 128, F = 256.
    N, D, F, E, NUM_LAYERS = 128, 128, 256, 256, 3

    key = jax.random.PRNGKey(0)
    k_x, k_e, k_p = jax.random.split(key, 3)

    node_embed = jax.random.normal(k_x, (N, D), jnp.float32)
    edge_index = jax.random.randint(k_e, (2, E), 0, N, dtype=jnp.int32)
    layer_params = init_layer_params(k_p, D, F, NUM_LAYERS)

    out = jax.block_until_ready(
        transformer_encoder(node_embed, edge_index, layer_params))
    ref = jax.block_until_ready(
        reference_encoder(node_embed, edge_index, layer_params))

    assert out.shape == (N, D)
    assert bool(jnp.all(jnp.isfinite(out)))
    max_err = float(jnp.max(jnp.abs(out - ref)))
    assert max_err < 1e-1, f"max abs err vs reference: {max_err}"
    print("KERNEL_OK")
</pallas_src>

<mosaic_0001>
module attributes {stable_mosaic.version = 11 : i64} {
  func.func @fused_encoder_kernel(%arg0: i32, %arg1: memref<128x128xf32, #tpu.memory_space<vmem>>, %arg2: memref<128x128xbf16, #tpu.memory_space<vmem>>, %arg3: memref<1x128x384xbf16, #tpu.memory_space<vmem>>, %arg4: memref<1x1x384xf32, #tpu.memory_space<vmem>>, %arg5: memref<1x128x128xbf16, #tpu.memory_space<vmem>>, %arg6: memref<1x1x128xf32, #tpu.memory_space<vmem>>, %arg7: memref<1x1x128xf32, #tpu.memory_space<vmem>>, %arg8: memref<1x1x128xf32, #tpu.memory_space<vmem>>, %arg9: memref<1x128x256xbf16, #tpu.memory_space<vmem>>, %arg10: memref<1x1x256xf32, #tpu.memory_space<vmem>>, %arg11: memref<1x256x128xbf16, #tpu.memory_space<vmem>>, %arg12: memref<1x1x128xf32, #tpu.memory_space<vmem>>, %arg13: memref<1x1x128xf32, #tpu.memory_space<vmem>>, %arg14: memref<1x1x128xf32, #tpu.memory_space<vmem>>, %arg15: memref<128x128xf32, #tpu.memory_space<vmem>>) attributes {dimension_semantics = [#tpu.dimension_semantics<arbitrary>], iteration_bounds = array<i64: 3>, scalar_prefetch = 0 : i64, scratch_operands = 0 : i64, tpu.core_type = #tpu.core_type<tc>, window_params = [{pipeline_mode = #tpu.pipeline_mode<synchronous>, transform_indices = @transform_0, window_bounds = array<i64: 128, 128>}, {pipeline_mode = #tpu.pipeline_mode<synchronous>, transform_indices = @transform_1, window_bounds = array<i64: 128, 128>}, {transform_indices = @transform_2, window_bounds = array<i64: 1, 128, 384>}, {transform_indices = @transform_3, window_bounds = array<i64: 1, 1, 384>}, {transform_indices = @transform_4, window_bounds = array<i64: 1, 128, 128>}, {transform_indices = @transform_5, window_bounds = array<i64: 1, 1, 128>}, {transform_indices = @transform_6, window_bounds = array<i64: 1, 1, 128>}, {transform_indices = @transform_7, window_bounds = array<i64: 1, 1, 128>}, {transform_indices = @transform_8, window_bounds = array<i64: 1, 128, 256>}, {transform_indices = @transform_9, window_bounds = array<i64: 1, 1, 256>}, {transform_indices = @transform_10, window_bounds = array<i64: 1, 256, 128>}, {transform_indices = @transform_11, window_bounds = array<i64: 1, 1, 128>}, {transform_indices = @transform_12, window_bounds = array<i64: 1, 1, 128>}, {transform_indices = @transform_13, window_bounds = array<i64: 1, 1, 128>}, {pipeline_mode = #tpu.pipeline_mode<synchronous>, transform_indices = @transform_14, window_bounds = array<i64: 128, 128>}]} {
    %c0_i32 = arith.constant 0 : i32
    %0 = arith.cmpi eq, %arg0, %c0_i32 : i32
    %1 = arith.extui %0 : i1 to i32
    %c0_i32_0 = arith.constant 0 : i32
    %2 = arith.cmpi ne, %1, %c0_i32_0 : i32
    scf.if %2 {
      %c0_62 = arith.constant 0 : index
      %c0_63 = arith.constant 0 : index
      %117 = vector.load %arg1[%c0_62, %c0_63] : memref<128x128xf32, #tpu.memory_space<vmem>>, vector<128x128xf32>
      %c0_64 = arith.constant 0 : index
      %c0_65 = arith.constant 0 : index
      %118 = vector.load %arg15[%c0_64, %c0_65] : memref<128x128xf32, #tpu.memory_space<vmem>>, vector<128x128xf32>
      tpu.vector_store %arg15[%c0_64, %c0_65], %117 {strides = array<i32>} : memref<128x128xf32, #tpu.memory_space<vmem>>, vector<128x128xf32>,
    } else {
    }
    %c0 = arith.constant 0 : index
    %c0_1 = arith.constant 0 : index
    %3 = vector.load %arg15[%c0, %c0_1] : memref<128x128xf32, #tpu.memory_space<vmem>>, vector<128x128xf32>
    %4 = arith.truncf %3 : vector<128x128xf32> to vector<128x128xbf16>
    %c0_2 = arith.constant 0 : index
    %c0_3 = arith.constant 0 : index
    %c0_4 = arith.constant 0 : index
    %5 = vector.load %arg3[%c0_2, %c0_3, %c0_4] : memref<1x128x384xbf16, #tpu.memory_space<vmem>>, vector<1x128x384xbf16>
    %6 = vector.shape_cast %5 : vector<1x128x384xbf16> to vector<128x384xbf16>
    %cst = arith.constant dense<0.000000e+00> : vector<128x384xf32>
    %7 = tpu.matmul %4, %6, %cst {dimension_numbers = #tpu.dot_dimension_numbers<[1], [0], [0], [1], [0, 0, 1, 1], [], []>} : vector<128x128xbf16>, vector<128x384xbf16>, vector<128x384xf32> -> vector<128x384xf32>
    %c0_5 = arith.constant 0 : index
    %c0_6 = arith.constant 0 : index
    %c0_7 = arith.constant 0 : index
    %8 = vector.load %arg4[%c0_5, %c0_6, %c0_7] : memref<1x1x384xf32, #tpu.memory_space<vmem>>, vector<1x1x384xf32>
    %9 = vector.shape_cast %8 : vector<1x1x384xf32> to vector<1x384xf32>
    %10 = vector.broadcast %9 : vector<1x384xf32> to vector<128x384xf32>
    %11 = arith.addf %7, %10 : vector<128x384xf32>
    %12 = vector.extract_strided_slice %11 {offsets = [0, 0], sizes = [128, 128], strides = [1, 1]} : vector<128x384xf32> to vector<128x128xf32>
    %13 = vector.extract_strided_slice %11 {offsets = [0, 128], sizes = [128, 128], strides = [1, 1]} : vector<128x384xf32> to vector<128x128xf32>
    %14 = vector.extract_strided_slice %11 {offsets = [0, 256], sizes = [128, 128], strides = [1, 1]} : vector<128x384xf32> to vector<128x128xf32>
    %15 = arith.truncf %12 : vector<128x128xf32> to vector<128x128xbf16>
    %16 = arith.truncf %13 : vector<128x128xf32> to vector<128x128xbf16>
    %cst_8 = arith.constant dense<0.000000e+00> : vector<128x128xf32>
    %17 = tpu.matmul %15, %16, %cst_8 {dimension_numbers = #tpu.dot_dimension_numbers<[1], [1], [0], [0], [0, 0, 1, 0], [], []>} : vector<128x128xbf16>, vector<128x128xbf16>, vector<128x128xf32> -> vector<128x128xf32>
    %c0_9 = arith.constant 0 : index
    %c0_10 = arith.constant 0 : index
    %18 = vector.load %arg2[%c0_9, %c0_10] : memref<128x128xbf16, #tpu.memory_space<vmem>>, vector<128x128xbf16>
    %cst_11 = arith.constant 0.000000e+00 : bf16
    %19 = vector.broadcast %cst_11 : bf16 to vector<128x128xbf16>
    %20 = arith.cmpf one, %18, %19 : vector<128x128xbf16>
    %cst_12 = arith.constant -1.000000e+09 : f32
    %21 = vector.broadcast %cst_12 : f32 to vector<128x128xf32>
    %22 = arith.select %20, %17, %21 : vector<128x128xi1>, vector<128x128xf32>
    %cst_13 = arith.constant dense<0xFF800000> : vector<128xf32>
    %23 = vector.multi_reduction <maximumf>, %22, %cst_13 [1] : vector<128x128xf32> to vector<128xf32>
    %24 = vector.shape_cast %23 : vector<128xf32> to vector<128x1xf32>
    %25 = vector.broadcast %24 : vector<128x1xf32> to vector<128x128xf32>
    %26 = arith.subf %22, %25 : vector<128x128xf32>
    %27 = math.exp %26 : vector<128x128xf32>
    %cst_14 = arith.constant dense<0.000000e+00> : vector<128xf32>
    %28 = vector.multi_reduction <add>, %27, %cst_14 [1] : vector<128x128xf32> to vector<128xf32>
    %29 = vector.shape_cast %28 : vector<128xf32> to vector<128x1xf32>
    %30 = tpu.reciprocal %29 {approx = true} : vector<128x1xf32> -> vector<128x1xf32>
    %31 = vector.broadcast %30 : vector<128x1xf32> to vector<128x128xf32>
    %32 = arith.mulf %27, %31 : vector<128x128xf32>
    %33 = arith.truncf %32 : vector<128x128xf32> to vector<128x128xbf16>
    %34 = arith.truncf %14 : vector<128x128xf32> to vector<128x128xbf16>
    %cst_15 = arith.constant dense<0.000000e+00> : vector<128x128xf32>
    %35 = tpu.matmul %33, %34, %cst_15 {dimension_numbers = #tpu.dot_dimension_numbers<[1], [0], [0], [1], [0, 0, 1, 1], [], []>} : vector<128x128xbf16>, vector<128x128xbf16>, vector<128x128xf32> -> vector<128x128xf32>
    %36 = arith.truncf %35 : vector<128x128xf32> to vector<128x128xbf16>
    %c0_16 = arith.constant 0 : index
    %c0_17 = arith.constant 0 : index
    %c0_18 = arith.constant 0 : index
    %37 = vector.load %arg5[%c0_16, %c0_17, %c0_18] : memref<1x128x128xbf16, #tpu.memory_space<vmem>>, vector<1x128x128xbf16>
    %38 = vector.shape_cast %37 : vector<1x128x128xbf16> to vector<128x128xbf16>
    %cst_19 = arith.constant dense<0.000000e+00> : vector<128x128xf32>
    %39 = tpu.matmul %36, %38, %cst_19 {dimension_numbers = #tpu.dot_dimension_numbers<[1], [0], [0], [1], [0, 0, 1, 1], [], []>} : vector<128x128xbf16>, vector<128x128xbf16>, vector<128x128xf32> -> vector<128x128xf32>
    %c0_20 = arith.constant 0 : index
    %c0_21 = arith.constant 0 : index
    %c0_22 = arith.constant 0 : index
    %40 = vector.load %arg6[%c0_20, %c0_21, %c0_22] : memref<1x1x128xf32, #tpu.memory_space<vmem>>, vector<1x1x128xf32>
    %41 = vector.shape_cast %40 : vector<1x1x128xf32> to vector<1x128xf32>
    %42 = vector.broadcast %41 : vector<1x128xf32> to vector<128x128xf32>
    %43 = arith.addf %39, %42 : vector<128x128xf32>
    %44 = arith.addf %3, %43 : vector<128x128xf32>
    %c0_23 = arith.constant 0 : index
    %c0_24 = arith.constant 0 : index
    %c0_25 = arith.constant 0 : index
    %45 = vector.load %arg7[%c0_23, %c0_24, %c0_25] : memref<1x1x128xf32, #tpu.memory_space<vmem>>, vector<1x1x128xf32>
    %46 = vector.shape_cast %45 : vector<1x1x128xf32> to vector<1x128xf32>
    %c0_26 = arith.constant 0 : index
    %c0_27 = arith.constant 0 : index
    %c0_28 = arith.constant 0 : index
    %47 = vector.load %arg8[%c0_26, %c0_27, %c0_28] : memref<1x1x128xf32, #tpu.memory_space<vmem>>, vector<1x1x128xf32>
    %48 = vector.shape_cast %47 : vector<1x1x128xf32> to vector<1x128xf32>
    %cst_29 = arith.constant dense<0.000000e+00> : vector<128xf32>
    %49 = vector.multi_reduction <add>, %44, %cst_29 [1] : vector<128x128xf32> to vector<128xf32>
    %50 = vector.shape_cast %49 : vector<128xf32> to vector<128x1xf32>
    %cst_30 = arith.constant 1.280000e+02 : f32
    %51 = vector.broadcast %cst_30 : f32 to vector<128x1xf32>
    %52 = arith.divf %50, %51 : vector<128x1xf32>
    %53 = arith.mulf %44, %44 : vector<128x128xf32>
    %cst_31 = arith.constant dense<0.000000e+00> : vector<128xf32>
    %54 = vector.multi_reduction <add>, %53, %cst_31 [1] : vector<128x128xf32> to vector<128xf32>
    %55 = vector.shape_cast %54 : vector<128xf32> to vector<128x1xf32>
    %cst_32 = arith.constant 1.280000e+02 : f32
    %56 = vector.broadcast %cst_32 : f32 to vector<128x1xf32>
    %57 = arith.divf %55, %56 : vector<128x1xf32>
    %58 = arith.mulf %52, %52 : vector<128x1xf32>
    %59 = arith.subf %57, %58 : vector<128x1xf32>
    %60 = vector.broadcast %52 : vector<128x1xf32> to vector<128x128xf32>
    %61 = arith.subf %44, %60 : vector<128x128xf32>
    %cst_33 = arith.constant 9.99999974E-6 : f32
    %62 = vector.broadcast %cst_33 : f32 to vector<128x1xf32>
    %63 = arith.addf %59, %62 : vector<128x1xf32>
    %64 = math.rsqrt %63 : vector<128x1xf32>
    %65 = vector.broadcast %64 : vector<128x1xf32> to vector<128x128xf32>
    %66 = arith.mulf %61, %65 : vector<128x128xf32>
    %67 = vector.broadcast %46 : vector<1x128xf32> to vector<128x128xf32>
    %68 = arith.mulf %66, %67 : vector<128x128xf32>
    %69 = vector.broadcast %48 : vector<1x128xf32> to vector<128x128xf32>
    %70 = arith.addf %68, %69 : vector<128x128xf32>
    %71 = arith.truncf %70 : vector<128x128xf32> to vector<128x128xbf16>
    %c0_34 = arith.constant 0 : index
    %c0_35 = arith.constant 0 : index
    %c0_36 = arith.constant 0 : index
    %72 = vector.load %arg9[%c0_34, %c0_35, %c0_36] : memref<1x128x256xbf16, #tpu.memory_space<vmem>>, vector<1x128x256xbf16>
    %73 = vector.shape_cast %72 : vector<1x128x256xbf16> to vector<128x256xbf16>
    %cst_37 = arith.constant dense<0.000000e+00> : vector<128x256xf32>
    %74 = tpu.matmul %71, %73, %cst_37 {dimension_numbers = #tpu.dot_dimension_numbers<[1], [0], [0], [1], [0, 0, 1, 1], [], []>} : vector<128x128xbf16>, vector<128x256xbf16>, vector<128x256xf32> -> vector<128x256xf32>
    %c0_38 = arith.constant 0 : index
    %c0_39 = arith.constant 0 : index
    %c0_40 = arith.constant 0 : index
    %75 = vector.load %arg10[%c0_38, %c0_39, %c0_40] : memref<1x1x256xf32, #tpu.memory_space<vmem>>, vector<1x1x256xf32>
    %76 = vector.shape_cast %75 : vector<1x1x256xf32> to vector<1x256xf32>
    %77 = vector.broadcast %76 : vector<1x256xf32> to vector<128x256xf32>
    %78 = arith.addf %74, %77 : vector<128x256xf32>
    %cst_41 = arith.constant 0.000000e+00 : f32
    %79 = vector.broadcast %cst_41 : f32 to vector<128x256xf32>
    %80 = arith.maximumf %78, %79 : vector<128x256xf32>
    %81 = arith.truncf %80 : vector<128x256xf32> to vector<128x256xbf16>
    %c0_42 = arith.constant 0 : index
    %c0_43 = arith.constant 0 : index
    %c0_44 = arith.constant 0 : index
    %82 = vector.load %arg11[%c0_42, %c0_43, %c0_44] : memref<1x256x128xbf16, #tpu.memory_space<vmem>>, vector<1x256x128xbf16>
    %83 = vector.shape_cast %82 : vector<1x256x128xbf16> to vector<256x128xbf16>
    %cst_45 = arith.constant dense<0.000000e+00> : vector<128x128xf32>
    %84 = tpu.matmul %81, %83, %cst_45 {dimension_numbers = #tpu.dot_dimension_numbers<[1], [0], [0], [1], [0, 0, 1, 1], [], []>} : vector<128x256xbf16>, vector<256x128xbf16>, vector<128x128xf32> -> vector<128x128xf32>
    %c0_46 = arith.constant 0 : index
    %c0_47 = arith.constant 0 : index
    %c0_48 = arith.constant 0 : index
    %85 = vector.load %arg12[%c0_46, %c0_47, %c0_48] : memref<1x1x128xf32, #tpu.memory_space<vmem>>, vector<1x1x128xf32>
    %86 = vector.shape_cast %85 : vector<1x1x128xf32> to vector<1x128xf32>
    %87 = vector.broadcast %86 : vector<1x128xf32> to vector<128x128xf32>
    %88 = arith.addf %84, %87 : vector<128x128xf32>
    %89 = arith.addf %70, %88 : vector<128x128xf32>
    %c0_49 = arith.constant 0 : index
    %c0_50 = arith.constant 0 : index
    %c0_51 = arith.constant 0 : index
    %90 = vector.load %arg13[%c0_49, %c0_50, %c0_51] : memref<1x1x128xf32, #tpu.memory_space<vmem>>, vector<1x1x128xf32>
    %91 = vector.shape_cast %90 : vector<1x1x128xf32> to vector<1x128xf32>
    %c0_52 = arith.constant 0 : index
    %c0_53 = arith.constant 0 : index
    %c0_54 = arith.constant 0 : index
    %92 = vector.load %arg14[%c0_52, %c0_53, %c0_54] : memref<1x1x128xf32, #tpu.memory_space<vmem>>, vector<1x1x128xf32>
    %93 = vector.shape_cast %92 : vector<1x1x128xf32> to vector<1x128xf32>
    %cst_55 = arith.constant dense<0.000000e+00> : vector<128xf32>
    %94 = vector.multi_reduction <add>, %89, %cst_55 [1] : vector<128x128xf32> to vector<128xf32>
    %95 = vector.shape_cast %94 : vector<128xf32> to vector<128x1xf32>
    %cst_56 = arith.constant 1.280000e+02 : f32
    %96 = vector.broadcast %cst_56 : f32 to vector<128x1xf32>
    %97 = arith.divf %95, %96 : vector<128x1xf32>
    %98 = arith.mulf %89, %89 : vector<128x128xf32>
    %cst_57 = arith.constant dense<0.000000e+00> : vector<128xf32>
    %99 = vector.multi_reduction <add>, %98, %cst_57 [1] : vector<128x128xf32> to vector<128xf32>
    %100 = vector.shape_cast %99 : vector<128xf32> to vector<128x1xf32>
    %cst_58 = arith.constant 1.280000e+02 : f32
    %101 = vector.broadcast %cst_58 : f32 to vector<128x1xf32>
    %102 = arith.divf %100, %101 : vector<128x1xf32>
    %103 = arith.mulf %97, %97 : vector<128x1xf32>
    %104 = arith.subf %102, %103 : vector<128x1xf32>
    %105 = vector.broadcast %97 : vector<128x1xf32> to vector<128x128xf32>
    %106 = arith.subf %89, %105 : vector<128x128xf32>
    %cst_59 = arith.constant 9.99999974E-6 : f32
    %107 = vector.broadcast %cst_59 : f32 to vector<128x1xf32>
    %108 = arith.addf %104, %107 : vector<128x1xf32>
    %109 = math.rsqrt %108 : vector<128x1xf32>
    %110 = vector.broadcast %109 : vector<128x1xf32> to vector<128x128xf32>
    %111 = arith.mulf %106, %110 : vector<128x128xf32>
    %112 = vector.broadcast %91 : vector<1x128xf32> to vector<128x128xf32>
    %113 = arith.mulf %111, %112 : vector<128x128xf32>
    %114 = vector.broadcast %93 : vector<1x128xf32> to vector<128x128xf32>
    %115 = arith.addf %113, %114 : vector<128x128xf32>
    %c0_60 = arith.constant 0 : index
    %c0_61 = arith.constant 0 : index
    %116 = vector.load %arg15[%c0_60, %c0_61] : memref<128x128xf32, #tpu.memory_space<vmem>>, vector<128x128xf32>
    tpu.vector_store %arg15[%c0_60, %c0_61], %115 {strides = array<i32>} : memref<128x128xf32, #tpu.memory_space<vmem>>, vector<128x128xf32>,
    return
  }
  func.func @transform_0(%arg0: i32) -> (i32, i32) {
    %c0_i32 = arith.constant 0 : i32
    %c0_i32_0 = arith.constant 0 : i32
    %c0_i32_1 = arith.constant 0 : i32
    return %c0_i32, %c0_i32_0 : i32, i32
  }
  func.func @transform_1(%arg0: i32) -> (i32, i32) {
    %c0_i32 = arith.constant 0 : i32
    %c0_i32_0 = arith.constant 0 : i32
    %c0_i32_1 = arith.constant 0 : i32
    return %c0_i32, %c0_i32_0 : i32, i32
  }
  func.func @transform_2(%arg0: i32) -> (i32, i32, i32) {
    %c0_i32 = arith.constant 0 : i32
    %c0_i32_0 = arith.constant 0 : i32
    %c0_i32_1 = arith.constant 0 : i32
    return %arg0, %c0_i32, %c0_i32_0 : i32, i32, i32
  }
  func.func @transform_3(%arg0: i32) -> (i32, i32, i32) {
    %c0_i32 = arith.constant 0 : i32
    %c0_i32_0 = arith.constant 0 : i32
    %c0_i32_1 = arith.constant 0 : i32
    return %arg0, %c0_i32, %c0_i32_0 : i32, i32, i32
  }
  func.func @transform_4(%arg0: i32) -> (i32, i32, i32) {
    %c0_i32 = arith.constant 0 : i32
    %c0_i32_0 = arith.constant 0 : i32
    %c0_i32_1 = arith.constant 0 : i32
    return %arg0, %c0_i32, %c0_i32_0 : i32, i32, i32
  }
  func.func @transform_5(%arg0: i32) -> (i32, i32, i32) {
    %c0_i32 = arith.constant 0 : i32
    %c0_i32_0 = arith.constant 0 : i32
    %c0_i32_1 = arith.constant 0 : i32
    return %arg0, %c0_i32, %c0_i32_0 : i32, i32, i32
  }
  func.func @transform_6(%arg0: i32) -> (i32, i32, i32) {
    %c0_i32 = arith.constant 0 : i32
    %c0_i32_0 = arith.constant 0 : i32
    %c0_i32_1 = arith.constant 0 : i32
    return %arg0, %c0_i32, %c0_i32_0 : i32, i32, i32
  }
  func.func @transform_7(%arg0: i32) -> (i32, i32, i32) {
    %c0_i32 = arith.constant 0 : i32
    %c0_i32_0 = arith.constant 0 : i32
    %c0_i32_1 = arith.constant 0 : i32
    return %arg0, %c0_i32, %c0_i32_0 : i32, i32, i32
  }
  func.func @transform_8(%arg0: i32) -> (i32, i32, i32) {
    %c0_i32 = arith.constant 0 : i32
    %c0_i32_0 = arith.constant 0 : i32
    %c0_i32_1 = arith.constant 0 : i32
    return %arg0, %c0_i32, %c0_i32_0 : i32, i32, i32
  }
  func.func @transform_9(%arg0: i32) -> (i32, i32, i32) {
    %c0_i32 = arith.constant 0 : i32
    %c0_i32_0 = arith.constant 0 : i32
    %c0_i32_1 = arith.constant 0 : i32
    return %arg0, %c0_i32, %c0_i32_0 : i32, i32, i32
  }
  func.func @transform_10(%arg0: i32) -> (i32, i32, i32) {
    %c0_i32 = arith.constant 0 : i32
    %c0_i32_0 = arith.constant 0 : i32
    %c0_i32_1 = arith.constant 0 : i32
    return %arg0, %c0_i32, %c0_i32_0 : i32, i32, i32
  }
  func.func @transform_11(%arg0: i32) -> (i32, i32, i32) {
    %c0_i32 = arith.constant 0 : i32
    %c0_i32_0 = arith.constant 0 : i32
    %c0_i32_1 = arith.constant 0 : i32
    return %arg0, %c0_i32, %c0_i32_0 : i32, i32, i32
  }
  func.func @transform_12(%arg0: i32) -> (i32, i32, i32) {
    %c0_i32 = arith.constant 0 : i32
    %c0_i32_0 = arith.constant 0 : i32
    %c0_i32_1 = arith.constant 0 : i32
    return %arg0, %c0_i32, %c0_i32_0 : i32, i32, i32
  }
  func.func @transform_13(%arg0: i32) -> (i32, i32, i32) {
    %c0_i32 = arith.constant 0 : i32
    %c0_i32_0 = arith.constant 0 : i32
    %c0_i32_1 = arith.constant 0 : i32
    return %arg0, %c0_i32, %c0_i32_0 : i32, i32, i32
  }
  func.func @transform_14(%arg0: i32) -> (i32, i32) {
    %c0_i32 = arith.constant 0 : i32
    %c0_i32_0 = arith.constant 0 : i32
    %c0_i32_1 = arith.constant 0 : i32
    return %c0_i32, %c0_i32_0 : i32, i32
  }
}

</mosaic_0001>

<llo_original>
// kernel: tpu_custom_call.1
$region0: #{tpu_custom_call.1}
  #allocation0 [shape = 'u32[]', space=smem, size = 0x4, offset = 0x4, fixed_abs, tag = 'smem constant byte address 0x4 - core index']
  #allocation1 [shape = 'u32[72,128]{1,0:T(1,128)}', space=vmem, size = 0x9000, scoped, tag = 'internal scratch']
  %s0 = inlined_call_operand.hbm [shape: f32[128,128], index: 0, kind: input, shape index: {}]
  %s1 = inlined_call_operand.hbm [shape: bf16[128,128], index: 1, kind: input, shape index: {}]
  %s2 = inlined_call_operand.hbm [shape: bf16[3,128,384], index: 2, kind: input, shape index: {}]
  %s3 = inlined_call_operand.hbm [shape: f32[3,1,384], index: 3, kind: input, shape index: {}]
  %s4 = inlined_call_operand.hbm [shape: bf16[3,128,128], index: 4, kind: input, shape index: {}]
  %s5 = inlined_call_operand.hbm [shape: f32[3,1,128], index: 5, kind: input, shape index: {}]
  %s6 = inlined_call_operand.hbm [shape: f32[3,1,128], index: 6, kind: input, shape index: {}]
  %s7 = inlined_call_operand.hbm [shape: f32[3,1,128], index: 7, kind: input, shape index: {}]
  %s8 = inlined_call_operand.hbm [shape: bf16[3,128,256], index: 8, kind: input, shape index: {}]
  %s9 = inlined_call_operand.vmem [shape: f32[3,1,256], index: 9, kind: input, shape index: {}]
  %s10 = inlined_call_operand.hbm [shape: bf16[3,256,128], index: 10, kind: input, shape index: {}]
  %s11 = inlined_call_operand.vmem [shape: f32[3,1,128], index: 11, kind: input, shape index: {}]
  %s12 = inlined_call_operand.hbm [shape: f32[3,1,128], index: 12, kind: input, shape index: {}]
  %s13 = inlined_call_operand.vmem [shape: f32[3,1,128], index: 13, kind: input, shape index: {}]
  %s14 = inlined_call_operand.hbm [shape: f32[128,128], index: 14, kind: output, shape index: {}]
  %s15 = sld [smem:[#allocation0]]
  $region137: #{tpu_custom_call.1} parent=0
    _
  %s17 = ssub.s32 1, %s15
  %s18 = scalar_select 0, %s17, %s15
  $region1: #{tpu_custom_call.1} parent=0
    #allocation2 [shape = 'u8[65536]{0}', space=vmem, size = 0x10000, scoped, tag = 'input window, operand 0, single buffered']
    #allocation3 [shape = 's32[2]{0}', space=sflag, size = 0x8, scoped, tag = 'scoped memory for tpu_custom_call.1']
    #allocation4 [shape = 's32[2]{0}', space=sflag, size = 0x8, scoped, tag = 'scoped memory for tpu_custom_call.1']
    #allocation5 [shape = 'u8[32768]{0}', space=vmem, size = 0x8000, scoped, tag = 'input window, operand 1, single buffered']
    #allocation6 [shape = 's32[1]{0}', space=sflag, size = 0x4, scoped, tag = 'scoped memory for tpu_custom_call.1']
    #allocation7 [shape = 'u8[196608]{0}', space=vmem, size = 0x30000, scoped, tag = 'input window, operand 2']
    #allocation8 [shape = 'u8[3072]{0}', space=vmem, size = 0xc00, scoped, tag = 'input window, operand 3']
    #allocation9 [shape = 'u8[65536]{0}', space=vmem, size = 0x10000, scoped, tag = 'input window, operand 4']
    #allocation10 [shape = 'u8[1024]{0}', space=vmem, size = 0x400, scoped, tag = 'input window, operand 5']
    #allocation11 [shape = 'u8[1024]{0}', space=vmem, size = 0x400, scoped, tag = 'input window, operand 6']
    #allocation12 [shape = 'u8[1024]{0}', space=vmem, size = 0x400, scoped, tag = 'input window, operand 7']
    #allocation13 [shape = 'u8[131072]{0}', space=vmem, size = 0x20000, scoped, tag = 'input window, operand 8']
    #allocation14 [shape = 'u8[131072]{0}', space=vmem, size = 0x20000, scoped, tag = 'input window, operand 10']
    #allocation15 [shape = 'u8[1024]{0}', space=vmem, size = 0x400, scoped, tag = 'input window, operand 12']
    #allocation16 [shape = 'u8[65536]{0}', space=vmem, size = 0x10000, scoped, tag = 'output window, operand 0, single buffered']
    %19 = vsyncpa [#allocation3], 0
    %20 = vsyncpa [#allocation6], 0
    %21 = vsyncpa [#allocation4], 0
    loop: start=0, step=1, limit=5
    $region2: #{tpu_custom_call.1} parent=1 // loop_pre_header
      _
    $region3: #{tpu_custom_call.1} parent=1 // loop_header
      %s23 = sphi 0, %s27
      %p24 = scmp.ge.s32.totalorder %s23, 5
      %s31 = sphi 0, %s31
      %s33 = sphi 0, %s31
      %s34 = sphi 0, %s33
      %s48 = sphi 0, %s34
      %s52 = sphi 0, %s52
      %s54 = sphi 0, %s52
      %s55 = sphi 0, %s54
      %s69 = sphi 0, %s55
      %s75 = sphi 0, %s77
      %s78 = sphi 0, %s75
      %s79 = sphi 0, %s78
      %s95 = sphi 0, %s79
      %s101 = sphi 0, %s103
      %s104 = sphi 0, %s101
      %s105 = sphi 0, %s104
      %s121 = sphi 0, %s105
      %s127 = sphi 0, %s129
      %s130 = sphi 0, %s127
      %s131 = sphi 0, %s130
      %s147 = sphi 0, %s131
      %s153 = sphi 0, %s155
      %s156 = sphi 0, %s153
      %s157 = sphi 0, %s156
      %s173 = sphi 0, %s157
      %s179 = sphi 0, %s181
      %s182 = sphi 0, %s179
      %s183 = sphi 0, %s182
      %s199 = sphi 0, %s183
      %s205 = sphi 0, %s207
      %s208 = sphi 0, %s205
      %s209 = sphi 0, %s208
      %s225 = sphi 0, %s209
      %s231 = sphi 0, %s233
      %s234 = sphi 0, %s231
      %s235 = sphi 0, %s234
      %s251 = sphi 0, %s235
      %s257 = sphi 0, %s259
      %s260 = sphi 0, %s257
      %s261 = sphi 0, %s260
      %s277 = sphi 0, %s261
      %s283 = sphi 0, %s285
      %s286 = sphi 0, %s283
      %s287 = sphi 0, %s286
      %s303 = sphi 0, %s287
      %s309 = sphi 0, %s311
      %s312 = sphi 0, %s309
      %s313 = sphi 0, %s312
      %s329 = sphi 0, %s313
      %s335 = sphi 0, %s337
      %s338 = sphi 0, %s335
      %s339 = sphi 0, %s338
      %s355 = sphi 0, %s339
      %s361 = sphi 0, %s363
      %s364 = sphi 0, %s361
      %s365 = sphi 0, %s364
      %s381 = sphi 0, %s365
      %s385 = sphi 0, %s385
      %s387 = sphi 0, %s385
      %s388 = sphi 0, %s387
      %s402 = sphi 0, %s388
    $region4: #{tpu_custom_call.1} parent=1 // loop_header_branch
      %26 = sbr.rel (%p24) target = $region8
    $region5: #{tpu_custom_call.1} parent=1 // loop_body
      %s28 = ssub.s32 %s23, 1
      %s29 = ssub.s32 %s23, 2
      %s30 = sadd.s32 %s23, 1
      %s32 = sadd.s32 %s31, 1
      %p35 = scmp.eq.s32.totalorder %s23, 2
      %p36 = scmp.ne.s32.totalorder %s31, %s33
      %p37 = scmp.eq.s32.totalorder %s23, 0
      %p38 = por %p36, %p37
      %p39 = scmp.ne.s32.totalorder %s31, %s33
      %p40 = scmp.eq.s32.totalorder %s28, 2
      %p41 = por %p39, %p40
      %p42 = scmp.ne.s32.totalorder %s33, %s34
      %p43 = scmp.eq.s32.totalorder %s28, 0
      %p44 = por %p42, %p43
      %p45 = scmp.ne.s32.totalorder %s33, %s34
      %p46 = scmp.eq.s32.totalorder %s29, 2
      %p47 = por %p45, %p46
      %p49 = scmp.ne.s32.totalorder %s34, %s48
      %p50 = scmp.eq.s32.totalorder %s29, 0
      %p51 = por %p49, %p50
      %s53 = sadd.s32 %s52, 1
      %p56 = scmp.eq.s32.totalorder %s23, 2
      %p57 = scmp.ne.s32.totalorder %s52, %s54
      %p58 = scmp.eq.s32.totalorder %s23, 0
      %p59 = por %p57, %p58
      %p60 = scmp.ne.s32.totalorder %s52, %s54
      %p61 = scmp.eq.s32.totalorder %s28, 2
      %p62 = por %p60, %p61
      %p63 = scmp.ne.s32.totalorder %s54, %s55
      %p64 = scmp.eq.s32.totalorder %s28, 0
      %p65 = por %p63, %p64
      %p66 = scmp.ne.s32.totalorder %s54, %s55
      %p67 = scmp.eq.s32.totalorder %s29, 2
      %p68 = por %p66, %p67
      %p70 = scmp.ne.s32.totalorder %s55, %s69
      %p71 = scmp.eq.s32.totalorder %s29, 0
      %p72 = por %p70, %p71
      %s73 = ssub.s32 %s23, %s30
      %p74 = scmp.eq.s32.totalorder %s73, 0
      %s76 = sadd.s32 %s75, 1
      %s77 = scalar_select %p74, %s75, %s76
      %p80 = pneg %p74
      %p81 = scmp.eq.s32.totalorder %s23, 2
      %p82 = por %p80, %p81
      %p83 = scmp.ne.s32.totalorder %s75, %s78
      %p84 = scmp.eq.s32.totalorder %s23, 0
      %p85 = por %p83, %p84
      %p86 = scmp.ne.s32.totalorder %s75, %s78
      %p87 = scmp.eq.s32.totalorder %s28, 2
      %p88 = por %p86, %p87
      %p89 = scmp.ne.s32.totalorder %s78, %s79
      %p90 = scmp.eq.s32.totalorder %s28, 0
      %p91 = por %p89, %p90
      %p92 = scmp.ne.s32.totalorder %s78, %s79
      %p93 = scmp.eq.s32.totalorder %s29, 2
      %p94 = por %p92, %p93
      %p96 = scmp.ne.s32.totalorder %s79, %s95
      %p97 = scmp.eq.s32.totalorder %s29, 0
      %p98 = por %p96, %p97
      %s99 = ssub.s32 %s23, %s30
      %p100 = scmp.eq.s32.totalorder %s99, 0
      %s102 = sadd.s32 %s101, 1
      %s103 = scalar_select %p100, %s101, %s102
      %p106 = pneg %p100
      %p107 = scmp.eq.s32.totalorder %s23, 2
      %p108 = por %p106, %p107
      %p109 = scmp.ne.s32.totalorder %s101, %s104
      %p110 = scmp.eq.s32.totalorder %s23, 0
      %p111 = por %p109, %p110
      %p112 = scmp.ne.s32.totalorder %s101, %s104
      %p113 = scmp.eq.s32.totalorder %s28, 2
      %p114 = por %p112, %p113
      %p115 = scmp.ne.s32.totalorder %s104, %s105
      %p116 = scmp.eq.s32.totalorder %s28, 0
      %p117 = por %p115, %p116
      %p118 = scmp.ne.s32.totalorder %s104, %s105
      %p119 = scmp.eq.s32.totalorder %s29, 2
      %p120 = por %p118, %p119
      %p122 = scmp.ne.s32.totalorder %s105, %s121
      %p123 = scmp.eq.s32.totalorder %s29, 0
      %p124 = por %p122, %p123
      %s125 = ssub.s32 %s23, %s30
      %p126 = scmp.eq.s32.totalorder %s125, 0
      %s128 = sadd.s32 %s127, 1
      %s129 = scalar_select %p126, %s127, %s128
      %p132 = pneg %p126
      %p133 = scmp.eq.s32.totalorder %s23, 2
      %p134 = por %p132, %p133
      %p135 = scmp.ne.s32.totalorder %s127, %s130
      %p136 = scmp.eq.s32.totalorder %s23, 0
      %p137 = por %p135, %p136
      %p138 = scmp.ne.s32.totalorder %s127, %s130
      %p139 = scmp.eq.s32.totalorder %s28, 2
      %p140 = por %p138, %p139
      %p141 = scmp.ne.s32.totalorder %s130, %s131
      %p142 = scmp.eq.s32.totalorder %s28, 0
      %p143 = por %p141, %p142
      %p144 = scmp.ne.s32.totalorder %s130, %s131
      %p145 = scmp.eq.s32.totalorder %s29, 2
      %p146 = por %p144, %p145
      %p148 = scmp.ne.s32.totalorder %s131, %s147
      %p149 = scmp.eq.s32.totalorder %s29, 0
      %p150 = por %p148, %p149
      %s151 = ssub.s32 %s23, %s30
      %p152 = scmp.eq.s32.totalorder %s151, 0
      %s154 = sadd.s32 %s153, 1
      %s155 = scalar_select %p152, %s153, %s154
      %p158 = pneg %p152
      %p159 = scmp.eq.s32.totalorder %s23, 2
      %p160 = por %p158, %p159
      %p161 = scmp.ne.s32.totalorder %s153, %s156
      %p162 = scmp.eq.s32.totalorder %s23, 0
      %p163 = por %p161, %p162
      %p164 = scmp.ne.s32.totalorder %s153, %s156
      %p165 = scmp.eq.s32.totalorder %s28, 2
      %p166 = por %p164, %p165
      %p167 = scmp.ne.s32.totalorder %s156, %s157
      %p168 = scmp.eq.s32.totalorder %s28, 0
      %p169 = por %p167, %p168
      %p170 = scmp.ne.s32.totalorder %s156, %s157
      %p171 = scmp.eq.s32.totalorder %s29, 2
      %p172 = por %p170, %p171
      %p174 = scmp.ne.s32.totalorder %s157, %s173
      %p175 = scmp.eq.s32.totalorder %s29, 0
      %p176 = por %p174, %p175
      %s177 = ssub.s32 %s23, %s30
      %p178 = scmp.eq.s32.totalorder %s177, 0
      %s180 = sadd.s32 %s179, 1
      %s181 = scalar_select %p178, %s179, %s180
      %p184 = pneg %p178
      %p185 = scmp.eq.s32.totalorder %s23, 2
      %p186 = por %p184, %p185
      %p187 = scmp.ne.s32.totalorder %s179, %s182
      %p188 = scmp.eq.s32.totalorder %s23, 0
      %p189 = por %p187, %p188
      %p190 = scmp.ne.s32.totalorder %s179, %s182
      %p191 = scmp.eq.s32.totalorder %s28, 2
      %p192 = por %p190, %p191
      %p193 = scmp.ne.s32.totalorder %s182, %s183
      %p194 = scmp.eq.s32.totalorder %s28, 0
      %p195 = por %p193, %p194
      %p196 = scmp.ne.s32.totalorder %s182, %s183
      %p197 = scmp.eq.s32.totalorder %s29, 2
      %p198 = por %p196, %p197
      %p200 = scmp.ne.s32.totalorder %s183, %s199
      %p201 = scmp.eq.s32.totalorder %s29, 0
      %p202 = por %p200, %p201
      %s203 = ssub.s32 %s23, %s30
      %p204 = scmp.eq.s32.totalorder %s203, 0
      %s206 = sadd.s32 %s205, 1
      %s207 = scalar_select %p204, %s205, %s206
      %p210 = pneg %p204
      %p211 = scmp.eq.s32.totalorder %s23, 2
      %p212 = por %p210, %p211
      %p213 = scmp.ne.s32.totalorder %s205, %s208
      %p214 = scmp.eq.s32.totalorder %s23, 0
      %p215 = por %p213, %p214
      %p216 = scmp.ne.s32.totalorder %s205, %s208
      %p217 = scmp.eq.s32.totalorder %s28, 2
      %p218 = por %p216, %p217
      %p219 = scmp.ne.s32.totalorder %s208, %s209
      %p220 = scmp.eq.s32.totalorder %s28, 0
      %p221 = por %p219, %p220
      %p222 = scmp.ne.s32.totalorder %s208, %s209
      %p223 = scmp.eq.s32.totalorder %s29, 2
      %p224 = por %p222, %p223
      %p226 = scmp.ne.s32.totalorder %s209, %s225
      %p227 = scmp.eq.s32.totalorder %s29, 0
      %p228 = por %p226, %p227
      %s229 = ssub.s32 %s23, %s30
      %p230 = scmp.eq.s32.totalorder %s229, 0
      %s232 = sadd.s32 %s231, 1
      %s233 = scalar_select %p230, %s231, %s232
      %p236 = pneg %p230
      %p237 = scmp.eq.s32.totalorder %s23, 2
      %p238 = por %p236, %p237
      %p239 = scmp.ne.s32.totalorder %s231, %s234
      %p240 = scmp.eq.s32.totalorder %s23, 0
      %p241 = por %p239, %p240
      %p242 = scmp.ne.s32.totalorder %s231, %s234
      %p243 = scmp.eq.s32.totalorder %s28, 2
      %p244 = por %p242, %p243
      %p245 = scmp.ne.s32.totalorder %s234, %s235
      %p246 = scmp.eq.s32.totalorder %s28, 0
      %p247 = por %p245, %p246
      %p248 = scmp.ne.s32.totalorder %s234, %s235
      %p249 = scmp.eq.s32.totalorder %s29, 2
      %p250 = por %p248, %p249
      %p252 = scmp.ne.s32.totalorder %s235, %s251
      %p253 = scmp.eq.s32.totalorder %s29, 0
      %p254 = por %p252, %p253
      %s255 = ssub.s32 %s23, %s30
      %p256 = scmp.eq.s32.totalorder %s255, 0
      %s258 = sadd.s32 %s257, 1
      %s259 = scalar_select %p256, %s257, %s258
      %p262 = pneg %p256
      %p263 = scmp.eq.s32.totalorder %s23, 2
      %p264 = por %p262, %p263
      %p265 = scmp.ne.s32.totalorder %s257, %s260
      %p266 = scmp.eq.s32.totalorder %s23, 0
      %p267 = por %p265, %p266
      %p268 = scmp.ne.s32.totalorder %s257, %s260
      %p269 = scmp.eq.s32.totalorder %s28, 2
      %p270 = por %p268, %p269
      %p271 = scmp.ne.s32.totalorder %s260, %s261
      %p272 = scmp.eq.s32.totalorder %s28, 0
      %p273 = por %p271, %p272
      %p274 = scmp.ne.s32.totalorder %s260, %s261
      %p275 = scmp.eq.s32.totalorder %s29, 2
      %p276 = por %p274, %p275
      %p278 = scmp.ne.s32.totalorder %s261, %s277
      %p279 = scmp.eq.s32.totalorder %s29, 0
      %p280 = por %p278, %p279
      %s281 = ssub.s32 %s23, %s30
      %p282 = scmp.eq.s32.totalorder %s281, 0
      %s284 = sadd.s32 %s283, 1
      %s285 = scalar_select %p282, %s283, %s284
      %p288 = pneg %p282
      %p289 = scmp.eq.s32.totalorder %s23, 2
      %p290 = por %p288, %p289
      %p291 = scmp.ne.s32.totalorder %s283, %s286
      %p292 = scmp.eq.s32.totalorder %s23, 0
      %p293 = por %p291, %p292
      %p294 = scmp.ne.s32.totalorder %s283, %s286
      %p295 = scmp.eq.s32.totalorder %s28, 2
      %p296 = por %p294, %p295
      %p297 = scmp.ne.s32.totalorder %s286, %s287
      %p298 = scmp.eq.s32.totalorder %s28, 0
      %p299 = por %p297, %p298
      %p300 = scmp.ne.s32.totalorder %s286, %s287
      %p301 = scmp.eq.s32.totalorder %s29, 2
      %p302 = por %p300, %p301
      %p304 = scmp.ne.s32.totalorder %s287, %s303
      %p305 = scmp.eq.s32.totalorder %s29, 0
      %p306 = por %p304, %p305
      %s307 = ssub.s32 %s23, %s30
      %p308 = scmp.eq.s32.totalorder %s307, 0
      %s310 = sadd.s32 %s309, 1
      %s311 = scalar_select %p308, %s309, %s310
      %p314 = pneg %p308
      %p315 = scmp.eq.s32.totalorder %s23, 2
      %p316 = por %p314, %p315
      %p317 = scmp.ne.s32.totalorder %s309, %s312
      %p318 = scmp.eq.s32.totalorder %s23, 0
      %p319 = por %p317, %p318
      %p320 = scmp.ne.s32.totalorder %s309, %s312
      %p321 = scmp.eq.s32.totalorder %s28, 2
      %p322 = por %p320, %p321
      %p323 = scmp.ne.s32.totalorder %s312, %s313
      %p324 = scmp.eq.s32.totalorder %s28, 0
      %p325 = por %p323, %p324
      %p326 = scmp.ne.s32.totalorder %s312, %s313
      %p327 = scmp.eq.s32.totalorder %s29, 2
      %p328 = por %p326, %p327
      %p330 = scmp.ne.s32.totalorder %s313, %s329
      %p331 = scmp.eq.s32.totalorder %s29, 0
      %p332 = por %p330, %p331
      %s333 = ssub.s32 %s23, %s30
      %p334 = scmp.eq.s32.totalorder %s333, 0
      %s336 = sadd.s32 %s335, 1
      %s337 = scalar_select %p334, %s335, %s336
      %p340 = pneg %p334
      %p341 = scmp.eq.s32.totalorder %s23, 2
      %p342 = por %p340, %p341
      %p343 = scmp.ne.s32.totalorder %s335, %s338
      %p344 = scmp.eq.s32.totalorder %s23, 0
      %p345 = por %p343, %p344
      %p346 = scmp.ne.s32.totalorder %s335, %s338
      %p347 = scmp.eq.s32.totalorder %s28, 2
      %p348 = por %p346, %p347
      %p349 = scmp.ne.s32.totalorder %s338, %s339
      %p350 = scmp.eq.s32.totalorder %s28, 0
      %p351 = por %p349, %p350
      %p352 = scmp.ne.s32.totalorder %s338, %s339
      %p353 = scmp.eq.s32.totalorder %s29, 2
      %p354 = por %p352, %p353
      %p356 = scmp.ne.s32.totalorder %s339, %s355
      %p357 = scmp.eq.s32.totalorder %s29, 0
      %p358 = por %p356, %p357
      %s359 = ssub.s32 %s23, %s30
      %p360 = scmp.eq.s32.totalorder %s359, 0
      %s362 = sadd.s32 %s361, 1
      %s363 = scalar_select %p360, %s361, %s362
      %p366 = pneg %p360
      %p367 = scmp.eq.s32.totalorder %s23, 2
      %p368 = por %p366, %p367
      %p369 = scmp.ne.s32.totalorder %s361, %s364
      %p370 = scmp.eq.s32.totalorder %s23, 0
      %p371 = por %p369, %p370
      %p372 = scmp.ne.s32.totalorder %s361, %s364
      %p373 = scmp.eq.s32.totalorder %s28, 2
      %p374 = por %p372, %p373
      %p375 = scmp.ne.s32.totalorder %s364, %s365
      %p376 = scmp.eq.s32.totalorder %s28, 0
      %p377 = por %p375, %p376
      %p378 = scmp.ne.s32.totalorder %s364, %s365
      %p379 = scmp.eq.s32.totalorder %s29, 2
      %p380 = por %p378, %p379
      %p382 = scmp.ne.s32.totalorder %s365, %s381
      %p383 = scmp.eq.s32.totalorder %s29, 0
      %p384 = por %p382, %p383
      %s386 = sadd.s32 %s385, 1
      %p389 = scmp.eq.s32.totalorder %s23, 2
      %p390 = scmp.ne.s32.totalorder %s385, %s387
      %p391 = scmp.eq.s32.totalorder %s23, 0
      %p392 = por %p390, %p391
      %p393 = scmp.ne.s32.totalorder %s385, %s387
      %p394 = scmp.eq.s32.totalorder %s28, 2
      %p395 = por %p393, %p394
      %p396 = scmp.ne.s32.totalorder %s387, %s388
      %p397 = scmp.eq.s32.totalorder %s28, 0
      %p398 = por %p396, %p397
      %p399 = scmp.ne.s32.totalorder %s387, %s388
      %p400 = scmp.eq.s32.totalorder %s29, 2
      %p401 = por %p399, %p400
      %p403 = scmp.ne.s32.totalorder %s388, %s402
      %p404 = scmp.eq.s32.totalorder %s29, 0
      %p405 = por %p403, %p404
      %p406 = scmp.le.s32.totalorder 1, %s23
      %p407 = scmp.lt.s32.totalorder %s23, 4
      %p408 = pnand %p406, %p407
      %p409 = pneg %p408
      // Predicated region
      $region9: #{tpu_custom_call.1} parent=5 // pred_check
        _
      $region10: #{tpu_custom_call.1} parent=5 // pred_check_branch
        %411 = sbr.rel (%p408) target = $region12
      $region11: #{tpu_custom_call.1} parent=5 // pred_region
        %s412 = ssub.s32 %s23, 1
        // Predicated region
        $region13: #{tpu_custom_call.1} parent=11 // pred_check
          %p413 = pneg %p44
        $region14: #{tpu_custom_call.1} parent=11 // pred_check_branch
          %415 = sbr.rel (%p413) target = $region16
        $region15: #{tpu_custom_call.1} parent=11 // pred_region
          %417 = vsyncadd [#allocation3], 0
          %s418 = sshll.u32 %s0, 4
          %s419 = int_to_ptr.hbm [resolvable:$true] %s418
          %s420 = sshll.u32 [#allocation2], 4
          %s421 = int_to_ptr.vmem [resolvable:$true] %s420
          %426 = dma.hbm_to_vmem [thread:$0]  %s419, 2048, %s421, [#allocation3], 128, 128, 8
        $region16: #{tpu_custom_call.1} parent=11 // pred_fallthru
          _
        // Predicated region
        $region17: #{tpu_custom_call.1} parent=11 // pred_check
          %p427 = pneg %p65
        $region18: #{tpu_custom_call.1} parent=11 // pred_check_branch
          %429 = sbr.rel (%p427) target = $region20
        $region19: #{tpu_custom_call.1} parent=11 // pred_region
          %431 = vsyncadd [#allocation6], 0
          %s432 = sshll.u32 %s1, 4
          %s433 = int_to_ptr.hbm [resolvable:$true] %s432
          %s434 = sshll.u32 [#allocation5], 4
          %s435 = int_to_ptr.vmem [resolvable:$true] %s434
          %440 = dma.hbm_to_vmem [thread:$0]  %s433, 1024, %s435, [#allocation6], 64, 64, 4
        $region20: #{tpu_custom_call.1} parent=11 // pred_fallthru
          _
      $region12: #{tpu_custom_call.1} parent=5 // pred_fallthru
        _
      %p441 = scmp.lt.s32.totalorder %s23, 3
      // Predicated region
      $region21: #{tpu_custom_call.1} parent=5 // pred_check
        %p442 = pneg %p441
      $region22: #{tpu_custom_call.1} parent=5 // pred_check_branch
        %444 = sbr.rel (%p442) target = $region24
      $region23: #{tpu_custom_call.1} parent=5 // pred_region
        // Predicated region
        $region25: #{tpu_custom_call.1} parent=23 // pred_check
          %p445 = pneg %p85
        $region26: #{tpu_custom_call.1} parent=23 // pred_check_branch
          %447 = sbr.rel (%p445) target = $region28
        $region27: #{tpu_custom_call.1} parent=23 // pred_region
          %s448 = sand.u32 %s23, 1
          %s449 = scalar_lea.sflag [#allocation3], %s448
          %s450 = sand.u32 %s75, 1
          %s451 = smul.addr %s450, 192
          %s452 = scalar_lea.vmem [#allocation7], %s451
          %454 = vsyncadd %s449, 0
          %s455 = smul.addr %s23, 48
          %s456 = smul.addr %s455, 4
          %s457 = scalar_lea.hbm %s2, %s456
          %s458 = sshll.u32 %s457, 4
          %s459 = int_to_ptr.hbm [resolvable:$true] %s458
          %s460 = sshll.u32 %s452, 4
          %s461 = int_to_ptr.vmem [resolvable:$true] %s460
          %466 = dma.hbm_to_vmem [thread:$0]  %s459, 3072, %s461, %s449, 192, 192, 12
        $region28: #{tpu_custom_call.1} parent=23 // pred_fallthru
          _
        // Predicated region
        $region29: #{tpu_custom_call.1} parent=23 // pred_check
          %p467 = pneg %p111
        $region30: #{tpu_custom_call.1} parent=23 // pred_check_branch
          %469 = sbr.rel (%p467) target = $region32
        $region31: #{tpu_custom_call.1} parent=23 // pred_region
          %s470 = sand.u32 %s23, 1
          %s471 = scalar_lea.sflag [#allocation3], %s470
          %s472 = sand.u32 %s101, 1
          %s473 = smul.addr %s472, 3
          %s474 = scalar_lea.vmem [#allocation8], %s473
          %476 = vsyncadd %s471, 0
          %s477 = smul.addr %s23, 3
          %s478 = scalar_lea.hbm %s3, %s477
          %s480 = sshll.u32 %s478, 4
          %s481 = int_to_ptr.hbm [resolvable:$true] %s480
          %s482 = sshll.u32 %s474, 4
          %s483 = int_to_ptr.vmem [resolvable:$true] %s482
          %485 = dma.hbm_to_vmem [thread:$0]  %s481, 48, %s483, %s471
        $region32: #{tpu_custom_call.1} parent=23 // pred_fallthru
          _
        // Predicated region
        $region33: #{tpu_custom_call.1} parent=23 // pred_check
          %p486 = pneg %p137
        $region34: #{tpu_custom_call.1} parent=23 // pred_check_branch
          %488 = sbr.rel (%p486) target = $region36
        $region35: #{tpu_custom_call.1} parent=23 // pred_region
          %s489 = sand.u32 %s23, 1
          %s490 = scalar_lea.sflag [#allocation3], %s489
          %s491 = sand.u32 %s127, 1
          %s492 = smul.addr %s491, 64
          %s493 = scalar_lea.vmem [#allocation9], %s492
          %495 = vsyncadd %s490, 0
          %s496 = smul.addr %s23, 16
          %s497 = smul.addr %s496, 4
          %s498 = scalar_lea.hbm %s4, %s497
          %s499 = sshll.u32 %s498, 4
          %s500 = int_to_ptr.hbm [resolvable:$true] %s499
          %s501 = sshll.u32 %s493, 4
          %s502 = int_to_ptr.vmem [resolvable:$true] %s501
          %507 = dma.hbm_to_vmem [thread:$0]  %s500, 1024, %s502, %s490, 64, 64, 4
        $region36: #{tpu_custom_call.1} parent=23 // pred_fallthru
          _
        // Predicated region
        $region37: #{tpu_custom_call.1} parent=23 // pred_check
          %p508 = pneg %p163
        $region38: #{tpu_custom_call.1} parent=23 // pred_check_branch
          %510 = sbr.rel (%p508) target = $region40
        $region39: #{tpu_custom_call.1} parent=23 // pred_region
          %s511 = sand.u32 %s23, 1
          %s512 = scalar_lea.sflag [#allocation3], %s511
          %s513 = sand.u32 %s153, 1
          %s514 = scalar_lea.vmem [#allocation10], %s513
          %516 = vsyncadd %s512, 0
          %s517 = scalar_lea.hbm %s5, %s23
          %s519 = sshll.u32 %s517, 4
          %s520 = int_to_ptr.hbm [resolvable:$true] %s519
          %s521 = sshll.u32 %s514, 4
          %s522 = int_to_ptr.vmem [resolvable:$true] %s521
          %524 = dma.hbm_to_vmem [thread:$0]  %s520, 16, %s522, %s512
        $region40: #{tpu_custom_call.1} parent=23 // pred_fallthru
          _
        // Predicated region
        $region41: #{tpu_custom_call.1} parent=23 // pred_check
          %p525 = pneg %p189
        $region42: #{tpu_custom_call.1} parent=23 // pred_check_branch
          %527 = sbr.rel (%p525) target = $region44
        $region43: #{tpu_custom_call.1} parent=23 // pred_region
          %s528 = sand.u32 %s23, 1
          %s529 = scalar_lea.sflag [#allocation3], %s528
          %s530 = sand.u32 %s179, 1
          %s531 = scalar_lea.vmem [#allocation11], %s530
          %533 = vsyncadd %s529, 0
          %s534 = scalar_lea.hbm %s6, %s23
          %s536 = sshll.u32 %s534, 4
          %s537 = int_to_ptr.hbm [resolvable:$true] %s536
          %s538 = sshll.u32 %s531, 4
          %s539 = int_to_ptr.vmem [resolvable:$true] %s538
          %541 = dma.hbm_to_vmem [thread:$0]  %s537, 16, %s539, %s529
        $region44: #{tpu_custom_call.1} parent=23 // pred_fallthru
          _
        // Predicated region
        $region45: #{tpu_custom_call.1} parent=23 // pred_check
          %p542 = pneg %p215
        $region46: #{tpu_custom_call.1} parent=23 // pred_check_branch
          %544 = sbr.rel (%p542) target = $region48
        $region47: #{tpu_custom_call.1} parent=23 // pred_region
          %s545 = sand.u32 %s23, 1
          %s546 = scalar_lea.sflag [#allocation3], %s545
          %s547 = sand.u32 %s205, 1
          %s548 = scalar_lea.vmem [#allocation12], %s547
          %550 = vsyncadd %s546, 0
          %s551 = scalar_lea.hbm %s7, %s23
          %s553 = sshll.u32 %s551, 4
          %s554 = int_to_ptr.hbm [resolvable:$true] %s553
          %s555 = sshll.u32 %s548, 4
          %s556 = int_to_ptr.vmem [resolvable:$true] %s555
          %558 = dma.hbm_to_vmem [thread:$0]  %s554, 16, %s556, %s546
        $region48: #{tpu_custom_call.1} parent=23 // pred_fallthru
          _
        // Predicated region
        $region49: #{tpu_custom_call.1} parent=23 // pred_check
          %p559 = pneg %p241
        $region50: #{tpu_custom_call.1} parent=23 // pred_check_branch
          %561 = sbr.rel (%p559) target = $region52
        $region51: #{tpu_custom_call.1} parent=23 // pred_region
          %s562 = sand.u32 %s23, 1
          %s563 = scalar_lea.sflag [#allocation3], %s562
          %s564 = sand.u32 %s231, 1
          %s565 = smul.addr %s564, 128
          %s566 = scalar_lea.vmem [#allocation13], %s565
          %568 = vsyncadd %s563, 0
          %s569 = smul.addr %s23, 32
          %s570 = smul.addr %s569, 4
          %s571 = scalar_lea.hbm %s8, %s570
          %s572 = sshll.u32 %s571, 4
          %s573 = int_to_ptr.hbm [resolvable:$true] %s572
          %s574 = sshll.u32 %s566, 4
          %s575 = int_to_ptr.vmem [resolvable:$true] %s574
          %580 = dma.hbm_to_vmem [thread:$0]  %s573, 2048, %s575, %s563, 128, 128, 8
        $region52: #{tpu_custom_call.1} parent=23 // pred_fallthru
          _
        // Predicated region
        $region53: #{tpu_custom_call.1} parent=23 // pred_check
          %p581 = pneg %p267
        $region54: #{tpu_custom_call.1} parent=23 // pred_check_branch
          %583 = sbr.rel (%p581) target = $region56
        $region55: #{tpu_custom_call.1} parent=23 // pred_region
          %p584 = scmp.lt.s32.totalorder %s23, 2
          %s585 = scalar_select %p584, %s23, 2
          %s586 = smul.addr %s585, 2
          %s587 = scalar_lea.vmem %s9, %s586
        $region56: #{tpu_custom_call.1} parent=23 // pred_fallthru
          _
        // Predicated region
        $region57: #{tpu_custom_call.1} parent=23 // pred_check
          %p588 = pneg %p293
        $region58: #{tpu_custom_call.1} parent=23 // pred_check_branch
          %590 = sbr.rel (%p588) target = $region60
        $region59: #{tpu_custom_call.1} parent=23 // pred_region
          %s591 = sand.u32 %s23, 1
          %s592 = scalar_lea.sflag [#allocation3], %s591
          %s593 = sand.u32 %s283, 1
          %s594 = smul.addr %s593, 128
          %s595 = scalar_lea.vmem [#allocation14], %s594
          %597 = vsyncadd %s592, 0
          %s598 = smul.addr %s23, 32
          %s599 = smul.addr %s598, 4
          %s600 = scalar_lea.hbm %s10, %s599
          %s601 = sshll.u32 %s600, 4
          %s602 = int_to_ptr.hbm [resolvable:$true] %s601
          %s603 = sshll.u32 %s595, 4
          %s604 = int_to_ptr.vmem [resolvable:$true] %s603
          %609 = dma.hbm_to_vmem [thread:$0]  %s602, 2048, %s604, %s592, 64, 64, 4
        $region60: #{tpu_custom_call.1} parent=23 // pred_fallthru
          _
        // Predicated region
        $region61: #{tpu_custom_call.1} parent=23 // pred_check
          %p610 = pneg %p319
        $region62: #{tpu_custom_call.1} parent=23 // pred_check_branch
          %612 = sbr.rel (%p610) target = $region64
        $region63: #{tpu_custom_call.1} parent=23 // pred_region
          %p613 = scmp.lt.s32.totalorder %s23, 2
          %s614 = scalar_select %p613, %s23, 2
          %s615 = scalar_lea.vmem %s11, %s614
        $region64: #{tpu_custom_call.1} parent=23 // pred_fallthru
          _
        // Predicated region
        $region65: #{tpu_custom_call.1} parent=23 // pred_check
          %p616 = pneg %p345
        $region66: #{tpu_custom_call.1} parent=23 // pred_check_branch
          %618 = sbr.rel (%p616) target = $region68
        $region67: #{tpu_custom_call.1} parent=23 // pred_region
          %s619 = sand.u32 %s23, 1
          %s620 = scalar_lea.sflag [#allocation3], %s619
          %s621 = sand.u32 %s335, 1
          %s622 = scalar_lea.vmem [#allocation15], %s621
          %624 = vsyncadd %s620, 0
          %s625 = scalar_lea.hbm %s12, %s23
          %s627 = sshll.u32 %s625, 4
          %s628 = int_to_ptr.hbm [resolvable:$true] %s627
          %s629 = sshll.u32 %s622, 4
          %s630 = int_to_ptr.vmem [resolvable:$true] %s629
          %632 = dma.hbm_to_vmem [thread:$0]  %s628, 16, %s630, %s620
        $region68: #{tpu_custom_call.1} parent=23 // pred_fallthru
          _
        // Predicated region
        $region69: #{tpu_custom_call.1} parent=23 // pred_check
          %p633 = pneg %p371
        $region70: #{tpu_custom_call.1} parent=23 // pred_check_branch
          %635 = sbr.rel (%p633) target = $region72
        $region71: #{tpu_custom_call.1} parent=23 // pred_region
          %p636 = scmp.lt.s32.totalorder %s23, 2
          %s637 = scalar_select %p636, %s23, 2
          %s638 = scalar_lea.vmem %s13, %s637
        $region72: #{tpu_custom_call.1} parent=23 // pred_fallthru
          _
      $region24: #{tpu_custom_call.1} parent=5 // pred_fallthru
        _
      %p639 = scmp.le.s32.totalorder 1, %s23
      %p640 = scmp.lt.s32.totalorder %s23, 4
      %p641 = pnand %p639, %p640
      %p642 = pneg %p641
      // Predicated region
      $region73: #{tpu_custom_call.1} parent=5 // pred_check
        _
      $region74: #{tpu_custom_call.1} parent=5 // pred_check_branch
        %644 = sbr.rel (%p641) target = $region76
      $region75: #{tpu_custom_call.1} parent=5 // pred_region
        %s645 = ssub.s32 %s23, 1
        // Predicated region
        $region77: #{tpu_custom_call.1} parent=75 // pred_check
          %p646 = pneg %p44
        $region78: #{tpu_custom_call.1} parent=75 // pred_check_branch
          %648 = sbr.rel (%p646) target = $region80
        $region79: #{tpu_custom_call.1} parent=75 // pred_region
          %650 = dma.done [#allocation3], 2048
        $region80: #{tpu_custom_call.1} parent=75 // pred_fallthru
          _
        // Predicated region
        $region81: #{tpu_custom_call.1} parent=75 // pred_check
          %p651 = pneg %p65
        $region82: #{tpu_custom_call.1} parent=75 // pred_check_branch
          %653 = sbr.rel (%p651) target = $region84
        $region83: #{tpu_custom_call.1} parent=75 // pred_region
          %655 = dma.done [#allocation6], 1024
        $region84: #{tpu_custom_call.1} parent=75 // pred_fallthru
          _
        %s656 = sand.u32 %s28, 1
        %s657 = scalar_lea.sflag [#allocation3], %s656
        %s658 = sand.u32 %s78, 1
        %s659 = smul.addr %s658, 192
        %s660 = scalar_lea.vmem [#allocation7], %s659
        // Predicated region
        $region85: #{tpu_custom_call.1} parent=75 // pred_check
          %p661 = pneg %p91
        $region86: #{tpu_custom_call.1} parent=75 // pred_check_branch
          %663 = sbr.rel (%p661) target = $region88
        $region87: #{tpu_custom_call.1} parent=75 // pred_region
          %665 = dma.done %s657, 3072
        $region88: #{tpu_custom_call.1} parent=75 // pred_fallthru
          _
        %s666 = sand.u32 %s28, 1
        %s667 = scalar_lea.sflag [#allocation3], %s666
        %s668 = sand.u32 %s104, 1
        %s669 = smul.addr %s668, 3
        %s670 = scalar_lea.vmem [#allocation8], %s669
        // Predicated region
        $region89: #{tpu_custom_call.1} parent=75 // pred_check
          %p671 = pneg %p117
        $region90: #{tpu_custom_call.1} parent=75 // pred_check_branch
          %673 = sbr.rel (%p671) target = $region92
        $region91: #{tpu_custom_call.1} parent=75 // pred_region
          %675 = dma.done %s667, 48
        $region92: #{tpu_custom_call.1} parent=75 // pred_fallthru
          _
        %s676 = sand.u32 %s28, 1
        %s677 = scalar_lea.sflag [#allocation3], %s676
        %s678 = sand.u32 %s130, 1
        %s679 = smul.addr %s678, 64
        %s680 = scalar_lea.vmem [#allocation9], %s679
        // Predicated region
        $region93: #{tpu_custom_call.1} parent=75 // pred_check
          %p681 = pneg %p143
        $region94: #{tpu_custom_call.1} parent=75 // pred_check_branch
          %683 = sbr.rel (%p681) target = $region96
        $region95: #{tpu_custom_call.1} parent=75 // pred_region
          %685 = dma.done %s677, 1024
        $region96: #{tpu_custom_call.1} parent=75 // pred_fallthru
          _
        %s686 = sand.u32 %s28, 1
        %s687 = scalar_lea.sflag [#allocation3], %s686
        %s688 = sand.u32 %s156, 1
        %s689 = scalar_lea.vmem [#allocation10], %s688
        // Predicated region
        $region97: #{tpu_custom_call.1} parent=75 // pred_check
          %p690 = pneg %p169
        $region98: #{tpu_custom_call.1} parent=75 // pred_check_branch
          %692 = sbr.rel (%p690) target = $region100
        $region99: #{tpu_custom_call.1} parent=75 // pred_region
          %694 = dma.done %s687, 16
        $region100: #{tpu_custom_call.1} parent=75 // pred_fallthru
          _
        %s695 = sand.u32 %s28, 1
        %s696 = scalar_lea.sflag [#allocation3], %s695
        %s697 = sand.u32 %s182, 1
        %s698 = scalar_lea.vmem [#allocation11], %s697
        // Predicated region
        $region101: #{tpu_custom_call.1} parent=75 // pred_check
          %p699 = pneg %p195
        $region102: #{tpu_custom_call.1} parent=75 // pred_check_branch
          %701 = sbr.rel (%p699) target = $region104
        $region103: #{tpu_custom_call.1} parent=75 // pred_region
          %703 = dma.done %s696, 16
        $region104: #{tpu_custom_call.1} parent=75 // pred_fallthru
          _
        %s704 = sand.u32 %s28, 1
        %s705 = scalar_lea.sflag [#allocation3], %s704
        %s706 = sand.u32 %s208, 1
        %s707 = scalar_lea.vmem [#allocation12], %s706
        // Predicated region
        $region105: #{tpu_custom_call.1} parent=75 // pred_check
          %p708 = pneg %p221
        $region106: #{tpu_custom_call.1} parent=75 // pred_check_branch
          %710 = sbr.rel (%p708) target = $region108
        $region107: #{tpu_custom_call.1} parent=75 // pred_region
          %712 = dma.done %s705, 16
        $region108: #{tpu_custom_call.1} parent=75 // pred_fallthru
          _
        %s713 = sand.u32 %s28, 1
        %s714 = scalar_lea.sflag [#allocation3], %s713
        %s715 = sand.u32 %s234, 1
        %s716 = smul.addr %s715, 128
        %s717 = scalar_lea.vmem [#allocation13], %s716
        // Predicated region
        $region109: #{tpu_custom_call.1} parent=75 // pred_check
          %p718 = pneg %p247
        $region110: #{tpu_custom_call.1} parent=75 // pred_check_branch
          %720 = sbr.rel (%p718) target = $region112
        $region111: #{tpu_custom_call.1} parent=75 // pred_region
          %722 = dma.done %s714, 2048
        $region112: #{tpu_custom_call.1} parent=75 // pred_fallthru
          _
        %s723 = sand.u32 %s28, 1
        %s724 = scalar_lea.sflag [#allocation3], %s723
        %s725 = sand.u32 %s286, 1
        %s726 = smul.addr %s725, 128
        %s727 = scalar_lea.vmem [#allocation14], %s726
        // Predicated region
        $region113: #{tpu_custom_call.1} parent=75 // pred_check
          %p728 = pneg %p299
        $region114: #{tpu_custom_call.1} parent=75 // pred_check_branch
          %730 = sbr.rel (%p728) target = $region116
        $region115: #{tpu_custom_call.1} parent=75 // pred_region
          %732 = dma.done %s724, 2048
        $region116: #{tpu_custom_call.1} parent=75 // pred_fallthru
          _
        %s733 = sand.u32 %s28, 1
        %s734 = scalar_lea.sflag [#allocation3], %s733
        %s735 = sand.u32 %s338, 1
        %s736 = scalar_lea.vmem [#allocation15], %s735
        // Predicated region
        $region117: #{tpu_custom_call.1} parent=75 // pred_check
          %p737 = pneg %p351
        $region118: #{tpu_custom_call.1} parent=75 // pred_check_branch
          %739 = sbr.rel (%p737) target = $region120
        $region119: #{tpu_custom_call.1} parent=75 // pred_region
          %741 = dma.done %s734, 16
        $region120: #{tpu_custom_call.1} parent=75 // pred_fallthru
          _
        %p742 = pneg %p44
        %p743 = pneg %p41
        %p744 = pneg %p65
        %p745 = pneg %p62
        %s746 = sand.u32 %s28, 1
        %s747 = scalar_lea.sflag [#allocation3], %s746
        %s748 = sand.u32 %s78, 1
        %s749 = smul.addr %s748, 192
        %s750 = scalar_lea.vmem [#allocation7], %s749
        %p751 = pneg %p91
        %p752 = pneg %p88
        %s753 = sand.u32 %s28, 1
        %s754 = scalar_lea.sflag [#allocation3], %s753
        %s755 = sand.u32 %s104, 1
        %s756 = smul.addr %s755, 3
        %s757 = scalar_lea.vmem [#allocation8], %s756
        %p758 = pneg %p117
        %p759 = pneg %p114
        %s760 = sand.u32 %s28, 1
        %s761 = scalar_lea.sflag [#allocation3], %s760
        %s762 = sand.u32 %s130, 1
        %s763 = smul.addr %s762, 64
        %s764 = scalar_lea.vmem [#allocation9], %s763
        %p765 = pneg %p143
        %p766 = pneg %p140
        %s767 = sand.u32 %s28, 1
        %s768 = scalar_lea.sflag [#allocation3], %s767
        %s769 = sand.u32 %s156, 1
        %s770 = scalar_lea.vmem [#allocation10], %s769
        %p771 = pneg %p169
        %p772 = pneg %p166
        %s773 = sand.u32 %s28, 1
        %s774 = scalar_lea.sflag [#allocation3], %s773
        %s775 = sand.u32 %s182, 1
        %s776 = scalar_lea.vmem [#allocation11], %s775
        %p777 = pneg %p195
        %p778 = pneg %p192
        %s779 = sand.u32 %s28, 1
        %s780 = scalar_lea.sflag [#allocation3], %s779
        %s781 = sand.u32 %s208, 1
        %s782 = scalar_lea.vmem [#allocation12], %s781
        %p783 = pneg %p221
        %p784 = pneg %p218
        %s785 = sand.u32 %s28, 1
        %s786 = scalar_lea.sflag [#allocation3], %s785
        %s787 = sand.u32 %s234, 1
        %s788 = smul.addr %s787, 128
        %s789 = scalar_lea.vmem [#allocation13], %s788
        %p790 = pneg %p247
        %p791 = pneg %p244
        %p792 = scmp.lt.s32.totalorder %s28, 2
        %s793 = scalar_select %p792, %s28, 2
        %s794 = smul.addr %s793, 2
        %s795 = scalar_lea.vmem %s9, %s794
        %p796 = pneg %p273
        %p797 = pneg %p270
        %s798 = sand.u32 %s28, 1
        %s799 = scalar_lea.sflag [#allocation3], %s798
        %s800 = sand.u32 %s286, 1
        %s801 = smul.addr %s800, 128
        %s802 = scalar_lea.vmem [#allocation14], %s801
        %p803 = pneg %p299
        %p804 = pneg %p296
        %p805 = scmp.lt.s32.totalorder %s28, 2
        %s806 = scalar_select %p805, %s28, 2
        %s807 = scalar_lea.vmem %s11, %s806
        %p808 = pneg %p325
        %p809 = pneg %p322
        %s810 = sand.u32 %s28, 1
        %s811 = scalar_lea.sflag [#allocation3], %s810
        %s812 = sand.u32 %s338, 1
        %s813 = scalar_lea.vmem [#allocation15], %s812
        %p814 = pneg %p351
        %p815 = pneg %p348
        %p816 = scmp.lt.s32.totalorder %s28, 2
        %s817 = scalar_select %p816, %s28, 2
        %s818 = scalar_lea.vmem %s13, %s817
        %p819 = pneg %p377
        %p820 = pneg %p374
        %p821 = pneg %p398
        %p822 = pneg %p395
        %p823 = scmp.lt.s32.totalorder %s28, 2
        %s824 = scalar_select %p823, %s28, 2
        %s825 = smul.addr %s824, 2
        %s826 = scalar_lea.vmem %s9, %s825
        %p827 = scmp.lt.s32.totalorder %s28, 2
        %s828 = scalar_select %p827, %s28, 2
        %s829 = scalar_lea.vmem %s11, %s828
        %p830 = scmp.lt.s32.totalorder %s28, 2
        %s831 = scalar_select %p830, %s28, 2
        %s832 = scalar_lea.vmem %s13, %s831
        %p833 = scmp.eq.s32.totalorder %s28, 0
        // Predicated region
        $region121: #{tpu_custom_call.1} parent=75 // pred_check
          %p834 = pneg %p833
        $region122: #{tpu_custom_call.1} parent=75 // pred_check_branch
          %836 = sbr.rel (%p834) target = $region124
        $region123: #{tpu_custom_call.1} parent=75 // pred_region
          %v837 = vld [vmem:[#allocation2] sm:$0xff]
          %v838 = vld [vmem:[#allocation2 + $0x8] sm:$0xff]
          %v839 = vld [vmem:[#allocation2 + $0x10] sm:$0xff]
          %v840 = vld [vmem:[#allocation2 + $0x18] sm:$0xff]
          %v841 = vld [vmem:[#allocation2 + $0x20] sm:$0xff]
          %v842 = vld [vmem:[#allocation2 + $0x28] sm:$0xff]
          %v843 = vld [vmem:[#allocation2 + $0x30] sm:$0xff]
          %v844 = vld [vmem:[#allocation2 + $0x38] sm:$0xff]
          %v845 = vld [vmem:[#allocation2 + $0x40] sm:$0xff]
          %v846 = vld [vmem:[#allocation2 + $0x48] sm:$0xff]
          %v847 = vld [vmem:[#allocation2 + $0x50] sm:$0xff]
          %v848 = vld [vmem:[#allocation2 + $0x58] sm:$0xff]
          %v849 = vld [vmem:[#allocation2 + $0x60] sm:$0xff]
          %v850 = vld [vmem:[#allocation2 + $0x68] sm:$0xff]
          %v851 = vld [vmem:[#allocation2 + $0x70] sm:$0xff]
          %v852 = vld [vmem:[#allocation2 + $0x78] sm:$0xff]
          %853 = vst [vmem:[#allocation16] sm:$0xff] %v837
          %854 = vst [vmem:[#allocation16 + $0x8] sm:$0xff] %v838
          %855 = vst [vmem:[#allocation16 + $0x10] sm:$0xff] %v839
          %856 = vst [vmem:[#allocation16 + $0x18] sm:$0xff] %v840
          %857 = vst [vmem:[#allocation16 + $0x20] sm:$0xff] %v841
          %858 = vst [vmem:[#allocation16 + $0x28] sm:$0xff] %v842
          %859 = vst [vmem:[#allocation16 + $0x30] sm:$0xff] %v843
          %860 = vst [vmem:[#allocation16 + $0x38] sm:$0xff] %v844
          %861 = vst [vmem:[#allocation16 + $0x40] sm:$0xff] %v845
          %862 = vst [vmem:[#allocation16 + $0x48] sm:$0xff] %v846
          %863 = vst [vmem:[#allocation16 + $0x50] sm:$0xff] %v847
          %864 = vst [vmem:[#allocation16 + $0x58] sm:$0xff] %v848
          %865 = vst [vmem:[#allocation16 + $0x60] sm:$0xff] %v849
          %866 = vst [vmem:[#allocation16 + $0x68] sm:$0xff] %v850
          %867 = vst [vmem:[#allocation16 + $0x70] sm:$0xff] %v851
          %868 = vst [vmem:[#allocation16 + $0x78] sm:$0xff] %v852
        $region124: #{tpu_custom_call.1} parent=75 // pred_fallthru
          _
        %v869 = vld [vmem:[#allocation16] sm:$0xff]
        %v870 = vld [vmem:[#allocation16 + $0x8] sm:$0xff]
        %v871 = vld [vmem:[#allocation16 + $0x10] sm:$0xff]
        %v872 = vld [vmem:[#allocation16 + $0x18] sm:$0xff]
        %v873 = vld [vmem:[#allocation16 + $0x20] sm:$0xff]
        %v874 = vld [vmem:[#allocation16 + $0x28] sm:$0xff]
        %v875 = vld [vmem:[#allocation16 + $0x30] sm:$0xff]
        %v876 = vld [vmem:[#allocation16 + $0x38] sm:$0xff]
        %v877 = vld [vmem:[#allocation16 + $0x40] sm:$0xff]
        %v878 = vld [vmem:[#allocation16 + $0x48] sm:$0xff]
        %v879 = vld [vmem:[#allocation16 + $0x50] sm:$0xff]
        %v880 = vld [vmem:[#allocation16 + $0x58] sm:$0xff]
        %v881 = vld [vmem:[#allocation16 + $0x60] sm:$0xff]
        %v882 = vld [vmem:[#allocation16 + $0x68] sm:$0xff]
        %v883 = vld [vmem:[#allocation16 + $0x70] sm:$0xff]
        %v884 = vld [vmem:[#allocation16 + $0x78] sm:$0xff]
        %v885 = vpack.c.bf16 %v870, %v869
        %v886 = vpack.c.bf16 %v872, %v871
        %v887 = vpack.c.bf16 %v874, %v873
        %v888 = vpack.c.bf16 %v876, %v875
        %v889 = vpack.c.bf16 %v878, %v877
        %v890 = vpack.c.bf16 %v880, %v879
        %v891 = vpack.c.bf16 %v882, %v881
        %v892 = vpack.c.bf16 %v884, %v883
        %v893 = vld [vmem:[%s660] sm:$0xff]
        %v894 = vld [vmem:[%s660 + $0x8] sm:$0xf]
        %v895 = vld [vmem:[%s660 + $0xc] sm:$0xff]
        %v896 = vld [vmem:[%s660 + $0x14] sm:$0xf]
        %v897 = vld [vmem:[%s660 + $0x18] sm:$0xff]
        %v898 = vld [vmem:[%s660 + $0x20] sm:$0xf]
        %v899 = vld [vmem:[%s660 + $0x24] sm:$0xff]
        %v900 = vld [vmem:[%s660 + $0x2c] sm:$0xf]
        %v901 = vld [vmem:[%s660 + $0x30] sm:$0xff]
        %v902 = vld [vmem:[%s660 + $0x38] sm:$0xf]
        %v903 = vld [vmem:[%s660 + $0x3c] sm:$0xff]
        %v904 = vld [vmem:[%s660 + $0x44] sm:$0xf]
        %v905 = vld [vmem:[%s660 + $0x48] sm:$0xff]
        %v906 = vld [vmem:[%s660 + $0x50] sm:$0xf]
        %v907 = vld [vmem:[%s660 + $0x54] sm:$0xff]
        %v908 = vld [vmem:[%s660 + $0x5c] sm:$0xf]
        %v909 = vld [vmem:[%s660 + $0x60] sm:$0xff]
        %v910 = vld [vmem:[%s660 + $0x68] sm:$0xf]
        %v911 = vld [vmem:[%s660 + $0x6c] sm:$0xff]
        %v912 = vld [vmem:[%s660 + $0x74] sm:$0xf]
        %v913 = vld [vmem:[%s660 + $0x78] sm:$0xff]
        %v914 = vld [vmem:[%s660 + $0x80] sm:$0xf]
        %v915 = vld [vmem:[%s660 + $0x84] sm:$0xff]
        %v916 = vld [vmem:[%s660 + $0x8c] sm:$0xf]
        %v917 = vld [vmem:[%s660 + $0x90] sm:$0xff]
        %v918 = vld [vmem:[%s660 + $0x98] sm:$0xf]
        %v919 = vld [vmem:[%s660 + $0x9c] sm:$0xff]
        %v920 = vld [vmem:[%s660 + $0xa4] sm:$0xf]
        %v921 = vld [vmem:[%s660 + $0xa8] sm:$0xff]
        %v922 = vld [vmem:[%s660 + $0xb0] sm:$0xf]
        %v923 = vld [vmem:[%s660 + $0xb4] sm:$0xff]
        %v924 = vld [vmem:[%s660 + $0xbc] sm:$0xf]
        %v925 = vld [vmem:[%s670] sm:$0x7]
        %v927 = vperm.slane %v925, 0
        %v928 = vperm.slane %v925, 1
        %v929 = vperm.slane %v925, 2
        %v965 = vunpack.c.l.b16 %v893
        %v966 = vunpack.c.h.b16 %v893
        %v967 = vunpack.c.l.b16 %v894
        %v968 = vunpack.c.l.b16 %v895
        %v969 = vunpack.c.h.b16 %v895
        %v970 = vunpack.c.l.b16 %v896
        %v971 = vunpack.c.l.b16 %v897
        %v972 = vunpack.c.h.b16 %v897
        %v973 = vunpack.c.l.b16 %v898
        %v974 = vunpack.c.l.b16 %v899
        %v975 = vunpack.c.h.b16 %v899
        %v976 = vunpack.c.l.b16 %v900
        %v977 = vunpack.c.l.b16 %v901
        %v978 = vunpack.c.h.b16 %v901
        %v979 = vunpack.c.l.b16 %v902
        %v980 = vunpack.c.l.b16 %v903
        %v981 = vunpack.c.h.b16 %v903
        %v982 = vunpack.c.l.b16 %v904
        %v983 = vunpack.c.l.b16 %v905
        %v984 = vunpack.c.h.b16 %v905
        %v985 = vunpack.c.l.b16 %v906
        %v986 = vunpack.c.l.b16 %v907
        %v987 = vunpack.c.h.b16 %v907
        %v988 = vunpack.c.l.b16 %v908
        %v989 = vunpack.c.l.b16 %v909
        %v990 = vunpack.c.h.b16 %v909
        %v991 = vunpack.c.l.b16 %v910
        %v992 = vunpack.c.l.b16 %v911
        %v993 = vunpack.c.h.b16 %v911
        %v994 = vunpack.c.l.b16 %v912
        %v995 = vunpack.c.l.b16 %v913
        %v996 = vunpack.c.h.b16 %v913
        %v997 = vunpack.c.l.b16 %v914
        %v998 = vunpack.c.l.b16 %v915
        %v999 = vunpack.c.h.b16 %v915
        %v1000 = vunpack.c.l.b16 %v916
        %v1001 = vunpack.c.l.b16 %v917
        %v1002 = vunpack.c.h.b16 %v917
        %v1003 = vunpack.c.l.b16 %v918
        %v1004 = vunpack.c.l.b16 %v919
        %v1005 = vunpack.c.h.b16 %v919
        %v1006 = vunpack.c.l.b16 %v920
        %v1007 = vunpack.c.l.b16 %v921
        %v1008 = vunpack.c.h.b16 %v921
        %v1009 = vunpack.c.l.b16 %v922
        %v1010 = vunpack.c.l.b16 %v923
        %v1011 = vunpack.c.h.b16 %v923
        %v1012 = vunpack.c.l.b16 %v924
        %v1013 = vpack.c.b16 %v968, %v965
        %v1014 = vpack.c.b16 %v969, %v966
        %v1015 = vpack.c.b16 %v970, %v967
        %v1016 = vpack.c.b16 %v974, %v971
        %v1017 = vpack.c.b16 %v975, %v972
        %v1018 = vpack.c.b16 %v976, %v973
        %v1019 = vpack.c.b16 %v980, %v977
        %v1020 = vpack.c.b16 %v981, %v978
        %v1021 = vpack.c.b16 %v982, %v979
        %v1022 = vpack.c.b16 %v986, %v983
        %v1023 = vpack.c.b16 %v987, %v984
        %v1024 = vpack.c.b16 %v988, %v985
        %v1025 = vpack.c.b16 %v992, %v989
        %v1026 = vpack.c.b16 %v993, %v990
        %v1027 = vpack.c.b16 %v994, %v991
        %v1028 = vpack.c.b16 %v998, %v995
        %v1029 = vpack.c.b16 %v999, %v996
        %v1030 = vpack.c.b16 %v1000, %v997
        %v1031 = vpack.c.b16 %v1004, %v1001
        %v1032 = vpack.c.b16 %v1005, %v1002
        %v1033 = vpack.c.b16 %v1006, %v1003
        %v1034 = vpack.c.b16 %v1010, %v1007
        %v1035 = vpack.c.b16 %v1011, %v1008
        %v1036 = vpack.c.b16 %v1012, %v1009
        %1061 = vmatpush.bf16.msra.mxu0 %v1034
        %1062 = vmatpush.bf16.msra.mxu0 %v1031
        %1063 = vmatpush.bf16.msra.mxu0 %v1028
        %1064 = vmatpush.bf16.msra.mxu0 %v1025
        %1065 = vmatpush.bf16.msra.mxu0 %v1022
        %1066 = vmatpush.bf16.msra.mxu0 %v1019
        %1067 = vmatpush.bf16.msra.mxu0 %v1016
        %1068 = vmatpush.bf16.msra.mxu0 %v1013
        %1069 = vmatmul.bf16.gmra.mxu0 %v885
        %v1070 = vpop.f32.mrf.mxu0
        %v1071 = vadd.f32 %v927, %v1070
        %v1072 = vpop.f32.mrf.mxu0
        %v1073 = vadd.f32 %v927, %v1072
        %1074 = vmatmul.bf16.gmra.mxu0 %v886
        %v1075 = vpop.f32.mrf.mxu0
        %v1076 = vadd.f32 %v927, %v1075
        %v1077 = vpop.f32.mrf.mxu0
        %v1078 = vadd.f32 %v927, %v1077
        %1079 = vmatmul.bf16.gmra.mxu0 %v887
        %v1080 = vpop.f32.mrf.mxu0
        %v1081 = vadd.f32 %v927, %v1080
        %v1082 = vpop.f32.mrf.mxu0
        %v1083 = vadd.f32 %v927, %v1082
        %1084 = vmatmul.bf16.gmra.mxu0 %v888
        %v1085 = vpop.f32.mrf.mxu0
        %v1086 = vadd.f32 %v927, %v1085
        %v1087 = vpop.f32.mrf.mxu0
        %v1088 = vadd.f32 %v927, %v1087
        %1089 = vmatmul.bf16.gmra.mxu0 %v889
        %v1090 = vpop.f32.mrf.mxu0
        %v1091 = vadd.f32 %v927, %v1090
        %v1092 = vpop.f32.mrf.mxu0
        %v1093 = vadd.f32 %v927, %v1092
        %1094 = vmatmul.bf16.gmra.mxu0 %v890
        %v1095 = vpop.f32.mrf.mxu0
        %v1096 = vadd.f32 %v927, %v1095
        %v1097 = vpop.f32.mrf.mxu0
        %v1098 = vadd.f32 %v927, %v1097
        %1099 = vmatmul.bf16.gmra.mxu0 %v891
        %v1100 = vpop.f32.mrf.mxu0
        %v1101 = vadd.f32 %v927, %v1100
        %v1102 = vpop.f32.mrf.mxu0
        %v1103 = vadd.f32 %v927, %v1102
        %1104 = vmatmul.bf16.gmra.mxu0 %v892
        %v1105 = vpop.f32.mrf.mxu0
        %v1106 = vadd.f32 %v927, %v1105
        %v1107 = vpop.f32.mrf.mxu0
        %v1108 = vadd.f32 %v927, %v1107
        %1109 = vdwg.mxu0
        %1110 = vmatpush.bf16.msra.mxu0 %v1035
        %1111 = vmatpush.bf16.msra.mxu0 %v1032
        %1112 = vmatpush.bf16.msra.mxu0 %v1029
        %1113 = vmatpush.bf16.msra.mxu0 %v1026
        %1114 = vmatpush.bf16.msra.mxu0 %v1023
        %1115 = vmatpush.bf16.msra.mxu0 %v1020
        %1116 = vmatpush.bf16.msra.mxu0 %v1017
        %1117 = vmatpush.bf16.msra.mxu0 %v1014
        %1118 = vmatmul.bf16.gmra.mxu0 %v885
        %v1119 = vpop.f32.mrf.mxu0
        %v1120 = vadd.f32 %v928, %v1119
        %v1121 = vpop.f32.mrf.mxu0
        %v1122 = vadd.f32 %v928, %v1121
        %1123 = vmatmul.bf16.gmra.mxu0 %v886
        %v1124 = vpop.f32.mrf.mxu0
        %v1125 = vadd.f32 %v928, %v1124
        %v1126 = vpop.f32.mrf.mxu0
        %v1127 = vadd.f32 %v928, %v1126
        %1128 = vmatmul.bf16.gmra.mxu0 %v887
        %v1129 = vpop.f32.mrf.mxu0
        %v1130 = vadd.f32 %v928, %v1129
        %v1131 = vpop.f32.mrf.mxu0
        %v1132 = vadd.f32 %v928, %v1131
        %1133 = vmatmul.bf16.gmra.mxu0 %v888
        %v1134 = vpop.f32.mrf.mxu0
        %v1135 = vadd.f32 %v928, %v1134
        %v1136 = vpop.f32.mrf.mxu0
        %v1137 = vadd.f32 %v928, %v1136
        %1138 = vmatmul.bf16.gmra.mxu0 %v889
        %v1139 = vpop.f32.mrf.mxu0
        %v1140 = vadd.f32 %v928, %v1139
        %v1141 = vpop.f32.mrf.mxu0
        %v1142 = vadd.f32 %v928, %v1141
        %1143 = vmatmul.bf16.gmra.mxu0 %v890
        %v1144 = vpop.f32.mrf.mxu0
        %v1145 = vadd.f32 %v928, %v1144
        %v1146 = vpop.f32.mrf.mxu0
        %v1147 = vadd.f32 %v928, %v1146
        %1148 = vmatmul.bf16.gmra.mxu0 %v891
        %v1149 = vpop.f32.mrf.mxu0
        %v1150 = vadd.f32 %v928, %v1149
        %v1151 = vpop.f32.mrf.mxu0
        %v1152 = vadd.f32 %v928, %v1151
        %1153 = vmatmul.bf16.gmra.mxu0 %v892
        %v1154 = vpop.f32.mrf.mxu0
        %v1155 = vadd.f32 %v928, %v1154
        %v1156 = vpop.f32.mrf.mxu0
        %v1157 = vadd.f32 %v928, %v1156
        %1158 = vdwg.mxu0
        %1159 = vmatpush.bf16.msra.mxu0 %v1036
        %1160 = vmatpush.bf16.msra.mxu0 %v1033
        %1161 = vmatpush.bf16.msra.mxu0 %v1030
        %1162 = vmatpush.bf16.msra.mxu0 %v1027
        %1163 = vmatpush.bf16.msra.mxu0 %v1024
        %1164 = vmatpush.bf16.msra.mxu0 %v1021
        %1165 = vmatpush.bf16.msra.mxu0 %v1018
        %1166 = vmatpush.bf16.msra.mxu0 %v1015
        %1167 = vmatmul.bf16.gmra.mxu0 %v885
        %v1168 = vpop.f32.mrf.mxu0
        %v1169 = vadd.f32 %v929, %v1168
        %v1170 = vpop.f32.mrf.mxu0
        %v1171 = vadd.f32 %v929, %v1170
        %1172 = vmatmul.bf16.gmra.mxu0 %v886
        %v1173 = vpop.f32.mrf.mxu0
        %v1174 = vadd.f32 %v929, %v1173
        %v1175 = vpop.f32.mrf.mxu0
        %v1176 = vadd.f32 %v929, %v1175
        %1177 = vmatmul.bf16.gmra.mxu0 %v887
        %v1178 = vpop.f32.mrf.mxu0
        %v1179 = vadd.f32 %v929, %v1178
        %v1180 = vpop.f32.mrf.mxu0
        %v1181 = vadd.f32 %v929, %v1180
        %1182 = vmatmul.bf16.gmra.mxu0 %v888
        %v1183 = vpop.f32.mrf.mxu0
        %v1184 = vadd.f32 %v929, %v1183
        %v1185 = vpop.f32.mrf.mxu0
        %v1186 = vadd.f32 %v929, %v1185
        %1187 = vmatmul.bf16.gmra.mxu0 %v889
        %v1188 = vpop.f32.mrf.mxu0
        %v1189 = vadd.f32 %v929, %v1188
        %v1190 = vpop.f32.mrf.mxu0
        %v1191 = vadd.f32 %v929, %v1190
        %1192 = vmatmul.bf16.gmra.mxu0 %v890
        %v1193 = vpop.f32.mrf.mxu0
        %v1194 = vadd.f32 %v929, %v1193
        %v1195 = vpop.f32.mrf.mxu0
        %v1196 = vadd.f32 %v929, %v1195
        %1197 = vmatmul.bf16.gmra.mxu0 %v891
        %v1198 = vpop.f32.mrf.mxu0
        %v1199 = vadd.f32 %v929, %v1198
        %v1200 = vpop.f32.mrf.mxu0
        %v1201 = vadd.f32 %v929, %v1200
        %1202 = vmatmul.bf16.gmra.mxu0 %v892
        %v1203 = vpop.f32.mrf.mxu0
        %v1204 = vadd.f32 %v929, %v1203
        %v1205 = vpop.f32.mrf.mxu0
        %v1206 = vadd.f32 %v929, %v1205
        %1207 = vdwg.mxu0
        %v1208 = vpack.c.bf16 %v1073, %v1071
        %v1209 = vpack.c.bf16 %v1078, %v1076
        %v1210 = vpack.c.bf16 %v1083, %v1081
        %v1211 = vpack.c.bf16 %v1088, %v1086
        %v1212 = vpack.c.bf16 %v1093, %v1091
        %v1213 = vpack.c.bf16 %v1098, %v1096
        %v1214 = vpack.c.bf16 %v1103, %v1101
        %v1215 = vpack.c.bf16 %v1108, %v1106
        %v1216 = vpack.c.bf16 %v1122, %v1120
        %v1217 = vpack.c.bf16 %v1127, %v1125
        %v1218 = vpack.c.bf16 %v1132, %v1130
        %v1219 = vpack.c.bf16 %v1137, %v1135
        %v1220 = vpack.c.bf16 %v1142, %v1140
        %v1221 = vpack.c.bf16 %v1147, %v1145
        %v1222 = vpack.c.bf16 %v1152, %v1150
        %v1223 = vpack.c.bf16 %v1157, %v1155
        %1224 = vmatpush.bf16.xpose.msra.mxu0 %v1223
        %1225 = vmatpush.bf16.xpose.msra.mxu0 %v1222
        %1226 = vmatpush.bf16.xpose.msra.mxu0 %v1221
        %1227 = vmatpush.bf16.xpose.msra.mxu0 %v1220
        %1228 = vmatpush.bf16.xpose.msra.mxu0 %v1219
        %1229 = vmatpush.bf16.xpose.msra.mxu0 %v1218
        %1230 = vmatpush.bf16.xpose.msra.mxu0 %v1217
        %1231 = vmatpush.bf16.xpose.msra.mxu0 %v1216
        %1232 = vmatmul.bf16.gmra.mxu0 %v1208
        %v1233 = vpop.f32.mrf.mxu0
        %v1234 = vadd.f32 0.0, %v1233
        %v1235 = vpop.f32.mrf.mxu0
        %v1236 = vadd.f32 0.0, %v1235
        %1237 = vmatmul.bf16.gmra.mxu0 %v1209
        %v1238 = vpop.f32.mrf.mxu0
        %v1239 = vadd.f32 0.0, %v1238
        %v1240 = vpop.f32.mrf.mxu0
        %v1241 = vadd.f32 0.0, %v1240
        %1242 = vmatmul.bf16.gmra.mxu0 %v1210
        %v1243 = vpop.f32.mrf.mxu0
        %v1244 = vadd.f32 0.0, %v1243
        %v1245 = vpop.f32.mrf.mxu0
        %v1246 = vadd.f32 0.0, %v1245
        %1247 = vmatmul.bf16.gmra.mxu0 %v1211
        %v1248 = vpop.f32.mrf.mxu0
        %v1249 = vadd.f32 0.0, %v1248
        %v1250 = vpop.f32.mrf.mxu0
        %v1251 = vadd.f32 0.0, %v1250
        %1252 = vmatmul.bf16.gmra.mxu0 %v1212
        %v1253 = vpop.f32.mrf.mxu0
        %v1254 = vadd.f32 0.0, %v1253
        %v1255 = vpop.f32.mrf.mxu0
        %v1256 = vadd.f32 0.0, %v1255
        %1257 = vmatmul.bf16.gmra.mxu0 %v1213
        %v1258 = vpop.f32.mrf.mxu0
        %v1259 = vadd.f32 0.0, %v1258
        %v1260 = vpop.f32.mrf.mxu0
        %v1261 = vadd.f32 0.0, %v1260
        %1262 = vmatmul.bf16.gmra.mxu0 %v1214
        %v1263 = vpop.f32.mrf.mxu0
        %v1264 = vadd.f32 0.0, %v1263
        %v1265 = vpop.f32.mrf.mxu0
        %v1266 = vadd.f32 0.0, %v1265
        %1267 = vmatmul.bf16.gmra.mxu0 %v1215
        %v1268 = vpop.f32.mrf.mxu0
        %v1269 = vadd.f32 0.0, %v1268
        %v1270 = vpop.f32.mrf.mxu0
        %v1271 = vadd.f32 0.0, %v1270
        %1272 = vdwg.mxu0
        %v1273 = vld [vmem:[#allocation5] sm:$0xf]
        %v1274 = vld [vmem:[#allocation5 + $0x4] sm:$0xf]
        %v1275 = vld [vmem:[#allocation5 + $0x8] sm:$0xf]
        %v1276 = vld [vmem:[#allocation5 + $0xc] sm:$0xf]
        %v1277 = vld [vmem:[#allocation5 + $0x10] sm:$0xf]
        %v1278 = vld [vmem:[#allocation5 + $0x14] sm:$0xf]
        %v1279 = vld [vmem:[#allocation5 + $0x18] sm:$0xf]
        %v1280 = vld [vmem:[#allocation5 + $0x1c] sm:$0xf]
        %v1281 = vld [vmem:[#allocation5 + $0x20] sm:$0xf]
        %v1282 = vld [vmem:[#allocation5 + $0x24] sm:$0xf]
        %v1283 = vld [vmem:[#allocation5 + $0x28] sm:$0xf]
        %v1284 = vld [vmem:[#allocation5 + $0x2c] sm:$0xf]
        %v1285 = vld [vmem:[#allocation5 + $0x30] sm:$0xf]
        %v1286 = vld [vmem:[#allocation5 + $0x34] sm:$0xf]
        %v1287 = vld [vmem:[#allocation5 + $0x38] sm:$0xf]
        %v1288 = vld [vmem:[#allocation5 + $0x3c] sm:$0xf]
        %v1289 = vunpack.c.l.bf16 %v1273
        %v1290 = vunpack.c.l.bf16 %v1274
        %v1291 = vunpack.c.l.bf16 %v1275
        %v1292 = vunpack.c.l.bf16 %v1276
        %v1293 = vunpack.c.l.bf16 %v1277
        %v1294 = vunpack.c.l.bf16 %v1278
        %v1295 = vunpack.c.l.bf16 %v1279
        %v1296 = vunpack.c.l.bf16 %v1280
        %v1297 = vunpack.c.l.bf16 %v1281
        %v1298 = vunpack.c.l.bf16 %v1282
        %v1299 = vunpack.c.l.bf16 %v1283
        %v1300 = vunpack.c.l.bf16 %v1284
        %v1301 = vunpack.c.l.bf16 %v1285
        %v1302 = vunpack.c.l.bf16 %v1286
        %v1303 = vunpack.c.l.bf16 %v1287
        %v1304 = vunpack.c.l.bf16 %v1288
        %vm1305 = vcmp.ne.f32.partialorder %v1289, 0.0
        %vm1306 = vcmp.ne.f32.partialorder %v1290, 0.0
        %vm1307 = vcmp.ne.f32.partialorder %v1291, 0.0
        %vm1308 = vcmp.ne.f32.partialorder %v1292, 0.0
        %vm1309 = vcmp.ne.f32.partialorder %v1293, 0.0
        %vm1310 = vcmp.ne.f32.partialorder %v1294, 0.0
        %vm1311 = vcmp.ne.f32.partialorder %v1295, 0.0
        %vm1312 = vcmp.ne.f32.partialorder %v1296, 0.0
        %vm1313 = vcmp.ne.f32.partialorder %v1297, 0.0
        %vm1314 = vcmp.ne.f32.partialorder %v1298, 0.0
        %vm1315 = vcmp.ne.f32.partialorder %v1299, 0.0
        %vm1316 = vcmp.ne.f32.partialorder %v1300, 0.0
        %vm1317 = vcmp.ne.f32.partialorder %v1301, 0.0
        %vm1318 = vcmp.ne.f32.partialorder %v1302, 0.0
        %vm1319 = vcmp.ne.f32.partialorder %v1303, 0.0
        %vm1320 = vcmp.ne.f32.partialorder %v1304, 0.0
        %v1321 = vsel %vm1305, %v1234, -1e+09
        %v1322 = vsel %vm1306, %v1236, -1e+09
        %v1323 = vsel %vm1307, %v1239, -1e+09
        %v1324 = vsel %vm1308, %v1241, -1e+09
        %v1325 = vsel %vm1309, %v1244, -1e+09
        %v1326 = vsel %vm1310, %v1246, -1e+09
        %v1327 = vsel %vm1311, %v1249, -1e+09
        %v1328 = vsel %vm1312, %v1251, -1e+09
        %v1329 = vsel %vm1313, %v1254, -1e+09
        %v1330 = vsel %vm1314, %v1256, -1e+09
        %v1331 = vsel %vm1315, %v1259, -1e+09
        %v1332 = vsel %vm1316, %v1261, -1e+09
        %v1333 = vsel %vm1317, %v1264, -1e+09
        %v1334 = vsel %vm1318, %v1266, -1e+09
        %v1335 = vsel %vm1319, %v1269, -1e+09
        %v1336 = vsel %vm1320, %v1271, -1e+09
        %1337 = vmax.xlane.f32.xlu0 %v1321
        %v1338 = vpop.xlane.xlu0 %1337
        %1339 = vmax.xlane.f32.xlu0 %v1322
        %v1340 = vpop.xlane.xlu0 %1339
        %1341 = vmax.xlane.f32.xlu0 %v1323
        %v1342 = vpop.xlane.xlu0 %1341
        %1343 = vmax.xlane.f32.xlu0 %v1324
        %v1344 = vpop.xlane.xlu0 %1343
        %1345 = vmax.xlane.f32.xlu0 %v1325
        %v1346 = vpop.xlane.xlu0 %1345
        %1347 = vmax.xlane.f32.xlu0 %v1326
        %v1348 = vpop.xlane.xlu0 %1347
        %1349 = vmax.xlane.f32.xlu0 %v1327
        %v1350 = vpop.xlane.xlu0 %1349
        %1351 = vmax.xlane.f32.xlu0 %v1328
        %v1352 = vpop.xlane.xlu0 %1351
        %1353 = vmax.xlane.f32.xlu0 %v1329
        %v1354 = vpop.xlane.xlu0 %1353
        %1355 = vmax.xlane.f32.xlu0 %v1330
        %v1356 = vpop.xlane.xlu0 %1355
        %1357 = vmax.xlane.f32.xlu0 %v1331
        %v1358 = vpop.xlane.xlu0 %1357
        %1359 = vmax.xlane.f32.xlu0 %v1332
        %v1360 = vpop.xlane.xlu0 %1359
        %1361 = vmax.xlane.f32.xlu0 %v1333
        %v1362 = vpop.xlane.xlu0 %1361
        %1363 = vmax.xlane.f32.xlu0 %v1334
        %v1364 = vpop.xlane.xlu0 %1363
        %1365 = vmax.xlane.f32.xlu0 %v1335
        %v1366 = vpop.xlane.xlu0 %1365
        %1367 = vmax.xlane.f32.xlu0 %v1336
        %v1368 = vpop.xlane.xlu0 %1367
        %v1369 = vsub.f32 %v1321, %v1338
        %v1370 = vsub.f32 %v1322, %v1340
        %v1371 = vsub.f32 %v1323, %v1342
        %v1372 = vsub.f32 %v1324, %v1344
        %v1373 = vsub.f32 %v1325, %v1346
        %v1374 = vsub.f32 %v1326, %v1348
        %v1375 = vsub.f32 %v1327, %v1350
        %v1376 = vsub.f32 %v1328, %v1352
        %v1377 = vsub.f32 %v1329, %v1354
        %v1378 = vsub.f32 %v1330, %v1356
        %v1379 = vsub.f32 %v1331, %v1358
        %v1380 = vsub.f32 %v1332, %v1360
        %v1381 = vsub.f32 %v1333, %v1362
        %v1382 = vsub.f32 %v1334, %v1364
        %v1383 = vsub.f32 %v1335, %v1366
        %v1384 = vsub.f32 %v1336, %v1368
        %v1385 = vmul.f32 %v1369, 1.442695
        %v1386 = vpow.pop %v1385
        %v1387 = vmul.f32 %v1370, 1.442695
        %v1388 = vpow.pop %v1387
        %v1389 = vmul.f32 %v1371, 1.442695
        %v1390 = vpow.pop %v1389
        %v1391 = vmul.f32 %v1372, 1.442695
        %v1392 = vpow.pop %v1391
        %v1393 = vmul.f32 %v1373, 1.442695
        %v1394 = vpow.pop %v1393
        %v1395 = vmul.f32 %v1374, 1.442695
        %v1396 = vpow.pop %v1395
        %v1397 = vmul.f32 %v1375, 1.442695
        %v1398 = vpow.pop %v1397
        %v1399 = vmul.f32 %v1376, 1.442695
        %v1400 = vpow.pop %v1399
        %v1401 = vmul.f32 %v1377, 1.442695
        %v1402 = vpow.pop %v1401
        %v1403 = vmul.f32 %v1378, 1.442695
        %v1404 = vpow.pop %v1403
        %v1405 = vmul.f32 %v1379, 1.442695
        %v1406 = vpow.pop %v1405
        %v1407 = vmul.f32 %v1380, 1.442695
        %v1408 = vpow.pop %v1407
        %v1409 = vmul.f32 %v1381, 1.442695
        %v1410 = vpow.pop %v1409
        %v1411 = vmul.f32 %v1382, 1.442695
        %v1412 = vpow.pop %v1411
        %v1413 = vmul.f32 %v1383, 1.442695
        %v1414 = vpow.pop %v1413
        %v1415 = vmul.f32 %v1384, 1.442695
        %v1416 = vpow.pop %v1415
        %1417 = vadd.xlane.f32.xlu0 %v1386
        %v1418 = vpop.xlane.xlu0 %1417
        %1419 = vadd.xlane.f32.xlu0 %v1388
        %v1420 = vpop.xlane.xlu0 %1419
        %1421 = vadd.xlane.f32.xlu0 %v1390
        %v1422 = vpop.xlane.xlu0 %1421
        %1423 = vadd.xlane.f32.xlu0 %v1392
        %v1424 = vpop.xlane.xlu0 %1423
        %1425 = vadd.xlane.f32.xlu0 %v1394
        %v1426 = vpop.xlane.xlu0 %1425
        %1427 = vadd.xlane.f32.xlu0 %v1396
        %v1428 = vpop.xlane.xlu0 %1427
        %1429 = vadd.xlane.f32.xlu0 %v1398
        %v1430 = vpop.xlane.xlu0 %1429
        %1431 = vadd.xlane.f32.xlu0 %v1400
        %v1432 = vpop.xlane.xlu0 %1431
        %1433 = vadd.xlane.f32.xlu0 %v1402
        %v1434 = vpop.xlane.xlu0 %1433
        %1435 = vadd.xlane.f32.xlu0 %v1404
        %v1436 = vpop.xlane.xlu0 %1435
        %1437 = vadd.xlane.f32.xlu0 %v1406
        %v1438 = vpop.xlane.xlu0 %1437
        %1439 = vadd.xlane.f32.xlu0 %v1408
        %v1440 = vpop.xlane.xlu0 %1439
        %1441 = vadd.xlane.f32.xlu0 %v1410
        %v1442 = vpop.xlane.xlu0 %1441
        %1443 = vadd.xlane.f32.xlu0 %v1412
        %v1444 = vpop.xlane.xlu0 %1443
        %1445 = vadd.xlane.f32.xlu0 %v1414
        %v1446 = vpop.xlane.xlu0 %1445
        %1447 = vadd.xlane.f32.xlu0 %v1416
        %v1448 = vpop.xlane.xlu0 %1447
        %v1449 = vrcp.pop %v1418
        %v1450 = vrcp.pop %v1420
        %v1451 = vrcp.pop %v1422
        %v1452 = vrcp.pop %v1424
        %v1453 = vrcp.pop %v1426
        %v1454 = vrcp.pop %v1428
        %v1455 = vrcp.pop %v1430
        %v1456 = vrcp.pop %v1432
        %v1457 = vrcp.pop %v1434
        %v1458 = vrcp.pop %v1436
        %v1459 = vrcp.pop %v1438
        %v1460 = vrcp.pop %v1440
        %v1461 = vrcp.pop %v1442
        %v1462 = vrcp.pop %v1444
        %v1463 = vrcp.pop %v1446
        %v1464 = vrcp.pop %v1448
        %v1465 = vmul.f32 %v1386, %v1449
        %v1466 = vmul.f32 %v1388, %v1450
        %v1467 = vmul.f32 %v1390, %v1451
        %v1468 = vmul.f32 %v1392, %v1452
        %v1469 = vmul.f32 %v1394, %v1453
        %v1470 = vmul.f32 %v1396, %v1454
        %v1471 = vmul.f32 %v1398, %v1455
        %v1472 = vmul.f32 %v1400, %v1456
        %v1473 = vmul.f32 %v1402, %v1457
        %v1474 = vmul.f32 %v1404, %v1458
        %v1475 = vmul.f32 %v1406, %v1459
        %v1476 = vmul.f32 %v1408, %v1460
        %v1477 = vmul.f32 %v1410, %v1461
        %v1478 = vmul.f32 %v1412, %v1462
        %v1479 = vmul.f32 %v1414, %v1463
        %v1480 = vmul.f32 %v1416, %v1464
        %v1481 = vpack.c.bf16 %v1466, %v1465
        %v1482 = vpack.c.bf16 %v1468, %v1467
        %v1483 = vpack.c.bf16 %v1470, %v1469
        %v1484 = vpack.c.bf16 %v1472, %v1471
        %v1485 = vpack.c.bf16 %v1474, %v1473
        %v1486 = vpack.c.bf16 %v1476, %v1475
        %v1487 = vpack.c.bf16 %v1478, %v1477
        %v1488 = vpack.c.bf16 %v1480, %v1479
        %v1489 = vpack.c.bf16 %v1171, %v1169
        %v1490 = vpack.c.bf16 %v1176, %v1174
        %v1491 = vpack.c.bf16 %v1181, %v1179
        %v1492 = vpack.c.bf16 %v1186, %v1184
        %v1493 = vpack.c.bf16 %v1191, %v1189
        %v1494 = vpack.c.bf16 %v1196, %v1194
        %v1495 = vpack.c.bf16 %v1201, %v1199
        %v1496 = vpack.c.bf16 %v1206, %v1204
        %1497 = vmatpush.bf16.msra.mxu0 %v1496
        %1498 = vmatpush.bf16.msra.mxu0 %v1495
        %1499 = vmatpush.bf16.msra.mxu0 %v1494
        %1500 = vmatpush.bf16.msra.mxu0 %v1493
        %1501 = vmatpush.bf16.msra.mxu0 %v1492
        %1502 = vmatpush.bf16.msra.mxu0 %v1491
        %1503 = vmatpush.bf16.msra.mxu0 %v1490
        %1504 = vmatpush.bf16.msra.mxu0 %v1489
        %1505 = vmatmul.bf16.gmra.mxu0 %v1481
        %v1506 = vpop.f32.mrf.mxu0
        %v1507 = vadd.f32 0.0, %v1506
        %v1508 = vpop.f32.mrf.mxu0
        %v1509 = vadd.f32 0.0, %v1508
        %1510 = vmatmul.bf16.gmra.mxu0 %v1482
        %v1511 = vpop.f32.mrf.mxu0
        %v1512 = vadd.f32 0.0, %v1511
        %v1513 = vpop.f32.mrf.mxu0
        %v1514 = vadd.f32 0.0, %v1513
        %1515 = vmatmul.bf16.gmra.mxu0 %v1483
        %v1516 = vpop.f32.mrf.mxu0
        %v1517 = vadd.f32 0.0, %v1516
        %v1518 = vpop.f32.mrf.mxu0
        %v1519 = vadd.f32 0.0, %v1518
        %1520 = vmatmul.bf16.gmra.mxu0 %v1484
        %v1521 = vpop.f32.mrf.mxu0
        %v1522 = vadd.f32 0.0, %v1521
        %v1523 = vpop.f32.mrf.mxu0
        %v1524 = vadd.f32 0.0, %v1523
        %1525 = vmatmul.bf16.gmra.mxu0 %v1485
        %v1526 = vpop.f32.mrf.mxu0
        %v1527 = vadd.f32 0.0, %v1526
        %v1528 = vpop.f32.mrf.mxu0
        %v1529 = vadd.f32 0.0, %v1528
        %1530 = vmatmul.bf16.gmra.mxu0 %v1486
        %v1531 = vpop.f32.mrf.mxu0
        %v1532 = vadd.f32 0.0, %v1531
        %v1533 = vpop.f32.mrf.mxu0
        %v1534 = vadd.f32 0.0, %v1533
        %1535 = vmatmul.bf16.gmra.mxu0 %v1487
        %v1536 = vpop.f32.mrf.mxu0
        %v1537 = vadd.f32 0.0, %v1536
        %v1538 = vpop.f32.mrf.mxu0
        %v1539 = vadd.f32 0.0, %v1538
        %1540 = vmatmul.bf16.gmra.mxu0 %v1488
        %v1541 = vpop.f32.mrf.mxu0
        %v1542 = vadd.f32 0.0, %v1541
        %v1543 = vpop.f32.mrf.mxu0
        %v1544 = vadd.f32 0.0, %v1543
        %1545 = vdwg.mxu0
        %v1546 = vpack.c.bf16 %v1509, %v1507
        %v1547 = vpack.c.bf16 %v1514, %v1512
        %v1548 = vpack.c.bf16 %v1519, %v1517
        %v1549 = vpack.c.bf16 %v1524, %v1522
        %v1550 = vpack.c.bf16 %v1529, %v1527
        %v1551 = vpack.c.bf16 %v1534, %v1532
        %v1552 = vpack.c.bf16 %v1539, %v1537
        %v1553 = vpack.c.bf16 %v1544, %v1542
        %v1554 = vld [vmem:[%s680] sm:$0xf]
        %v1555 = vld [vmem:[%s680 + $0x4] sm:$0xf]
        %v1556 = vld [vmem:[%s680 + $0x8] sm:$0xf]
        %v1557 = vld [vmem:[%s680 + $0xc] sm:$0xf]
        %v1558 = vld [vmem:[%s680 + $0x10] sm:$0xf]
        %v1559 = vld [vmem:[%s680 + $0x14] sm:$0xf]
        %v1560 = vld [vmem:[%s680 + $0x18] sm:$0xf]
        %v1561 = vld [vmem:[%s680 + $0x1c] sm:$0xf]
        %v1562 = vld [vmem:[%s680 + $0x20] sm:$0xf]
        %v1563 = vld [vmem:[%s680 + $0x24] sm:$0xf]
        %v1564 = vld [vmem:[%s680 + $0x28] sm:$0xf]
        %v1565 = vld [vmem:[%s680 + $0x2c] sm:$0xf]
        %v1566 = vld [vmem:[%s680 + $0x30] sm:$0xf]
        %v1567 = vld [vmem:[%s680 + $0x34] sm:$0xf]
        %v1568 = vld [vmem:[%s680 + $0x38] sm:$0xf]
        %v1569 = vld [vmem:[%s680 + $0x3c] sm:$0xf]
        %v1570 = vld [vmem:[%s689] sm:$0x1]
        %v1572 = vperm.slane %v1570, 0
        %v1590 = vunpack.c.l.b16 %v1554
        %v1591 = vunpack.c.l.b16 %v1555
        %v1592 = vunpack.c.l.b16 %v1556
        %v1593 = vunpack.c.l.b16 %v1557
        %v1594 = vunpack.c.l.b16 %v1558
        %v1595 = vunpack.c.l.b16 %v1559
        %v1596 = vunpack.c.l.b16 %v1560
        %v1597 = vunpack.c.l.b16 %v1561
        %v1598 = vunpack.c.l.b16 %v1562
        %v1599 = vunpack.c.l.b16 %v1563
        %v1600 = vunpack.c.l.b16 %v1564
        %v1601 = vunpack.c.l.b16 %v1565
        %v1602 = vunpack.c.l.b16 %v1566
        %v1603 = vunpack.c.l.b16 %v1567
        %v1604 = vunpack.c.l.b16 %v1568
        %v1605 = vunpack.c.l.b16 %v1569
        %v1606 = vpack.c.b16 %v1591, %v1590
        %v1607 = vpack.c.b16 %v1593, %v1592
        %v1608 = vpack.c.b16 %v1595, %v1594
        %v1609 = vpack.c.b16 %v1597, %v1596
        %v1610 = vpack.c.b16 %v1599, %v1598
        %v1611 = vpack.c.b16 %v1601, %v1600
        %v1612 = vpack.c.b16 %v1603, %v1602
        %v1613 = vpack.c.b16 %v1605, %v1604
        %1622 = vmatpush.bf16.msra.mxu0 %v1613
        %1623 = vmatpush.bf16.msra.mxu0 %v1612
        %1624 = vmatpush.bf16.msra.mxu0 %v1611
        %1625 = vmatpush.bf16.msra.mxu0 %v1610
        %1626 = vmatpush.bf16.msra.mxu0 %v1609
        %1627 = vmatpush.bf16.msra.mxu0 %v1608
        %1628 = vmatpush.bf16.msra.mxu0 %v1607
        %1629 = vmatpush.bf16.msra.mxu0 %v1606
        %1630 = vmatmul.bf16.gmra.mxu0 %v1546
        %v1631 = vpop.f32.mrf.mxu0
        %v1632 = vadd.f32 %v1572, %v1631
        %v1633 = vpop.f32.mrf.mxu0
        %v1634 = vadd.f32 %v1572, %v1633
        %1635 = vmatmul.bf16.gmra.mxu0 %v1547
        %v1636 = vpop.f32.mrf.mxu0
        %v1637 = vadd.f32 %v1572, %v1636
        %v1638 = vpop.f32.mrf.mxu0
        %v1639 = vadd.f32 %v1572, %v1638
        %1640 = vmatmul.bf16.gmra.mxu0 %v1548
        %v1641 = vpop.f32.mrf.mxu0
        %v1642 = vadd.f32 %v1572, %v1641
        %v1643 = vpop.f32.mrf.mxu0
        %v1644 = vadd.f32 %v1572, %v1643
        %1645 = vmatmul.bf16.gmra.mxu0 %v1549
        %v1646 = vpop.f32.mrf.mxu0
        %v1647 = vadd.f32 %v1572, %v1646
        %v1648 = vpop.f32.mrf.mxu0
        %v1649 = vadd.f32 %v1572, %v1648
        %1650 = vmatmul.bf16.gmra.mxu0 %v1550
        %v1651 = vpop.f32.mrf.mxu0
        %v1652 = vadd.f32 %v1572, %v1651
        %v1653 = vpop.f32.mrf.mxu0
        %v1654 = vadd.f32 %v1572, %v1653
        %1655 = vmatmul.bf16.gmra.mxu0 %v1551
        %v1656 = vpop.f32.mrf.mxu0
        %v1657 = vadd.f32 %v1572, %v1656
        %v1658 = vpop.f32.mrf.mxu0
        %v1659 = vadd.f32 %v1572, %v1658
        %1660 = vmatmul.bf16.gmra.mxu0 %v1552
        %v1661 = vpop.f32.mrf.mxu0
        %v1662 = vadd.f32 %v1572, %v1661
        %v1663 = vpop.f32.mrf.mxu0
        %v1664 = vadd.f32 %v1572, %v1663
        %1665 = vmatmul.bf16.gmra.mxu0 %v1553
        %v1666 = vpop.f32.mrf.mxu0
        %v1667 = vadd.f32 %v1572, %v1666
        %v1668 = vpop.f32.mrf.mxu0
        %v1669 = vadd.f32 %v1572, %v1668
        %1670 = vdwg.mxu0
        %v1671 = vadd.f32 %v869, %v1632
        %v1672 = vadd.f32 %v870, %v1634
        %v1673 = vadd.f32 %v871, %v1637
        %v1674 = vadd.f32 %v872, %v1639
        %v1675 = vadd.f32 %v873, %v1642
        %v1676 = vadd.f32 %v874, %v1644
        %v1677 = vadd.f32 %v875, %v1647
        %v1678 = vadd.f32 %v876, %v1649
        %v1679 = vadd.f32 %v877, %v1652
        %v1680 = vadd.f32 %v878, %v1654
        %v1681 = vadd.f32 %v879, %v1657
        %v1682 = vadd.f32 %v880, %v1659
        %v1683 = vadd.f32 %v881, %v1662
        %v1684 = vadd.f32 %v882, %v1664
        %v1685 = vadd.f32 %v883, %v1667
        %v1686 = vadd.f32 %v884, %v1669
        %v1687 = vld [vmem:[%s698] sm:$0x1]
        %v1688 = vld [vmem:[%s707] sm:$0x1]
        %1689 = vadd.xlane.f32.xlu0 %v1671
        %v1690 = vpop.xlane.xlu0 %1689
        %1691 = vadd.xlane.f32.xlu0 %v1672
        %v1692 = vpop.xlane.xlu0 %1691
        %1693 = vadd.xlane.f32.xlu0 %v1673
        %v1694 = vpop.xlane.xlu0 %1693
        %1695 = vadd.xlane.f32.xlu0 %v1674
        %v1696 = vpop.xlane.xlu0 %1695
        %1697 = vadd.xlane.f32.xlu0 %v1675
        %v1698 = vpop.xlane.xlu0 %1697
        %1699 = vadd.xlane.f32.xlu0 %v1676
        %v1700 = vpop.xlane.xlu0 %1699
        %1701 = vadd.xlane.f32.xlu0 %v1677
        %v1702 = vpop.xlane.xlu0 %1701
        %1703 = vadd.xlane.f32.xlu0 %v1678
        %v1704 = vpop.xlane.xlu0 %1703
        %1705 = vadd.xlane.f32.xlu0 %v1679
        %v1706 = vpop.xlane.xlu0 %1705
        %1707 = vadd.xlane.f32.xlu0 %v1680
        %v1708 = vpop.xlane.xlu0 %1707
        %1709 = vadd.xlane.f32.xlu0 %v1681
        %v1710 = vpop.xlane.xlu0 %1709
        %1711 = vadd.xlane.f32.xlu0 %v1682
        %v1712 = vpop.xlane.xlu0 %1711
        %1713 = vadd.xlane.f32.xlu0 %v1683
        %v1714 = vpop.xlane.xlu0 %1713
        %1715 = vadd.xlane.f32.xlu0 %v1684
        %v1716 = vpop.xlane.xlu0 %1715
        %1717 = vadd.xlane.f32.xlu0 %v1685
        %v1718 = vpop.xlane.xlu0 %1717
        %1719 = vadd.xlane.f32.xlu0 %v1686
        %v1720 = vpop.xlane.xlu0 %1719
        %v1721 = vrcp.pop 128.0
        %v1722 = vmul.f32 128.0, %v1721
        %v1723 = vsub.f32 1.0, %v1722
        %v1724 = vmul.f32 %v1721, %v1723
        %v1725 = vadd.f32 %v1721, %v1724
        %vm1726 = vweird.f32 %v1721
        %v1727 = vsel %vm1726, %v1721, %v1725
        %v1728 = vmul.f32 %v1690, %v1727
        %v1729 = vmul.f32 %v1692, %v1727
        %v1730 = vmul.f32 %v1694, %v1727
        %v1731 = vmul.f32 %v1696, %v1727
        %v1732 = vmul.f32 %v1698, %v1727
        %v1733 = vmul.f32 %v1700, %v1727
        %v1734 = vmul.f32 %v1702, %v1727
        %v1735 = vmul.f32 %v1704, %v1727
        %v1736 = vmul.f32 %v1706, %v1727
        %v1737 = vmul.f32 %v1708, %v1727
        %v1738 = vmul.f32 %v1710, %v1727
        %v1739 = vmul.f32 %v1712, %v1727
        %v1740 = vmul.f32 %v1714, %v1727
        %v1741 = vmul.f32 %v1716, %v1727
        %v1742 = vmul.f32 %v1718, %v1727
        %v1743 = vmul.f32 %v1720, %v1727
        %v1744 = vmul.f32 %v1671, %v1671
        %v1745 = vmul.f32 %v1672, %v1672
        %v1746 = vmul.f32 %v1673, %v1673
        %v1747 = vmul.f32 %v1674, %v1674
        %v1748 = vmul.f32 %v1675, %v1675
        %v1749 = vmul.f32 %v1676, %v1676
        %v1750 = vmul.f32 %v1677, %v1677
        %v1751 = vmul.f32 %v1678, %v1678
        %v1752 = vmul.f32 %v1679, %v1679
        %v1753 = vmul.f32 %v1680, %v1680
        %v1754 = vmul.f32 %v1681, %v1681
        %v1755 = vmul.f32 %v1682, %v1682
        %v1756 = vmul.f32 %v1683, %v1683
        %v1757 = vmul.f32 %v1684, %v1684
        %v1758 = vmul.f32 %v1685, %v1685
        %v1759 = vmul.f32 %v1686, %v1686
        %1760 = vadd.xlane.f32.xlu0 %v1744
        %v1761 = vpop.xlane.xlu0 %1760
        %1762 = vadd.xlane.f32.xlu0 %v1745
        %v1763 = vpop.xlane.xlu0 %1762
        %1764 = vadd.xlane.f32.xlu0 %v1746
        %v1765 = vpop.xlane.xlu0 %1764
        %1766 = vadd.xlane.f32.xlu0 %v1747
        %v1767 = vpop.xlane.xlu0 %1766
        %1768 = vadd.xlane.f32.xlu0 %v1748
        %v1769 = vpop.xlane.xlu0 %1768
        %1770 = vadd.xlane.f32.xlu0 %v1749
        %v1771 = vpop.xlane.xlu0 %1770
        %1772 = vadd.xlane.f32.xlu0 %v1750
        %v1773 = vpop.xlane.xlu0 %1772
        %1774 = vadd.xlane.f32.xlu0 %v1751
        %v1775 = vpop.xlane.xlu0 %1774
        %1776 = vadd.xlane.f32.xlu0 %v1752
        %v1777 = vpop.xlane.xlu0 %1776
        %1778 = vadd.xlane.f32.xlu0 %v1753
        %v1779 = vpop.xlane.xlu0 %1778
        %1780 = vadd.xlane.f32.xlu0 %v1754
        %v1781 = vpop.xlane.xlu0 %1780
        %1782 = vadd.xlane.f32.xlu0 %v1755
        %v1783 = vpop.xlane.xlu0 %1782
        %1784 = vadd.xlane.f32.xlu0 %v1756
        %v1785 = vpop.xlane.xlu0 %1784
        %1786 = vadd.xlane.f32.xlu0 %v1757
        %v1787 = vpop.xlane.xlu0 %1786
        %1788 = vadd.xlane.f32.xlu0 %v1758
        %v1789 = vpop.xlane.xlu0 %1788
        %1790 = vadd.xlane.f32.xlu0 %v1759
        %v1791 = vpop.xlane.xlu0 %1790
        %v1792 = vmul.f32 %v1761, %v1727
        %v1793 = vmul.f32 %v1763, %v1727
        %v1794 = vmul.f32 %v1765, %v1727
        %v1795 = vmul.f32 %v1767, %v1727
        %v1796 = vmul.f32 %v1769, %v1727
        %v1797 = vmul.f32 %v1771, %v1727
        %v1798 = vmul.f32 %v1773, %v1727
        %v1799 = vmul.f32 %v1775, %v1727
        %v1800 = vmul.f32 %v1777, %v1727
        %v1801 = vmul.f32 %v1779, %v1727
        %v1802 = vmul.f32 %v1781, %v1727
        %v1803 = vmul.f32 %v1783, %v1727
        %v1804 = vmul.f32 %v1785, %v1727
        %v1805 = vmul.f32 %v1787, %v1727
        %v1806 = vmul.f32 %v1789, %v1727
        %v1807 = vmul.f32 %v1791, %v1727
        %v1808 = vmul.f32 %v1728, %v1728
        %v1809 = vmul.f32 %v1729, %v1729
        %v1810 = vmul.f32 %v1730, %v1730
        %v1811 = vmul.f32 %v1731, %v1731
        %v1812 = vmul.f32 %v1732, %v1732
        %v1813 = vmul.f32 %v1733, %v1733
        %v1814 = vmul.f32 %v1734, %v1734
        %v1815 = vmul.f32 %v1735, %v1735
        %v1816 = vmul.f32 %v1736, %v1736
        %v1817 = vmul.f32 %v1737, %v1737
        %v1818 = vmul.f32 %v1738, %v1738
        %v1819 = vmul.f32 %v1739, %v1739
        %v1820 = vmul.f32 %v1740, %v1740
        %v1821 = vmul.f32 %v1741, %v1741
        %v1822 = vmul.f32 %v1742, %v1742
        %v1823 = vmul.f32 %v1743, %v1743
        %v1824 = vsub.f32 %v1792, %v1808
        %v1825 = vsub.f32 %v1793, %v1809
        %v1826 = vsub.f32 %v1794, %v1810
        %v1827 = vsub.f32 %v1795, %v1811
        %v1828 = vsub.f32 %v1796, %v1812
        %v1829 = vsub.f32 %v1797, %v1813
        %v1830 = vsub.f32 %v1798, %v1814
        %v1831 = vsub.f32 %v1799, %v1815
        %v1832 = vsub.f32 %v1800, %v1816
        %v1833 = vsub.f32 %v1801, %v1817
        %v1834 = vsub.f32 %v1802, %v1818
        %v1835 = vsub.f32 %v1803, %v1819
        %v1836 = vsub.f32 %v1804, %v1820
        %v1837 = vsub.f32 %v1805, %v1821
        %v1838 = vsub.f32 %v1806, %v1822
        %v1839 = vsub.f32 %v1807, %v1823
        %v1840 = vsub.f32 %v1671, %v1728
        %v1841 = vsub.f32 %v1672, %v1729
        %v1842 = vsub.f32 %v1673, %v1730
        %v1843 = vsub.f32 %v1674, %v1731
        %v1844 = vsub.f32 %v1675, %v1732
        %v1845 = vsub.f32 %v1676, %v1733
        %v1846 = vsub.f32 %v1677, %v1734
        %v1847 = vsub.f32 %v1678, %v1735
        %v1848 = vsub.f32 %v1679, %v1736
        %v1849 = vsub.f32 %v1680, %v1737
        %v1850 = vsub.f32 %v1681, %v1738
        %v1851 = vsub.f32 %v1682, %v1739
        %v1852 = vsub.f32 %v1683, %v1740
        %v1853 = vsub.f32 %v1684, %v1741
        %v1854 = vsub.f32 %v1685, %v1742
        %v1855 = vsub.f32 %v1686, %v1743
        %v1856 = vadd.f32 %v1824, 1e-05
        %v1857 = vadd.f32 %v1825, 1e-05
        %v1858 = vadd.f32 %v1826, 1e-05
        %v1859 = vadd.f32 %v1827, 1e-05
        %v1860 = vadd.f32 %v1828, 1e-05
        %v1861 = vadd.f32 %v1829, 1e-05
        %v1862 = vadd.f32 %v1830, 1e-05
        %v1863 = vadd.f32 %v1831, 1e-05
        %v1864 = vadd.f32 %v1832, 1e-05
        %v1865 = vadd.f32 %v1833, 1e-05
        %v1866 = vadd.f32 %v1834, 1e-05
        %v1867 = vadd.f32 %v1835, 1e-05
        %v1868 = vadd.f32 %v1836, 1e-05
        %v1869 = vadd.f32 %v1837, 1e-05
        %v1870 = vadd.f32 %v1838, 1e-05
        %v1871 = vadd.f32 %v1839, 1e-05
        %v1872 = vrsqrt.pop %v1856
        %v1873 = vmul.f32 %v1872, %v1856
        %v1874 = vmul.f32 %v1873, %v1872
        %v1875 = vmul.f32 0.5, %v1874
        %v1876 = vsub.f32 1.5, %v1875
        %v1877 = vmul.f32 %v1872, %v1876
        %vm1878 = vweird.f32 %v1856
        %vm1879 = vweird.f32 %v1872
        %vm1880 = vmor %vm1878, %vm1879
        %v1881 = vsel %vm1880, %v1872, %v1877
        %v1882 = vrsqrt.pop %v1857
        %v1883 = vmul.f32 %v1882, %v1857
        %v1884 = vmul.f32 %v1883, %v1882
        %v1885 = vmul.f32 0.5, %v1884
        %v1886 = vsub.f32 1.5, %v1885
        %v1887 = vmul.f32 %v1882, %v1886
        %vm1888 = vweird.f32 %v1857
        %vm1889 = vweird.f32 %v1882
        %vm1890 = vmor %vm1888, %vm1889
        %v1891 = vsel %vm1890, %v1882, %v1887
        %v1892 = vrsqrt.pop %v1858
        %v1893 = vmul.f32 %v1892, %v1858
        %v1894 = vmul.f32 %v1893, %v1892
        %v1895 = vmul.f32 0.5, %v1894
        %v1896 = vsub.f32 1.5, %v1895
        %v1897 = vmul.f32 %v1892, %v1896
        %vm1898 = vweird.f32 %v1858
        %vm1899 = vweird.f32 %v1892
        %vm1900 = vmor %vm1898, %vm1899
        %v1901 = vsel %vm1900, %v1892, %v1897
        %v1902 = vrsqrt.pop %v1859
        %v1903 = vmul.f32 %v1902, %v1859
        %v1904 = vmul.f32 %v1903, %v1902
        %v1905 = vmul.f32 0.5, %v1904
        %v1906 = vsub.f32 1.5, %v1905
        %v1907 = vmul.f32 %v1902, %v1906
        %vm1908 = vweird.f32 %v1859
        %vm1909 = vweird.f32 %v1902
        %vm1910 = vmor %vm1908, %vm1909
        %v1911 = vsel %vm1910, %v1902, %v1907
        %v1912 = vrsqrt.pop %v1860
        %v1913 = vmul.f32 %v1912, %v1860
        %v1914 = vmul.f32 %v1913, %v1912
        %v1915 = vmul.f32 0.5, %v1914
        %v1916 = vsub.f32 1.5, %v1915
        %v1917 = vmul.f32 %v1912, %v1916
        %vm1918 = vweird.f32 %v1860
        %vm1919 = vweird.f32 %v1912
        %vm1920 = vmor %vm1918, %vm1919
        %v1921 = vsel %vm1920, %v1912, %v1917
        %v1922 = vrsqrt.pop %v1861
        %v1923 = vmul.f32 %v1922, %v1861
        %v1924 = vmul.f32 %v1923, %v1922
        %v1925 = vmul.f32 0.5, %v1924
        %v1926 = vsub.f32 1.5, %v1925
        %v1927 = vmul.f32 %v1922, %v1926
        %vm1928 = vweird.f32 %v1861
        %vm1929 = vweird.f32 %v1922
        %vm1930 = vmor %vm1928, %vm1929
        %v1931 = vsel %vm1930, %v1922, %v1927
        %v1932 = vrsqrt.pop %v1862
        %v1933 = vmul.f32 %v1932, %v1862
        %v1934 = vmul.f32 %v1933, %v1932
        %v1935 = vmul.f32 0.5, %v1934
        %v1936 = vsub.f32 1.5, %v1935
        %v1937 = vmul.f32 %v1932, %v1936
        %vm1938 = vweird.f32 %v1862
        %vm1939 = vweird.f32 %v1932
        %vm1940 = vmor %vm1938, %vm1939
        %v1941 = vsel %vm1940, %v1932, %v1937
        %v1942 = vrsqrt.pop %v1863
        %v1943 = vmul.f32 %v1942, %v1863
        %v1944 = vmul.f32 %v1943, %v1942
        %v1945 = vmul.f32 0.5, %v1944
        %v1946 = vsub.f32 1.5, %v1945
        %v1947 = vmul.f32 %v1942, %v1946
        %vm1948 = vweird.f32 %v1863
        %vm1949 = vweird.f32 %v1942
        %vm1950 = vmor %vm1948, %vm1949
        %v1951 = vsel %vm1950, %v1942, %v1947
        %v1952 = vrsqrt.pop %v1864
        %v1953 = vmul.f32 %v1952, %v1864
        %v1954 = vmul.f32 %v1953, %v1952
        %v1955 = vmul.f32 0.5, %v1954
        %v1956 = vsub.f32 1.5, %v1955
        %v1957 = vmul.f32 %v1952, %v1956
        %vm1958 = vweird.f32 %v1864
        %vm1959 = vweird.f32 %v1952
        %vm1960 = vmor %vm1958, %vm1959
        %v1961 = vsel %vm1960, %v1952, %v1957
        %v1962 = vrsqrt.pop %v1865
        %v1963 = vmul.f32 %v1962, %v1865
        %v1964 = vmul.f32 %v1963, %v1962
        %v1965 = vmul.f32 0.5, %v1964
        %v1966 = vsub.f32 1.5, %v1965
        %v1967 = vmul.f32 %v1962, %v1966
        %vm1968 = vweird.f32 %v1865
        %vm1969 = vweird.f32 %v1962
        %vm1970 = vmor %vm1968, %vm1969
        %v1971 = vsel %vm1970, %v1962, %v1967
        %v1972 = vrsqrt.pop %v1866
        %v1973 = vmul.f32 %v1972, %v1866
        %v1974 = vmul.f32 %v1973, %v1972
        %v1975 = vmul.f32 0.5, %v1974
        %v1976 = vsub.f32 1.5, %v1975
        %v1977 = vmul.f32 %v1972, %v1976
        %vm1978 = vweird.f32 %v1866
        %vm1979 = vweird.f32 %v1972
        %vm1980 = vmor %vm1978, %vm1979
        %v1981 = vsel %vm1980, %v1972, %v1977
        %v1982 = vrsqrt.pop %v1867
        %v1983 = vmul.f32 %v1982, %v1867
        %v1984 = vmul.f32 %v1983, %v1982
        %v1985 = vmul.f32 0.5, %v1984
        %v1986 = vsub.f32 1.5, %v1985
        %v1987 = vmul.f32 %v1982, %v1986
        %vm1988 = vweird.f32 %v1867
        %vm1989 = vweird.f32 %v1982
        %vm1990 = vmor %vm1988, %vm1989
        %v1991 = vsel %vm1990, %v1982, %v1987
        %v1992 = vrsqrt.pop %v1868
        %v1993 = vmul.f32 %v1992, %v1868
        %v1994 = vmul.f32 %v1993, %v1992
        %v1995 = vmul.f32 0.5, %v1994
        %v1996 = vsub.f32 1.5, %v1995
        %v1997 = vmul.f32 %v1992, %v1996
        %vm1998 = vweird.f32 %v1868
        %vm1999 = vweird.f32 %v1992
        %vm2000 = vmor %vm1998, %vm1999
        %v2001 = vsel %vm2000, %v1992, %v1997
        %v2002 = vrsqrt.pop %v1869
        %v2003 = vmul.f32 %v2002, %v1869
        %v2004 = vmul.f32 %v2003, %v2002
        %v2005 = vmul.f32 0.5, %v2004
        %v2006 = vsub.f32 1.5, %v2005
        %v2007 = vmul.f32 %v2002, %v2006
        %vm2008 = vweird.f32 %v1869
        %vm2009 = vweird.f32 %v2002
        %vm2010 = vmor %vm2008, %vm2009
        %v2011 = vsel %vm2010, %v2002, %v2007
        %v2012 = vrsqrt.pop %v1870
        %v2013 = vmul.f32 %v2012, %v1870
        %v2014 = vmul.f32 %v2013, %v2012
        %v2015 = vmul.f32 0.5, %v2014
        %v2016 = vsub.f32 1.5, %v2015
        %v2017 = vmul.f32 %v2012, %v2016
        %vm2018 = vweird.f32 %v1870
        %vm2019 = vweird.f32 %v2012
        %vm2020 = vmor %vm2018, %vm2019
        %v2021 = vsel %vm2020, %v2012, %v2017
        %v2022 = vrsqrt.pop %v1871
        %v2023 = vmul.f32 %v2022, %v1871
        %v2024 = vmul.f32 %v2023, %v2022
        %v2025 = vmul.f32 0.5, %v2024
        %v2026 = vsub.f32 1.5, %v2025
        %v2027 = vmul.f32 %v2022, %v2026
        %vm2028 = vweird.f32 %v1871
        %vm2029 = vweird.f32 %v2022
        %vm2030 = vmor %vm2028, %vm2029
        %v2031 = vsel %vm2030, %v2022, %v2027
        %v2032 = vmul.f32 %v1840, %v1881
        %v2033 = vmul.f32 %v1841, %v1891
        %v2034 = vmul.f32 %v1842, %v1901
        %v2035 = vmul.f32 %v1843, %v1911
        %v2036 = vmul.f32 %v1844, %v1921
        %v2037 = vmul.f32 %v1845, %v1931
        %v2038 = vmul.f32 %v1846, %v1941
        %v2039 = vmul.f32 %v1847, %v1951
        %v2040 = vmul.f32 %v1848, %v1961
        %v2041 = vmul.f32 %v1849, %v1971
        %v2042 = vmul.f32 %v1850, %v1981
        %v2043 = vmul.f32 %v1851, %v1991
        %v2044 = vmul.f32 %v1852, %v2001
        %v2045 = vmul.f32 %v1853, %v2011
        %v2046 = vmul.f32 %v1854, %v2021
        %v2047 = vmul.f32 %v1855, %v2031
        %v2049 = vperm.slane %v1687, 0
        %v2051 = vmul.f32 %v2032, %v2049
        %v2052 = vmul.f32 %v2033, %v2049
        %v2053 = vmul.f32 %v2034, %v2049
        %v2054 = vmul.f32 %v2035, %v2049
        %v2055 = vmul.f32 %v2036, %v2049
        %v2056 = vmul.f32 %v2037, %v2049
        %v2057 = vmul.f32 %v2038, %v2049
        %v2058 = vmul.f32 %v2039, %v2049
        %v2059 = vmul.f32 %v2040, %v2049
        %v2060 = vmul.f32 %v2041, %v2049
        %v2061 = vmul.f32 %v2042, %v2049
        %v2062 = vmul.f32 %v2043, %v2049
        %v2063 = vmul.f32 %v2044, %v2049
        %v2064 = vmul.f32 %v2045, %v2049
        %v2065 = vmul.f32 %v2046, %v2049
        %v2066 = vmul.f32 %v2047, %v2049
        %v2068 = vperm.slane %v1688, 0
        %v2070 = vadd.f32 %v2051, %v2068
        %v2071 = vadd.f32 %v2052, %v2068
        %v2072 = vadd.f32 %v2053, %v2068
        %v2073 = vadd.f32 %v2054, %v2068
        %v2074 = vadd.f32 %v2055, %v2068
        %v2075 = vadd.f32 %v2056, %v2068
        %v2076 = vadd.f32 %v2057, %v2068
        %v2077 = vadd.f32 %v2058, %v2068
        %v2078 = vadd.f32 %v2059, %v2068
        %v2079 = vadd.f32 %v2060, %v2068
        %v2080 = vadd.f32 %v2061, %v2068
        %v2081 = vadd.f32 %v2062, %v2068
        %v2082 = vadd.f32 %v2063, %v2068
        %v2083 = vadd.f32 %v2064, %v2068
        %v2084 = vadd.f32 %v2065, %v2068
        %v2085 = vadd.f32 %v2066, %v2068
        %v2086 = vpack.c.bf16 %v2071, %v2070
        %v2087 = vpack.c.bf16 %v2073, %v2072
        %v2088 = vpack.c.bf16 %v2075, %v2074
        %v2089 = vpack.c.bf16 %v2077, %v2076
        %v2090 = vpack.c.bf16 %v2079, %v2078
        %v2091 = vpack.c.bf16 %v2081, %v2080
        %v2092 = vpack.c.bf16 %v2083, %v2082
        %v2093 = vpack.c.bf16 %v2085, %v2084
        %v2094 = vld [vmem:[%s717] sm:$0xff]
        %v2095 = vld [vmem:[%s717 + $0x8] sm:$0xff]
        %v2096 = vld [vmem:[%s717 + $0x10] sm:$0xff]
        %v2097 = vld [vmem:[%s717 + $0x18] sm:$0xff]
        %v2098 = vld [vmem:[%s717 + $0x20] sm:$0xff]
        %v2099 = vld [vmem:[%s717 + $0x28] sm:$0xff]
        %v2100 = vld [vmem:[%s717 + $0x30] sm:$0xff]
        %v2101 = vld [vmem:[%s717 + $0x38] sm:$0xff]
        %v2102 = vld [vmem:[%s717 + $0x40] sm:$0xff]
        %v2103 = vld [vmem:[%s717 + $0x48] sm:$0xff]
        %v2104 = vld [vmem:[%s717 + $0x50] sm:$0xff]
        %v2105 = vld [vmem:[%s717 + $0x58] sm:$0xff]
        %v2106 = vld [vmem:[%s717 + $0x60] sm:$0xff]
        %v2107 = vld [vmem:[%s717 + $0x68] sm:$0xff]
        %v2108 = vld [vmem:[%s717 + $0x70] sm:$0xff]
        %v2109 = vld [vmem:[%s717 + $0x78] sm:$0xff]
        %v2110 = vld [vmem:[%s826] sm:$0x3]
        %v2112 = vperm.slane %v2110, 0
        %v2113 = vperm.slane %v2110, 1
        %v2132 = vunpack.c.l.b16 %v2094
        %v2133 = vunpack.c.h.b16 %v2094
        %v2134 = vunpack.c.l.b16 %v2095
        %v2135 = vunpack.c.h.b16 %v2095
        %v2136 = vunpack.c.l.b16 %v2096
        %v2137 = vunpack.c.h.b16 %v2096
        %v2138 = vunpack.c.l.b16 %v2097
        %v2139 = vunpack.c.h.b16 %v2097
        %v2140 = vunpack.c.l.b16 %v2098
        %v2141 = vunpack.c.h.b16 %v2098
        %v2142 = vunpack.c.l.b16 %v2099
        %v2143 = vunpack.c.h.b16 %v2099
        %v2144 = vunpack.c.l.b16 %v2100
        %v2145 = vunpack.c.h.b16 %v2100
        %v2146 = vunpack.c.l.b16 %v2101
        %v2147 = vunpack.c.h.b16 %v2101
        %v2148 = vunpack.c.l.b16 %v2102
        %v2149 = vunpack.c.h.b16 %v2102
        %v2150 = vunpack.c.l.b16 %v2103
        %v2151 = vunpack.c.h.b16 %v2103
        %v2152 = vunpack.c.l.b16 %v2104
        %v2153 = vunpack.c.h.b16 %v2104
        %v2154 = vunpack.c.l.b16 %v2105
        %v2155 = vunpack.c.h.b16 %v2105
        %v2156 = vunpack.c.l.b16 %v2106
        %v2157 = vunpack.c.h.b16 %v2106
        %v2158 = vunpack.c.l.b16 %v2107
        %v2159 = vunpack.c.h.b16 %v2107
        %v2160 = vunpack.c.l.b16 %v2108
        %v2161 = vunpack.c.h.b16 %v2108
        %v2162 = vunpack.c.l.b16 %v2109
        %v2163 = vunpack.c.h.b16 %v2109
        %v2164 = vpack.c.b16 %v2134, %v2132
        %v2165 = vpack.c.b16 %v2135, %v2133
        %v2166 = vpack.c.b16 %v2138, %v2136
        %v2167 = vpack.c.b16 %v2139, %v2137
        %v2168 = vpack.c.b16 %v2142, %v2140
        %v2169 = vpack.c.b16 %v2143, %v2141
        %v2170 = vpack.c.b16 %v2146, %v2144
        %v2171 = vpack.c.b16 %v2147, %v2145
        %v2172 = vpack.c.b16 %v2150, %v2148
        %v2173 = vpack.c.b16 %v2151, %v2149
        %v2174 = vpack.c.b16 %v2154, %v2152
        %v2175 = vpack.c.b16 %v2155, %v2153
        %v2176 = vpack.c.b16 %v2158, %v2156
        %v2177 = vpack.c.b16 %v2159, %v2157
        %v2178 = vpack.c.b16 %v2162, %v2160
        %v2179 = vpack.c.b16 %v2163, %v2161
        %2196 = vmatpush.bf16.msra.mxu0 %v2178
        %2197 = vmatpush.bf16.msra.mxu0 %v2176
        %2198 = vmatpush.bf16.msra.mxu0 %v2174
        %2199 = vmatpush.bf16.msra.mxu0 %v2172
        %2200 = vmatpush.bf16.msra.mxu0 %v2170
        %2201 = vmatpush.bf16.msra.mxu0 %v2168
        %2202 = vmatpush.bf16.msra.mxu0 %v2166
        %2203 = vmatpush.bf16.msra.mxu0 %v2164
        %2204 = vmatmul.bf16.gmra.mxu0 %v2086
        %v2205 = vpop.f32.mrf.mxu0
        %v2206 = vadd.f32 %v2112, %v2205
        %v2207 = vpop.f32.mrf.mxu0
        %v2208 = vadd.f32 %v2112, %v2207
        %2209 = vmatmul.bf16.gmra.mxu0 %v2087
        %v2210 = vpop.f32.mrf.mxu0
        %v2211 = vadd.f32 %v2112, %v2210
        %v2212 = vpop.f32.mrf.mxu0
        %v2213 = vadd.f32 %v2112, %v2212
        %2214 = vmatmul.bf16.gmra.mxu0 %v2088
        %v2215 = vpop.f32.mrf.mxu0
        %v2216 = vadd.f32 %v2112, %v2215
        %v2217 = vpop.f32.mrf.mxu0
        %v2218 = vadd.f32 %v2112, %v2217
        %2219 = vmatmul.bf16.gmra.mxu0 %v2089
        %v2220 = vpop.f32.mrf.mxu0
        %v2221 = vadd.f32 %v2112, %v2220
        %v2222 = vpop.f32.mrf.mxu0
        %v2223 = vadd.f32 %v2112, %v2222
        %2224 = vmatmul.bf16.gmra.mxu0 %v2090
        %v2225 = vpop.f32.mrf.mxu0
        %v2226 = vadd.f32 %v2112, %v2225
        %v2227 = vpop.f32.mrf.mxu0
        %v2228 = vadd.f32 %v2112, %v2227
        %2229 = vmatmul.bf16.gmra.mxu0 %v2091
        %v2230 = vpop.f32.mrf.mxu0
        %v2231 = vadd.f32 %v2112, %v2230
        %v2232 = vpop.f32.mrf.mxu0
        %v2233 = vadd.f32 %v2112, %v2232
        %2234 = vmatmul.bf16.gmra.mxu0 %v2092
        %v2235 = vpop.f32.mrf.mxu0
        %v2236 = vadd.f32 %v2112, %v2235
        %v2237 = vpop.f32.mrf.mxu0
        %v2238 = vadd.f32 %v2112, %v2237
        %2239 = vmatmul.bf16.gmra.mxu0 %v2093
        %v2240 = vpop.f32.mrf.mxu0
        %v2241 = vadd.f32 %v2112, %v2240
        %v2242 = vpop.f32.mrf.mxu0
        %v2243 = vadd.f32 %v2112, %v2242
        %2244 = vdwg.mxu0
        %2245 = vmatpush.bf16.msra.mxu0 %v2179
        %2246 = vmatpush.bf16.msra.mxu0 %v2177
        %2247 = vmatpush.bf16.msra.mxu0 %v2175
        %2248 = vmatpush.bf16.msra.mxu0 %v2173
        %2249 = vmatpush.bf16.msra.mxu0 %v2171
        %2250 = vmatpush.bf16.msra.mxu0 %v2169
        %2251 = vmatpush.bf16.msra.mxu0 %v2167
        %2252 = vmatpush.bf16.msra.mxu0 %v2165
        %2253 = vmatmul.bf16.gmra.mxu0 %v2086
        %v2254 = vpop.f32.mrf.mxu0
        %v2255 = vadd.f32 %v2113, %v2254
        %v2256 = vpop.f32.mrf.mxu0
        %v2257 = vadd.f32 %v2113, %v2256
        %2258 = vmatmul.bf16.gmra.mxu0 %v2087
        %v2259 = vpop.f32.mrf.mxu0
        %v2260 = vadd.f32 %v2113, %v2259
        %v2261 = vpop.f32.mrf.mxu0
        %v2262 = vadd.f32 %v2113, %v2261
        %2263 = vmatmul.bf16.gmra.mxu0 %v2088
        %v2264 = vpop.f32.mrf.mxu0
        %v2265 = vadd.f32 %v2113, %v2264
        %v2266 = vpop.f32.mrf.mxu0
        %v2267 = vadd.f32 %v2113, %v2266
        %2268 = vmatmul.bf16.gmra.mxu0 %v2089
        %v2269 = vpop.f32.mrf.mxu0
        %v2270 = vadd.f32 %v2113, %v2269
        %v2271 = vpop.f32.mrf.mxu0
        %v2272 = vadd.f32 %v2113, %v2271
        %2273 = vmatmul.bf16.gmra.mxu0 %v2090
        %v2274 = vpop.f32.mrf.mxu0
        %v2275 = vadd.f32 %v2113, %v2274
        %v2276 = vpop.f32.mrf.mxu0
        %v2277 = vadd.f32 %v2113, %v2276
        %2278 = vmatmul.bf16.gmra.mxu0 %v2091
        %v2279 = vpop.f32.mrf.mxu0
        %v2280 = vadd.f32 %v2113, %v2279
        %v2281 = vpop.f32.mrf.mxu0
        %v2282 = vadd.f32 %v2113, %v2281
        %2283 = vmatmul.bf16.gmra.mxu0 %v2092
        %v2284 = vpop.f32.mrf.mxu0
        %v2285 = vadd.f32 %v2113, %v2284
        %v2286 = vpop.f32.mrf.mxu0
        %v2287 = vadd.f32 %v2113, %v2286
        %2288 = vmatmul.bf16.gmra.mxu0 %v2093
        %v2289 = vpop.f32.mrf.mxu0
        %v2290 = vadd.f32 %v2113, %v2289
        %v2291 = vpop.f32.mrf.mxu0
        %v2292 = vadd.f32 %v2113, %v2291
        %2293 = vdwg.mxu0
        %v2294 = vmax.f32 %v2206, 0.0
        %v2295 = vmax.f32 %v2255, 0.0
        %v2296 = vmax.f32 %v2208, 0.0
        %v2297 = vmax.f32 %v2257, 0.0
        %v2298 = vmax.f32 %v2211, 0.0
        %v2299 = vmax.f32 %v2260, 0.0
        %v2300 = vmax.f32 %v2213, 0.0
        %v2301 = vmax.f32 %v2262, 0.0
        %v2302 = vmax.f32 %v2216, 0.0
        %v2303 = vmax.f32 %v2265, 0.0
        %v2304 = vmax.f32 %v2218, 0.0
        %v2305 = vmax.f32 %v2267, 0.0
        %v2306 = vmax.f32 %v2221, 0.0
        %v2307 = vmax.f32 %v2270, 0.0
        %v2308 = vmax.f32 %v2223, 0.0
        %v2309 = vmax.f32 %v2272, 0.0
        %v2310 = vmax.f32 %v2226, 0.0
        %v2311 = vmax.f32 %v2275, 0.0
        %v2312 = vmax.f32 %v2228, 0.0
        %v2313 = vmax.f32 %v2277, 0.0
        %v2314 = vmax.f32 %v2231, 0.0
        %v2315 = vmax.f32 %v2280, 0.0
        %v2316 = vmax.f32 %v2233, 0.0
        %v2317 = vmax.f32 %v2282, 0.0
        %v2318 = vmax.f32 %v2236, 0.0
        %v2319 = vmax.f32 %v2285, 0.0
        %v2320 = vmax.f32 %v2238, 0.0
        %v2321 = vmax.f32 %v2287, 0.0
        %v2322 = vmax.f32 %v2241, 0.0
        %v2323 = vmax.f32 %v2290, 0.0
        %v2324 = vmax.f32 %v2243, 0.0
        %v2325 = vmax.f32 %v2292, 0.0
        %v2326 = vpack.c.bf16 %v2296, %v2294
        %v2327 = vpack.c.bf16 %v2297, %v2295
        %v2328 = vpack.c.bf16 %v2300, %v2298
        %v2329 = vpack.c.bf16 %v2301, %v2299
        %v2330 = vpack.c.bf16 %v2304, %v2302
        %v2331 = vpack.c.bf16 %v2305, %v2303
        %v2332 = vpack.c.bf16 %v2308, %v2306
        %v2333 = vpack.c.bf16 %v2309, %v2307
        %v2334 = vpack.c.bf16 %v2312, %v2310
        %v2335 = vpack.c.bf16 %v2313, %v2311
        %v2336 = vpack.c.bf16 %v2316, %v2314
        %v2337 = vpack.c.bf16 %v2317, %v2315
        %v2338 = vpack.c.bf16 %v2320, %v2318
        %v2339 = vpack.c.bf16 %v2321, %v2319
        %v2340 = vpack.c.bf16 %v2324, %v2322
        %v2341 = vpack.c.bf16 %v2325, %v2323
        %v2342 = vld [vmem:[%s727] sm:$0xf]
        %v2343 = vld [vmem:[%s727 + $0x4] sm:$0xf]
        %v2344 = vld [vmem:[%s727 + $0x8] sm:$0xf]
        %v2345 = vld [vmem:[%s727 + $0xc] sm:$0xf]
        %v2346 = vld [vmem:[%s727 + $0x10] sm:$0xf]
        %v2347 = vld [vmem:[%s727 + $0x14] sm:$0xf]
        %v2348 = vld [vmem:[%s727 + $0x18] sm:$0xf]
        %v2349 = vld [vmem:[%s727 + $0x1c] sm:$0xf]
        %v2350 = vld [vmem:[%s727 + $0x20] sm:$0xf]
        %v2351 = vld [vmem:[%s727 + $0x24] sm:$0xf]
        %v2352 = vld [vmem:[%s727 + $0x28] sm:$0xf]
        %v2353 = vld [vmem:[%s727 + $0x2c] sm:$0xf]
        %v2354 = vld [vmem:[%s727 + $0x30] sm:$0xf]
        %v2355 = vld [vmem:[%s727 + $0x34] sm:$0xf]
        %v2356 = vld [vmem:[%s727 + $0x38] sm:$0xf]
        %v2357 = vld [vmem:[%s727 + $0x3c] sm:$0xf]
        %v2358 = vld [vmem:[%s727 + $0x40] sm:$0xf]
        %v2359 = vld [vmem:[%s727 + $0x44] sm:$0xf]
        %v2360 = vld [vmem:[%s727 + $0x48] sm:$0xf]
        %v2361 = vld [vmem:[%s727 + $0x4c] sm:$0xf]
        %v2362 = vld [vmem:[%s727 + $0x50] sm:$0xf]
        %v2363 = vld [vmem:[%s727 + $0x54] sm:$0xf]
        %v2364 = vld [vmem:[%s727 + $0x58] sm:$0xf]
        %v2365 = vld [vmem:[%s727 + $0x5c] sm:$0xf]
        %v2366 = vld [vmem:[%s727 + $0x60] sm:$0xf]
        %v2367 = vld [vmem:[%s727 + $0x64] sm:$0xf]
        %v2368 = vld [vmem:[%s727 + $0x68] sm:$0xf]
        %v2369 = vld [vmem:[%s727 + $0x6c] sm:$0xf]
        %v2370 = vld [vmem:[%s727 + $0x70] sm:$0xf]
        %v2371 = vld [vmem:[%s727 + $0x74] sm:$0xf]
        %v2372 = vld [vmem:[%s727 + $0x78] sm:$0xf]
        %v2373 = vld [vmem:[%s727 + $0x7c] sm:$0xf]
        %v2374 = vld [vmem:[%s829] sm:$0x1]
        %v2376 = vperm.slane %v2374, 0
        %v2410 = vunpack.c.l.b16 %v2342
        %v2411 = vunpack.c.l.b16 %v2343
        %v2412 = vunpack.c.l.b16 %v2344
        %v2413 = vunpack.c.l.b16 %v2345
        %v2414 = vunpack.c.l.b16 %v2346
        %v2415 = vunpack.c.l.b16 %v2347
        %v2416 = vunpack.c.l.b16 %v2348
        %v2417 = vunpack.c.l.b16 %v2349
        %v2418 = vunpack.c.l.b16 %v2350
        %v2419 = vunpack.c.l.b16 %v2351
        %v2420 = vunpack.c.l.b16 %v2352
        %v2421 = vunpack.c.l.b16 %v2353
        %v2422 = vunpack.c.l.b16 %v2354
        %v2423 = vunpack.c.l.b16 %v2355
        %v2424 = vunpack.c.l.b16 %v2356
        %v2425 = vunpack.c.l.b16 %v2357
        %v2426 = vunpack.c.l.b16 %v2358
        %v2427 = vunpack.c.l.b16 %v2359
        %v2428 = vunpack.c.l.b16 %v2360
        %v2429 = vunpack.c.l.b16 %v2361
        %v2430 = vunpack.c.l.b16 %v2362
        %v2431 = vunpack.c.l.b16 %v2363
        %v2432 = vunpack.c.l.b16 %v2364
        %v2433 = vunpack.c.l.b16 %v2365
        %v2434 = vunpack.c.l.b16 %v2366
        %v2435 = vunpack.c.l.b16 %v2367
        %v2436 = vunpack.c.l.b16 %v2368
        %v2437 = vunpack.c.l.b16 %v2369
        %v2438 = vunpack.c.l.b16 %v2370
        %v2439 = vunpack.c.l.b16 %v2371
        %v2440 = vunpack.c.l.b16 %v2372
        %v2441 = vunpack.c.l.b16 %v2373
        %v2442 = vpack.c.b16 %v2411, %v2410
        %v2443 = vpack.c.b16 %v2413, %v2412
        %v2444 = vpack.c.b16 %v2415, %v2414
        %v2445 = vpack.c.b16 %v2417, %v2416
        %v2446 = vpack.c.b16 %v2419, %v2418
        %v2447 = vpack.c.b16 %v2421, %v2420
        %v2448 = vpack.c.b16 %v2423, %v2422
        %v2449 = vpack.c.b16 %v2425, %v2424
        %v2450 = vpack.c.b16 %v2427, %v2426
        %v2451 = vpack.c.b16 %v2429, %v2428
        %v2452 = vpack.c.b16 %v2431, %v2430
        %v2453 = vpack.c.b16 %v2433, %v2432
        %v2454 = vpack.c.b16 %v2435, %v2434
        %v2455 = vpack.c.b16 %v2437, %v2436
        %v2456 = vpack.c.b16 %v2439, %v2438
        %v2457 = vpack.c.b16 %v2441, %v2440
        %2474 = vmatpush.bf16.msra.mxu0 %v2449
        %2475 = vmatpush.bf16.msra.mxu0 %v2448
        %2476 = vmatpush.bf16.msra.mxu0 %v2447
        %2477 = vmatpush.bf16.msra.mxu0 %v2446
        %2478 = vmatpush.bf16.msra.mxu0 %v2445
        %2479 = vmatpush.bf16.msra.mxu0 %v2444
        %2480 = vmatpush.bf16.msra.mxu0 %v2443
        %2481 = vmatpush.bf16.msra.mxu0 %v2442
        %2482 = vmatmul.bf16.gmra.mxu0 %v2326
        %v2483 = vpop.f32.mrf.mxu0
        %v2484 = vadd.f32 %v2376, %v2483
        %v2485 = vpop.f32.mrf.mxu0
        %v2486 = vadd.f32 %v2376, %v2485
        %2487 = vmatmul.bf16.gmra.mxu0 %v2328
        %v2488 = vpop.f32.mrf.mxu0
        %v2489 = vadd.f32 %v2376, %v2488
        %v2490 = vpop.f32.mrf.mxu0
        %v2491 = vadd.f32 %v2376, %v2490
        %2492 = vmatmul.bf16.gmra.mxu0 %v2330
        %v2493 = vpop.f32.mrf.mxu0
        %v2494 = vadd.f32 %v2376, %v2493
        %v2495 = vpop.f32.mrf.mxu0
        %v2496 = vadd.f32 %v2376, %v2495
        %2497 = vmatmul.bf16.gmra.mxu0 %v2332
        %v2498 = vpop.f32.mrf.mxu0
        %v2499 = vadd.f32 %v2376, %v2498
        %v2500 = vpop.f32.mrf.mxu0
        %v2501 = vadd.f32 %v2376, %v2500
        %2502 = vmatmul.bf16.gmra.mxu0 %v2334
        %v2503 = vpop.f32.mrf.mxu0
        %v2504 = vadd.f32 %v2376, %v2503
        %v2505 = vpop.f32.mrf.mxu0
        %v2506 = vadd.f32 %v2376, %v2505
        %2507 = vmatmul.bf16.gmra.mxu0 %v2336
        %v2508 = vpop.f32.mrf.mxu0
        %v2509 = vadd.f32 %v2376, %v2508
        %v2510 = vpop.f32.mrf.mxu0
        %v2511 = vadd.f32 %v2376, %v2510
        %2512 = vmatmul.bf16.gmra.mxu0 %v2338
        %v2513 = vpop.f32.mrf.mxu0
        %v2514 = vadd.f32 %v2376, %v2513
        %v2515 = vpop.f32.mrf.mxu0
        %v2516 = vadd.f32 %v2376, %v2515
        %2517 = vmatmul.bf16.gmra.mxu0 %v2340
        %v2518 = vpop.f32.mrf.mxu0
        %v2519 = vadd.f32 %v2376, %v2518
        %v2520 = vpop.f32.mrf.mxu0
        %v2521 = vadd.f32 %v2376, %v2520
        %2522 = vdwg.mxu0
        %2523 = vmatpush.bf16.msra.mxu0 %v2457
        %2524 = vmatpush.bf16.msra.mxu0 %v2456
        %2525 = vmatpush.bf16.msra.mxu0 %v2455
        %2526 = vmatpush.bf16.msra.mxu0 %v2454
        %2527 = vmatpush.bf16.msra.mxu0 %v2453
        %2528 = vmatpush.bf16.msra.mxu0 %v2452
        %2529 = vmatpush.bf16.msra.mxu0 %v2451
        %2530 = vmatpush.bf16.msra.mxu0 %v2450
        %2531 = vmatmul.bf16.gmra.mxu0 %v2327
        %v2532 = vpop.f32.mrf.mxu0
        %v2533 = vadd.f32 %v2484, %v2532
        %v2534 = vpop.f32.mrf.mxu0
        %v2535 = vadd.f32 %v2486, %v2534
        %2536 = vmatmul.bf16.gmra.mxu0 %v2329
        %v2537 = vpop.f32.mrf.mxu0
        %v2538 = vadd.f32 %v2489, %v2537
        %v2539 = vpop.f32.mrf.mxu0
        %v2540 = vadd.f32 %v2491, %v2539
        %2541 = vmatmul.bf16.gmra.mxu0 %v2331
        %v2542 = vpop.f32.mrf.mxu0
        %v2543 = vadd.f32 %v2494, %v2542
        %v2544 = vpop.f32.mrf.mxu0
        %v2545 = vadd.f32 %v2496, %v2544
        %2546 = vmatmul.bf16.gmra.mxu0 %v2333
        %v2547 = vpop.f32.mrf.mxu0
        %v2548 = vadd.f32 %v2499, %v2547
        %v2549 = vpop.f32.mrf.mxu0
        %v2550 = vadd.f32 %v2501, %v2549
        %2551 = vmatmul.bf16.gmra.mxu0 %v2335
        %v2552 = vpop.f32.mrf.mxu0
        %v2553 = vadd.f32 %v2504, %v2552
        %v2554 = vpop.f32.mrf.mxu0
        %v2555 = vadd.f32 %v2506, %v2554
        %2556 = vmatmul.bf16.gmra.mxu0 %v2337
        %v2557 = vpop.f32.mrf.mxu0
        %v2558 = vadd.f32 %v2509, %v2557
        %v2559 = vpop.f32.mrf.mxu0
        %v2560 = vadd.f32 %v2511, %v2559
        %2561 = vmatmul.bf16.gmra.mxu0 %v2339
        %v2562 = vpop.f32.mrf.mxu0
        %v2563 = vadd.f32 %v2514, %v2562
        %v2564 = vpop.f32.mrf.mxu0
        %v2565 = vadd.f32 %v2516, %v2564
        %2566 = vmatmul.bf16.gmra.mxu0 %v2341
        %v2567 = vpop.f32.mrf.mxu0
        %v2568 = vadd.f32 %v2519, %v2567
        %v2569 = vpop.f32.mrf.mxu0
        %v2570 = vadd.f32 %v2521, %v2569
        %2571 = vdwg.mxu0
        %v2572 = vadd.f32 %v2070, %v2533
        %v2573 = vadd.f32 %v2071, %v2535
        %v2574 = vadd.f32 %v2072, %v2538
        %v2575 = vadd.f32 %v2073, %v2540
        %v2576 = vadd.f32 %v2074, %v2543
        %v2577 = vadd.f32 %v2075, %v2545
        %v2578 = vadd.f32 %v2076, %v2548
        %v2579 = vadd.f32 %v2077, %v2550
        %v2580 = vadd.f32 %v2078, %v2553
        %v2581 = vadd.f32 %v2079, %v2555
        %v2582 = vadd.f32 %v2080, %v2558
        %v2583 = vadd.f32 %v2081, %v2560
        %v2584 = vadd.f32 %v2082, %v2563
        %v2585 = vadd.f32 %v2083, %v2565
        %v2586 = vadd.f32 %v2084, %v2568
        %v2587 = vadd.f32 %v2085, %v2570
        %v2588 = vld [vmem:[%s736] sm:$0x1]
        %v2589 = vld [vmem:[%s832] sm:$0x1]
        %2590 = vadd.xlane.f32.xlu0 %v2572
        %v2591 = vpop.xlane.xlu0 %2590
        %2592 = vadd.xlane.f32.xlu0 %v2573
        %v2593 = vpop.xlane.xlu0 %2592
        %2594 = vadd.xlane.f32.xlu0 %v2574
        %v2595 = vpop.xlane.xlu0 %2594
        %2596 = vadd.xlane.f32.xlu0 %v2575
        %v2597 = vpop.xlane.xlu0 %2596
        %2598 = vadd.xlane.f32.xlu0 %v2576
        %v2599 = vpop.xlane.xlu0 %2598
        %2600 = vadd.xlane.f32.xlu0 %v2577
        %v2601 = vpop.xlane.xlu0 %2600
        %2602 = vadd.xlane.f32.xlu0 %v2578
        %v2603 = vpop.xlane.xlu0 %2602
        %2604 = vadd.xlane.f32.xlu0 %v2579
        %v2605 = vpop.xlane.xlu0 %2604
        %2606 = vadd.xlane.f32.xlu0 %v2580
        %v2607 = vpop.xlane.xlu0 %2606
        %2608 = vadd.xlane.f32.xlu0 %v2581
        %v2609 = vpop.xlane.xlu0 %2608
        %2610 = vadd.xlane.f32.xlu0 %v2582
        %v2611 = vpop.xlane.xlu0 %2610
        %2612 = vadd.xlane.f32.xlu0 %v2583
        %v2613 = vpop.xlane.xlu0 %2612
        %2614 = vadd.xlane.f32.xlu0 %v2584
        %v2615 = vpop.xlane.xlu0 %2614
        %2616 = vadd.xlane.f32.xlu0 %v2585
        %v2617 = vpop.xlane.xlu0 %2616
        %2618 = vadd.xlane.f32.xlu0 %v2586
        %v2619 = vpop.xlane.xlu0 %2618
        %2620 = vadd.xlane.f32.xlu0 %v2587
        %v2621 = vpop.xlane.xlu0 %2620
        %v2622 = vmul.f32 %v2591, %v1727
        %v2623 = vmul.f32 %v2593, %v1727
        %v2624 = vmul.f32 %v2595, %v1727
        %v2625 = vmul.f32 %v2597, %v1727
        %v2626 = vmul.f32 %v2599, %v1727
        %v2627 = vmul.f32 %v2601, %v1727
        %v2628 = vmul.f32 %v2603, %v1727
        %v2629 = vmul.f32 %v2605, %v1727
        %v2630 = vmul.f32 %v2607, %v1727
        %v2631 = vmul.f32 %v2609, %v1727
        %v2632 = vmul.f32 %v2611, %v1727
        %v2633 = vmul.f32 %v2613, %v1727
        %v2634 = vmul.f32 %v2615, %v1727
        %v2635 = vmul.f32 %v2617, %v1727
        %v2636 = vmul.f32 %v2619, %v1727
        %v2637 = vmul.f32 %v2621, %v1727
        %v2638 = vmul.f32 %v2572, %v2572
        %v2639 = vmul.f32 %v2573, %v2573
        %v2640 = vmul.f32 %v2574, %v2574
        %v2641 = vmul.f32 %v2575, %v2575
        %v2642 = vmul.f32 %v2576, %v2576
        %v2643 = vmul.f32 %v2577, %v2577
        %v2644 = vmul.f32 %v2578, %v2578
        %v2645 = vmul.f32 %v2579, %v2579
        %v2646 = vmul.f32 %v2580, %v2580
        %v2647 = vmul.f32 %v2581, %v2581
        %v2648 = vmul.f32 %v2582, %v2582
        %v2649 = vmul.f32 %v2583, %v2583
        %v2650 = vmul.f32 %v2584, %v2584
        %v2651 = vmul.f32 %v2585, %v2585
        %v2652 = vmul.f32 %v2586, %v2586
        %v2653 = vmul.f32 %v2587, %v2587
        %2654 = vadd.xlane.f32.xlu0 %v2638
        %v2655 = vpop.xlane.xlu0 %2654
        %2656 = vadd.xlane.f32.xlu0 %v2639
        %v2657 = vpop.xlane.xlu0 %2656
        %2658 = vadd.xlane.f32.xlu0 %v2640
        %v2659 = vpop.xlane.xlu0 %2658
        %2660 = vadd.xlane.f32.xlu0 %v2641
        %v2661 = vpop.xlane.xlu0 %2660
        %2662 = vadd.xlane.f32.xlu0 %v2642
        %v2663 = vpop.xlane.xlu0 %2662
        %2664 = vadd.xlane.f32.xlu0 %v2643
        %v2665 = vpop.xlane.xlu0 %2664
        %2666 = vadd.xlane.f32.xlu0 %v2644
        %v2667 = vpop.xlane.xlu0 %2666
        %2668 = vadd.xlane.f32.xlu0 %v2645
        %v2669 = vpop.xlane.xlu0 %2668
        %2670 = vadd.xlane.f32.xlu0 %v2646
        %v2671 = vpop.xlane.xlu0 %2670
        %2672 = vadd.xlane.f32.xlu0 %v2647
        %v2673 = vpop.xlane.xlu0 %2672
        %2674 = vadd.xlane.f32.xlu0 %v2648
        %v2675 = vpop.xlane.xlu0 %2674
        %2676 = vadd.xlane.f32.xlu0 %v2649
        %v2677 = vpop.xlane.xlu0 %2676
        %2678 = vadd.xlane.f32.xlu0 %v2650
        %v2679 = vpop.xlane.xlu0 %2678
        %2680 = vadd.xlane.f32.xlu0 %v2651
        %v2681 = vpop.xlane.xlu0 %2680
        %2682 = vadd.xlane.f32.xlu0 %v2652
        %v2683 = vpop.xlane.xlu0 %2682
        %2684 = vadd.xlane.f32.xlu0 %v2653
        %v2685 = vpop.xlane.xlu0 %2684
        %v2686 = vmul.f32 %v2655, %v1727
        %v2687 = vmul.f32 %v2657, %v1727
        %v2688 = vmul.f32 %v2659, %v1727
        %v2689 = vmul.f32 %v2661, %v1727
        %v2690 = vmul.f32 %v2663, %v1727
        %v2691 = vmul.f32 %v2665, %v1727
        %v2692 = vmul.f32 %v2667, %v1727
        %v2693 = vmul.f32 %v2669, %v1727
        %v2694 = vmul.f32 %v2671, %v1727
        %v2695 = vmul.f32 %v2673, %v1727
        %v2696 = vmul.f32 %v2675, %v1727
        %v2697 = vmul.f32 %v2677, %v1727
        %v2698 = vmul.f32 %v2679, %v1727
        %v2699 = vmul.f32 %v2681, %v1727
        %v2700 = vmul.f32 %v2683, %v1727
        %v2701 = vmul.f32 %v2685, %v1727
        %v2702 = vmul.f32 %v2622, %v2622
        %v2703 = vmul.f32 %v2623, %v2623
        %v2704 = vmul.f32 %v2624, %v2624
        %v2705 = vmul.f32 %v2625, %v2625
        %v2706 = vmul.f32 %v2626, %v2626
        %v2707 = vmul.f32 %v2627, %v2627
        %v2708 = vmul.f32 %v2628, %v2628
        %v2709 = vmul.f32 %v2629, %v2629
        %v2710 = vmul.f32 %v2630, %v2630
        %v2711 = vmul.f32 %v2631, %v2631
        %v2712 = vmul.f32 %v2632, %v2632
        %v2713 = vmul.f32 %v2633, %v2633
        %v2714 = vmul.f32 %v2634, %v2634
        %v2715 = vmul.f32 %v2635, %v2635
        %v2716 = vmul.f32 %v2636, %v2636
        %v2717 = vmul.f32 %v2637, %v2637
        %v2718 = vsub.f32 %v2686, %v2702
        %v2719 = vsub.f32 %v2687, %v2703
        %v2720 = vsub.f32 %v2688, %v2704
        %v2721 = vsub.f32 %v2689, %v2705
        %v2722 = vsub.f32 %v2690, %v2706
        %v2723 = vsub.f32 %v2691, %v2707
        %v2724 = vsub.f32 %v2692, %v2708
        %v2725 = vsub.f32 %v2693, %v2709
        %v2726 = vsub.f32 %v2694, %v2710
        %v2727 = vsub.f32 %v2695, %v2711
        %v2728 = vsub.f32 %v2696, %v2712
        %v2729 = vsub.f32 %v2697, %v2713
        %v2730 = vsub.f32 %v2698, %v2714
        %v2731 = vsub.f32 %v2699, %v2715
        %v2732 = vsub.f32 %v2700, %v2716
        %v2733 = vsub.f32 %v2701, %v2717
        %v2734 = vsub.f32 %v2572, %v2622
        %v2735 = vsub.f32 %v2573, %v2623
        %v2736 = vsub.f32 %v2574, %v2624
        %v2737 = vsub.f32 %v2575, %v2625
        %v2738 = vsub.f32 %v2576, %v2626
        %v2739 = vsub.f32 %v2577, %v2627
        %v2740 = vsub.f32 %v2578, %v2628
        %v2741 = vsub.f32 %v2579, %v2629
        %v2742 = vsub.f32 %v2580, %v2630
        %v2743 = vsub.f32 %v2581, %v2631
        %v2744 = vsub.f32 %v2582, %v2632
        %v2745 = vsub.f32 %v2583, %v2633
        %v2746 = vsub.f32 %v2584, %v2634
        %v2747 = vsub.f32 %v2585, %v2635
        %v2748 = vsub.f32 %v2586, %v2636
        %v2749 = vsub.f32 %v2587, %v2637
        %v2750 = vadd.f32 %v2718, 1e-05
        %v2751 = vadd.f32 %v2719, 1e-05
        %v2752 = vadd.f32 %v2720, 1e-05
        %v2753 = vadd.f32 %v2721, 1e-05
        %v2754 = vadd.f32 %v2722, 1e-05
        %v2755 = vadd.f32 %v2723, 1e-05
        %v2756 = vadd.f32 %v2724, 1e-05
        %v2757 = vadd.f32 %v2725, 1e-05
        %v2758 = vadd.f32 %v2726, 1e-05
        %v2759 = vadd.f32 %v2727, 1e-05
        %v2760 = vadd.f32 %v2728, 1e-05
        %v2761 = vadd.f32 %v2729, 1e-05
        %v2762 = vadd.f32 %v2730, 1e-05
        %v2763 = vadd.f32 %v2731, 1e-05
        %v2764 = vadd.f32 %v2732, 1e-05
        %v2765 = vadd.f32 %v2733, 1e-05
        %v2766 = vrsqrt.pop %v2750
        %v2767 = vmul.f32 %v2766, %v2750
        %v2768 = vmul.f32 %v2767, %v2766
        %v2769 = vmul.f32 0.5, %v2768
        %v2770 = vsub.f32 1.5, %v2769
        %v2771 = vmul.f32 %v2766, %v2770
        %vm2772 = vweird.f32 %v2750
        %vm2773 = vweird.f32 %v2766
        %vm2774 = vmor %vm2772, %vm2773
        %v2775 = vsel %vm2774, %v2766, %v2771
        %v2776 = vrsqrt.pop %v2751
        %v2777 = vmul.f32 %v2776, %v2751
        %v2778 = vmul.f32 %v2777, %v2776
        %v2779 = vmul.f32 0.5, %v2778
        %v2780 = vsub.f32 1.5, %v2779
        %v2781 = vmul.f32 %v2776, %v2780
        %vm2782 = vweird.f32 %v2751
        %vm2783 = vweird.f32 %v2776
        %vm2784 = vmor %vm2782, %vm2783
        %v2785 = vsel %vm2784, %v2776, %v2781
        %v2786 = vrsqrt.pop %v2752
        %v2787 = vmul.f32 %v2786, %v2752
        %v2788 = vmul.f32 %v2787, %v2786
        %v2789 = vmul.f32 0.5, %v2788
        %v2790 = vsub.f32 1.5, %v2789
        %v2791 = vmul.f32 %v2786, %v2790
        %vm2792 = vweird.f32 %v2752
        %vm2793 = vweird.f32 %v2786
        %vm2794 = vmor %vm2792, %vm2793
        %v2795 = vsel %vm2794, %v2786, %v2791
        %v2796 = vrsqrt.pop %v2753
        %v2797 = vmul.f32 %v2796, %v2753
        %v2798 = vmul.f32 %v2797, %v2796
        %v2799 = vmul.f32 0.5, %v2798
        %v2800 = vsub.f32 1.5, %v2799
        %v2801 = vmul.f32 %v2796, %v2800
        %vm2802 = vweird.f32 %v2753
        %vm2803 = vweird.f32 %v2796
        %vm2804 = vmor %vm2802, %vm2803
        %v2805 = vsel %vm2804, %v2796, %v2801
        %v2806 = vrsqrt.pop %v2754
        %v2807 = vmul.f32 %v2806, %v2754
        %v2808 = vmul.f32 %v2807, %v2806
        %v2809 = vmul.f32 0.5, %v2808
        %v2810 = vsub.f32 1.5, %v2809
        %v2811 = vmul.f32 %v2806, %v2810
        %vm2812 = vweird.f32 %v2754
        %vm2813 = vweird.f32 %v2806
        %vm2814 = vmor %vm2812, %vm2813
        %v2815 = vsel %vm2814, %v2806, %v2811
        %v2816 = vrsqrt.pop %v2755
        %v2817 = vmul.f32 %v2816, %v2755
        %v2818 = vmul.f32 %v2817, %v2816
        %v2819 = vmul.f32 0.5, %v2818
        %v2820 = vsub.f32 1.5, %v2819
        %v2821 = vmul.f32 %v2816, %v2820
        %vm2822 = vweird.f32 %v2755
        %vm2823 = vweird.f32 %v2816
        %vm2824 = vmor %vm2822, %vm2823
        %v2825 = vsel %vm2824, %v2816, %v2821
        %v2826 = vrsqrt.pop %v2756
        %v2827 = vmul.f32 %v2826, %v2756
        %v2828 = vmul.f32 %v2827, %v2826
        %v2829 = vmul.f32 0.5, %v2828
        %v2830 = vsub.f32 1.5, %v2829
        %v2831 = vmul.f32 %v2826, %v2830
        %vm2832 = vweird.f32 %v2756
        %vm2833 = vweird.f32 %v2826
        %vm2834 = vmor %vm2832, %vm2833
        %v2835 = vsel %vm2834, %v2826, %v2831
        %v2836 = vrsqrt.pop %v2757
        %v2837 = vmul.f32 %v2836, %v2757
        %v2838 = vmul.f32 %v2837, %v2836
        %v2839 = vmul.f32 0.5, %v2838
        %v2840 = vsub.f32 1.5, %v2839
        %v2841 = vmul.f32 %v2836, %v2840
        %vm2842 = vweird.f32 %v2757
        %vm2843 = vweird.f32 %v2836
        %vm2844 = vmor %vm2842, %vm2843
        %v2845 = vsel %vm2844, %v2836, %v2841
        %v2846 = vrsqrt.pop %v2758
        %v2847 = vmul.f32 %v2846, %v2758
        %v2848 = vmul.f32 %v2847, %v2846
        %v2849 = vmul.f32 0.5, %v2848
        %v2850 = vsub.f32 1.5, %v2849
        %v2851 = vmul.f32 %v2846, %v2850
        %vm2852 = vweird.f32 %v2758
        %vm2853 = vweird.f32 %v2846
        %vm2854 = vmor %vm2852, %vm2853
        %v2855 = vsel %vm2854, %v2846, %v2851
        %v2856 = vrsqrt.pop %v2759
        %v2857 = vmul.f32 %v2856, %v2759
        %v2858 = vmul.f32 %v2857, %v2856
        %v2859 = vmul.f32 0.5, %v2858
        %v2860 = vsub.f32 1.5, %v2859
        %v2861 = vmul.f32 %v2856, %v2860
        %vm2862 = vweird.f32 %v2759
        %vm2863 = vweird.f32 %v2856
        %vm2864 = vmor %vm2862, %vm2863
        %v2865 = vsel %vm2864, %v2856, %v2861
        %v2866 = vrsqrt.pop %v2760
        %v2867 = vmul.f32 %v2866, %v2760
        %v2868 = vmul.f32 %v2867, %v2866
        %v2869 = vmul.f32 0.5, %v2868
        %v2870 = vsub.f32 1.5, %v2869
        %v2871 = vmul.f32 %v2866, %v2870
        %vm2872 = vweird.f32 %v2760
        %vm2873 = vweird.f32 %v2866
        %vm2874 = vmor %vm2872, %vm2873
        %v2875 = vsel %vm2874, %v2866, %v2871
        %v2876 = vrsqrt.pop %v2761
        %v2877 = vmul.f32 %v2876, %v2761
        %v2878 = vmul.f32 %v2877, %v2876
        %v2879 = vmul.f32 0.5, %v2878
        %v2880 = vsub.f32 1.5, %v2879
        %v2881 = vmul.f32 %v2876, %v2880
        %vm2882 = vweird.f32 %v2761
        %vm2883 = vweird.f32 %v2876
        %vm2884 = vmor %vm2882, %vm2883
        %v2885 = vsel %vm2884, %v2876, %v2881
        %v2886 = vrsqrt.pop %v2762
        %v2887 = vmul.f32 %v2886, %v2762
        %v2888 = vmul.f32 %v2887, %v2886
        %v2889 = vmul.f32 0.5, %v2888
        %v2890 = vsub.f32 1.5, %v2889
        %v2891 = vmul.f32 %v2886, %v2890
        %vm2892 = vweird.f32 %v2762
        %vm2893 = vweird.f32 %v2886
        %vm2894 = vmor %vm2892, %vm2893
        %v2895 = vsel %vm2894, %v2886, %v2891
        %v2896 = vrsqrt.pop %v2763
        %v2897 = vmul.f32 %v2896, %v2763
        %v2898 = vmul.f32 %v2897, %v2896
        %v2899 = vmul.f32 0.5, %v2898
        %v2900 = vsub.f32 1.5, %v2899
        %v2901 = vmul.f32 %v2896, %v2900
        %vm2902 = vweird.f32 %v2763
        %vm2903 = vweird.f32 %v2896
        %vm2904 = vmor %vm2902, %vm2903
        %v2905 = vsel %vm2904, %v2896, %v2901
        %v2906 = vrsqrt.pop %v2764
        %v2907 = vmul.f32 %v2906, %v2764
        %v2908 = vmul.f32 %v2907, %v2906
        %v2909 = vmul.f32 0.5, %v2908
        %v2910 = vsub.f32 1.5, %v2909
        %v2911 = vmul.f32 %v2906, %v2910
        %vm2912 = vweird.f32 %v2764
        %vm2913 = vweird.f32 %v2906
        %vm2914 = vmor %vm2912, %vm2913
        %v2915 = vsel %vm2914, %v2906, %v2911
        %v2916 = vrsqrt.pop %v2765
        %v2917 = vmul.f32 %v2916, %v2765
        %v2918 = vmul.f32 %v2917, %v2916
        %v2919 = vmul.f32 0.5, %v2918
        %v2920 = vsub.f32 1.5, %v2919
        %v2921 = vmul.f32 %v2916, %v2920
        %vm2922 = vweird.f32 %v2765
        %vm2923 = vweird.f32 %v2916
        %vm2924 = vmor %vm2922, %vm2923
        %v2925 = vsel %vm2924, %v2916, %v2921
        %v2926 = vmul.f32 %v2734, %v2775
        %v2927 = vmul.f32 %v2735, %v2785
        %v2928 = vmul.f32 %v2736, %v2795
        %v2929 = vmul.f32 %v2737, %v2805
        %v2930 = vmul.f32 %v2738, %v2815
        %v2931 = vmul.f32 %v2739, %v2825
        %v2932 = vmul.f32 %v2740, %v2835
        %v2933 = vmul.f32 %v2741, %v2845
        %v2934 = vmul.f32 %v2742, %v2855
        %v2935 = vmul.f32 %v2743, %v2865
        %v2936 = vmul.f32 %v2744, %v2875
        %v2937 = vmul.f32 %v2745, %v2885
        %v2938 = vmul.f32 %v2746, %v2895
        %v2939 = vmul.f32 %v2747, %v2905
        %v2940 = vmul.f32 %v2748, %v2915
        %v2941 = vmul.f32 %v2749, %v2925
        %v2943 = vperm.slane %v2588, 0
        %v2945 = vmul.f32 %v2926, %v2943
        %v2946 = vmul.f32 %v2927, %v2943
        %v2947 = vmul.f32 %v2928, %v2943
        %v2948 = vmul.f32 %v2929, %v2943
        %v2949 = vmul.f32 %v2930, %v2943
        %v2950 = vmul.f32 %v2931, %v2943
        %v2951 = vmul.f32 %v2932, %v2943
        %v2952 = vmul.f32 %v2933, %v2943
        %v2953 = vmul.f32 %v2934, %v2943
        %v2954 = vmul.f32 %v2935, %v2943
        %v2955 = vmul.f32 %v2936, %v2943
        %v2956 = vmul.f32 %v2937, %v2943
        %v2957 = vmul.f32 %v2938, %v2943
        %v2958 = vmul.f32 %v2939, %v2943
        %v2959 = vmul.f32 %v2940, %v2943
        %v2960 = vmul.f32 %v2941, %v2943
        %v2962 = vperm.slane %v2589, 0
        %v2964 = vadd.f32 %v2945, %v2962
        %v2965 = vadd.f32 %v2946, %v2962
        %v2966 = vadd.f32 %v2947, %v2962
        %v2967 = vadd.f32 %v2948, %v2962
        %v2968 = vadd.f32 %v2949, %v2962
        %v2969 = vadd.f32 %v2950, %v2962
        %v2970 = vadd.f32 %v2951, %v2962
        %v2971 = vadd.f32 %v2952, %v2962
        %v2972 = vadd.f32 %v2953, %v2962
        %v2973 = vadd.f32 %v2954, %v2962
        %v2974 = vadd.f32 %v2955, %v2962
        %v2975 = vadd.f32 %v2956, %v2962
        %v2976 = vadd.f32 %v2957, %v2962
        %v2977 = vadd.f32 %v2958, %v2962
        %v2978 = vadd.f32 %v2959, %v2962
        %v2979 = vadd.f32 %v2960, %v2962
        %2980 = vst [vmem:[#allocation16] sm:$0xff] %v2964
        %2981 = vst [vmem:[#allocation16 + $0x8] sm:$0xff] %v2965
        %2982 = vst [vmem:[#allocation16 + $0x10] sm:$0xff] %v2966
        %2983 = vst [vmem:[#allocation16 + $0x18] sm:$0xff] %v2967
        %2984 = vst [vmem:[#allocation16 + $0x20] sm:$0xff] %v2968
        %2985 = vst [vmem:[#allocation16 + $0x28] sm:$0xff] %v2969
        %2986 = vst [vmem:[#allocation16 + $0x30] sm:$0xff] %v2970
        %2987 = vst [vmem:[#allocation16 + $0x38] sm:$0xff] %v2971
        %2988 = vst [vmem:[#allocation16 + $0x40] sm:$0xff] %v2972
        %2989 = vst [vmem:[#allocation16 + $0x48] sm:$0xff] %v2973
        %2990 = vst [vmem:[#allocation16 + $0x50] sm:$0xff] %v2974
        %2991 = vst [vmem:[#allocation16 + $0x58] sm:$0xff] %v2975
        %2992 = vst [vmem:[#allocation16 + $0x60] sm:$0xff] %v2976
        %2993 = vst [vmem:[#allocation16 + $0x68] sm:$0xff] %v2977
        %2994 = vst [vmem:[#allocation16 + $0x70] sm:$0xff] %v2978
        %2995 = vst [vmem:[#allocation16 + $0x78] sm:$0xff] %v2979
        // Predicated region
        $region125: #{tpu_custom_call.1} parent=75 // pred_check
          %p2996 = pneg %p395
        $region126: #{tpu_custom_call.1} parent=75 // pred_check_branch
          %2998 = sbr.rel (%p2996) target = $region128
        $region127: #{tpu_custom_call.1} parent=75 // pred_region
          %3000 = vsyncadd [#allocation4], 0
          %s3001 = sshll.u32 [#allocation16], 4
          %s3002 = int_to_ptr.vmem [resolvable:$true] %s3001
          %s3003 = sshll.u32 %s14, 4
          %s3004 = int_to_ptr.hbm [resolvable:$true] %s3003
          %3009 = dma.vmem_to_hbm [thread:$0]  %s3002, 2048, %s3004, [#allocation4], 128, 128, 8
        $region128: #{tpu_custom_call.1} parent=75 // pred_fallthru
          _
        // Predicated region
        $region129: #{tpu_custom_call.1} parent=75 // pred_check
          %p3010 = pneg %p395
        $region130: #{tpu_custom_call.1} parent=75 // pred_check_branch
          %3012 = sbr.rel (%p3010) target = $region132
        $region131: #{tpu_custom_call.1} parent=75 // pred_region
          %3014 = dma.done [#allocation4], 2048
        $region132: #{tpu_custom_call.1} parent=75 // pred_fallthru
          _
      $region76: #{tpu_custom_call.1} parent=5 // pred_fallthru
        _
      %p3015 = scmp.le.s32.totalorder 2, %s23
      // Predicated region
      $region133: #{tpu_custom_call.1} parent=5 // pred_check
        %p3016 = pneg %p3015
      $region134: #{tpu_custom_call.1} parent=5 // pred_check_branch
        %3018 = sbr.rel (%p3016) target = $region136
      $region135: #{tpu_custom_call.1} parent=5 // pred_region
        %s3019 = ssub.s32 %s23, 2
      $region136: #{tpu_custom_call.1} parent=5 // pred_fallthru
        _
    $region6: #{tpu_custom_call.1} parent=1 // loop_footer
      %s27 = sadd.s32 1, %s23
    $region7: #{tpu_custom_call.1} parent=1 // loop_footer_branch
      %22 = sbr.rel target = $region3
    $region8: #{tpu_custom_call.1} parent=1 // loop_exit
      _
    %3020 = vsyncpa [#allocation3], 1
    %s3021 = scalar_lea.sflag [#allocation3], 1
    %3022 = vsyncpa %s3021, 1
    %3023 = vsyncpa [#allocation6], 1
    %3024 = vsyncpa [#allocation4], 1
    %s3025 = scalar_lea.sflag [#allocation4], 1
    %3026 = vsyncpa %s3025, 1

</llo_original>
